<compile_context>
chip_gen: v5e
topology: v5e:2x2
jax: 0.10.0
libtpu: 0.0.40
codegen_flags: <defaults>
</compile_context>

<pallas_src>
import jax
import jax.numpy as jnp
import numpy as np
from jax import lax
from jax.experimental import pallas as pl
from jax.experimental.pallas import tpu as pltpu


# ----------------------------------------------------------------------------
# Fused kernel: one grid step per block of B images.
# ----------------------------------------------------------------------------
def _bottleneck_v4_kernel(x_ref, w1_ref, b1_ref, w2_ref, b2_ref,
                          w3_ref, b3_ref, sw1_ref, sb1_ref, sw2_ref, sb2_ref,
                          y_ref, pad_scr):
    # x_ref : [B, H, W, Cin]          (Cin == Cout, identity residual path)
    # w1_ref: [Cin, width]            conv1(1x1)+BN1 folded, output chans shuffled
    # w2_ref: [9, width, width]       per-tap block-diagonal 3x3 branch convs + BN2
    # w3_ref: [width, Cout]           conv3(1x1)+BN3 folded, group cumsum folded in
    # sw*/sb*: SE fc weights/biases (f32)
    # pad_scr: [B, H+2, W+2, width]   padded conv1 output (halo for the 3x3 taps)
    B, H, W, Cout = y_ref.shape
    Cin = x_ref.shape[3]
    width = w1_ref.shape[1]
    M = B * H * W
    cdt = w1_ref.dtype                      # matmul operand dtype (bf16 or f32)
    inv_hw = 1.0 / float(H * W)             # hoisted constant for the SE GAP

    x = x_ref[...].reshape(M, Cin)          # f32, reused for the residual add

    # conv1 (1x1) + BN1 + ReLU  (channel shuffle folded into w1's columns).
    t1 = jnp.dot(x.astype(cdt), w1_ref[...],
                 preferred_element_type=jnp.float32) + b1_ref[...]
    t1 = jnp.maximum(t1, 0.0)                                   # [M, width] f32

    # Zero only the 1-pixel halo ring; the interior is overwritten every step.
    pad_scr[:, 0:1, :, :] = jnp.zeros((B, 1, W + 2, width), cdt)
    pad_scr[:, H + 1:H + 2, :, :] = jnp.zeros((B, 1, W + 2, width), cdt)
    pad_scr[:, 1:H + 1, 0:1, :] = jnp.zeros((B, H, 1, width), cdt)
    pad_scr[:, 1:H + 1, W + 1:W + 2, :] = jnp.zeros((B, H, 1, width), cdt)
    pad_scr[:, 1:H + 1, 1:W + 1, :] = t1.astype(cdt).reshape(B, H, W, width)

    # res2net 3x3 branch convs as 9 accumulated tap matmuls with per-tap
    # block-diagonal weights (no im2col scratch, no masked 288-lane stores).
    acc = jnp.zeros((M, width), jnp.float32)
    for t in range(9):
        dy, dx = t // 3, t % 3
        tap = pad_scr[:, dy:dy + H, dx:dx + W, :].reshape(M, width)
        acc = acc + jnp.dot(tap, w2_ref[t], preferred_element_type=jnp.float32)
    r2 = jnp.maximum(acc + b2_ref[...], 0.0)                    # [M, width] f32

    # conv3 (1x1) + BN3, with the res2net group cumulative-sum folded into w3.
    y3 = jnp.dot(r2.astype(cdt), w3_ref[...],
                 preferred_element_type=jnp.float32) + b3_ref[...]   # [M, Cout]

    # SE block (per image, f32 throughout): GAP -> fc1 -> ReLU -> fc2 -> sigmoid.
    y3b = y3.reshape(B, H * W, Cout)
    m = jnp.sum(y3b, axis=1) * inv_hw                           # [B, Cout]
    h = jnp.maximum(jnp.dot(m, sw1_ref[...],
                            preferred_element_type=jnp.float32) + sb1_ref[...], 0.0)
    s = jax.nn.sigmoid(jnp.dot(h, sw2_ref[...],
                               preferred_element_type=jnp.float32) + sb2_ref[...])

    # channel scale + residual add + final ReLU (all f32).
    y = jnp.maximum(y3b * s[:, None, :] + x.reshape(B, H * W, Cout), 0.0)
    y_ref[...] = y.reshape(B, H, W, Cout).astype(y_ref.dtype)


def _pick_block_batch(n, max_blk=4):
    """Largest divisor of n that is <= max_blk while keeping >= 2 grid steps
    (v7x has 2 TensorCores; a 1-step grid leaves one idle)."""
    divs = [b for b in range(1, min(max_blk, n) + 1) if n % b == 0]
    multi = [b for b in divs if n // b >= 2]
    return max(multi) if multi else max(divs)


def bottleneck_v4_forward(x_nhwc, p, *, max_batch_block=4):
    """Fused BottleneckV4 forward.  x_nhwc: [N, H, W, Cin] float32 (NHWC end-to-end;
    no per-block layout transposes)."""
    N, H, W, Cin = x_nhwc.shape
    width = p["w1"].shape[1]
    Cout = p["w3"].shape[1]
    Cr = p["se_w1"].shape[1]
    assert Cin == Cout, "identity residual path requires inplanes == planes*expansion"

    B = _pick_block_batch(N, max_batch_block)
    grid_steps = N // B
    cdt = p["w1"].dtype
    cdt_size = jnp.dtype(cdt).itemsize

    # Explicit VMEM budget (double-buffered I/O blocks + weights + pad scratch),
    # capped below v7x's 64 MiB physical VMEM.
    io_blk_bytes = B * H * W * (Cin + Cout) * 4
    w_bytes = int(sum(int(v.size) * v.dtype.itemsize for v in p.values()))
    pad_bytes = B * (H + 2) * (W + 2) * width * cdt_size
    vmem_needed = 2 * (io_blk_bytes + w_bytes) + pad_bytes
    vmem_limit = int(min(max(4 * vmem_needed, 16 * 1024 * 1024), 64 * 1024 * 1024))

    flops = (2 * N * H * W * (Cin * width + 9 * width * width + width * Cout)
             + 2 * N * (Cout * Cr + Cr * Cout))
    bytes_accessed = int(N * H * W * (Cin + Cout) * 4 + w_bytes * grid_steps)

    y = pl.pallas_call(
        _bottleneck_v4_kernel,
        out_shape=jax.ShapeDtypeStruct((N, H, W, Cout), x_nhwc.dtype),
        grid_spec=pltpu.PrefetchScalarGridSpec(
            num_scalar_prefetch=0,
            grid=(grid_steps,),
            in_specs=[
                pl.BlockSpec((B, H, W, Cin), lambda n: (n, 0, 0, 0)),
                pl.BlockSpec((Cin, width), lambda n: (0, 0)),
                pl.BlockSpec((1, width), lambda n: (0, 0)),
                pl.BlockSpec((9, width, width), lambda n: (0, 0, 0)),
                pl.BlockSpec((1, width), lambda n: (0, 0)),
                pl.BlockSpec((width, Cout), lambda n: (0, 0)),
                pl.BlockSpec((1, Cout), lambda n: (0, 0)),
                pl.BlockSpec((Cout, Cr), lambda n: (0, 0)),
                pl.BlockSpec((1, Cr), lambda n: (0, 0)),
                pl.BlockSpec((Cr, Cout), lambda n: (0, 0)),
                pl.BlockSpec((1, Cout), lambda n: (0, 0)),
            ],
            out_specs=pl.BlockSpec((B, H, W, Cout), lambda n: (n, 0, 0, 0)),
            scratch_shapes=[
                pltpu.VMEM((B, H + 2, W + 2, width), cdt),
            ],
        ),
        compiler_params=pltpu.CompilerParams(
            dimension_semantics=("parallel",),
            vmem_limit_bytes=vmem_limit),
        cost_estimate=pl.CostEstimate(flops=flops,
                                      transcendentals=N * Cout,
                                      bytes_accessed=bytes_accessed),
    )(x_nhwc, p["w1"], p["b1"].reshape(1, width), p["w2"], p["b2"].reshape(1, width),
      p["w3"], p["b3"].reshape(1, Cout), p["se_w1"], p["se_b1"].reshape(1, Cr),
      p["se_w2"], p["se_b2"].reshape(1, Cout))
    return y


# ----------------------------------------------------------------------------
# Trace-time parameter folding (BN fold, shuffle fold, cumsum fold, dtype cast).
# ----------------------------------------------------------------------------
def fold_bn(w, gamma, beta, mean, var, eps=1e-5):
    s = gamma / jnp.sqrt(var + eps)
    return w * s, beta - mean * s


def fold_params(raw, scale, compute_dtype=jnp.bfloat16):
    # conv1 (1x1) + BN1, channel shuffle folded into the output-channel order.
    w1, b1 = fold_bn(raw["conv1_w"][0, 0], *raw["bn1"])          # [Cin, width]
    width = w1.shape[1]
    esp = width // scale
    perm = np.arange(width).reshape(scale, esp).T.reshape(-1)    # shuffled[c'] = x[perm[c']]
    w1 = w1[:, perm]
    b1 = b1[perm]

    # conv2 branches -> per-tap block-diagonal weights [9, width, width] + bias.
    w2_bd = jnp.zeros((3, 3, width, width), jnp.float32)
    b2_parts = []
    for i in range(scale):
        wf, bf = fold_bn(raw["conv2_w"][i], *raw["bn2"][i])      # HWIO [3,3,esp,esp]
        w2_bd = w2_bd.at[:, :, i * esp:(i + 1) * esp, i * esp:(i + 1) * esp].set(wf)
        b2_parts.append(bf)
    w2 = w2_bd.reshape(9, width, width)
    b2 = jnp.concatenate(b2_parts)

    # conv3 (1x1) + BN3, with the res2net group cumulative-sum folded in:
    # cat_i(sum_{j<=i} r_j) = r @ T  =>  conv3(bn3(cumsum)) = r @ (T @ W3f) + b3f
    w3, b3 = fold_bn(raw["conv3_w"][0, 0], *raw["bn3"])          # [width, Cout]
    grp = np.arange(width) // esp
    ln = np.arange(width) % esp
    T = ((ln[:, None] == ln[None, :]) & (grp[:, None] <= grp[None, :])).astype(np.float32)
    w3 = jnp.asarray(T) @ w3

    cdt = compute_dtype
    return {"w1": w1.astype(cdt), "b1": b1.astype(jnp.float32),
            "w2": w2.astype(cdt), "b2": b2.astype(jnp.float32),
            "w3": w3.astype(cdt), "b3": b3.astype(jnp.float32),
            "se_w1": raw["se_w1"].astype(jnp.float32), "se_b1": raw["se_b1"].astype(jnp.float32),
            "se_w2": raw["se_w2"].astype(jnp.float32), "se_b2": raw["se_b2"].astype(jnp.float32)}


# ----------------------------------------------------------------------------
# Pure-JAX NHWC reference mirroring the PyTorch forward step by step (unfolded).
# ----------------------------------------------------------------------------
def channel_shuffle_nhwc(x, groups):
    N, H, W, C = x.shape
    return (x.reshape(N, H, W, groups, C // groups)
            .transpose(0, 1, 2, 4, 3)
            .reshape(N, H, W, C))


def reference_forward(x, raw, scale):
    def conv2d(x, w, pad):
        return lax.conv_general_dilated(
            x, w, (1, 1), ((pad, pad), (pad, pad)),
            dimension_numbers=("NHWC", "HWIO", "NHWC"))

    def bn(x, prm):
        g, b, m, v = prm
        return (x - m) / jnp.sqrt(v + 1e-5) * g + b

    identity = x
    out = jax.nn.relu(bn(conv2d(x, raw["conv1_w"], 0), raw["bn1"]))
    out = channel_shuffle_nhwc(out, scale)
    esp = out.shape[-1] // scale
    results = []
    for i in range(scale):
        y = jax.nn.relu(bn(conv2d(out[..., i * esp:(i + 1) * esp],
                                  raw["conv2_w"][i], 1), raw["bn2"][i]))
        if i > 0:
            y = y + results[i - 1]
        results.append(y)
    out = jnp.concatenate(results, axis=-1)
    out = bn(conv2d(out, raw["conv3_w"], 0), raw["bn3"])
    m = jnp.mean(out, axis=(1, 2))
    h = jax.nn.relu(m @ raw["se_w1"] + raw["se_b1"])
    s = jax.nn.sigmoid(h @ raw["se_w2"] + raw["se_b2"])
    out = out * s[:, None, None, :]
    out = jax.nn.relu(out + identity)
    return out


if __name__ == "__main__":
    # BottleneckV4(inplanes=128, planes=32, scale=4), stride=1, downsample=None.
    planes, expansion, scale, reduces = 32, 4, 4, 16
    inplanes = planes * expansion      # identity residual requires inplanes == planes*4
    width = planes                     # base_width=64, groups=1
    esp = width // scale
    Cout = planes * expansion
    Cr = Cout // reduces
    N, H, W = 8, 8, 8                  # N=8, B_blk=4 -> 2 grid steps (both v7x TCs used)
    f32 = jnp.float32

    key = jax.random.PRNGKey(0)
    ks = jax.random.split(key, 32)

    def rnd(k, shape):
        return 0.1 * jax.random.normal(k, shape, f32)

    def bn_params(k, c):
        k0, k1, k2, k3 = jax.random.split(k, 4)
        return (1.0 + 0.1 * jax.random.normal(k0, (c,), f32),
                0.1 * jax.random.normal(k1, (c,), f32),
                0.1 * jax.random.normal(k2, (c,), f32),
                1.0 + 0.1 * jax.random.uniform(k3, (c,), f32))

    raw = {
        "conv1_w": rnd(ks[0], (1, 1, inplanes, width)),          # HWIO
        "bn1": bn_params(ks[1], width),
        "conv2_w": [rnd(ks[2 + i], (3, 3, esp, esp)) for i in range(scale)],
        "bn2": [bn_params(ks[6 + i], esp) for i in range(scale)],
        "conv3_w": rnd(ks[10], (1, 1, width, Cout)),
        "bn3": bn_params(ks[11], Cout),
        # nn.Linear is y = x @ W.T + b; parametrized directly as [in, out] here.
        "se_w1": rnd(ks[12], (Cout, Cr)),
        "se_b1": rnd(ks[13], (Cr,)),
        "se_w2": rnd(ks[14], (Cr, Cout)),
        "se_b2": rnd(ks[15], (Cout,)),
    }

    # NHWC end-to-end (the one-time NCHW<->NHWC conversion lives at the network
    # boundary in a real model, not around every bottleneck block).
    x = jax.random.normal(ks[16], (N, H, W, inplanes), f32)

    ref = reference_forward(x, raw, scale)

    params_f32 = fold_params(raw, scale, jnp.float32)            # strict-accuracy path
    params_bf16 = fold_params(raw, scale, jnp.bfloat16)          # perf default (v6e/v7x)

    out_f32 = bottleneck_v4_forward(x, params_f32)
    out_bf16 = bottleneck_v4_forward(x, params_bf16)
    jax.block_until_ready((out_f32, out_bf16, ref))

    assert out_f32.shape == (N, H, W, Cout)
    assert out_bf16.shape == (N, H, W, Cout)
    err_f32 = jnp.max(jnp.abs(out_f32 - ref))
    err_bf16 = jnp.max(jnp.abs(out_bf16 - ref))
    assert jnp.allclose(out_f32, ref, rtol=1e-3, atol=1e-3), f"f32 max abs diff {err_f32}"
    # bf16 matmul operands (f32 accumulation): tolerance commensurate with bf16 rounding.
    assert jnp.allclose(out_bf16, ref, rtol=5e-2, atol=5e-2), f"bf16 max abs diff {err_bf16}"
    print("KERNEL_OK")
</pallas_src>

<mosaic_0001>
module attributes {stable_mosaic.version = 11 : i64} {
  func.func @_bottleneck_v4_kernel(%arg0: i32, %arg1: memref<4x8x8x128xf32, #tpu.memory_space<vmem>>, %arg2: memref<128x32xf32, #tpu.memory_space<vmem>>, %arg3: memref<1x32xf32, #tpu.memory_space<vmem>>, %arg4: memref<9x32x32xf32, #tpu.memory_space<vmem>>, %arg5: memref<1x32xf32, #tpu.memory_space<vmem>>, %arg6: memref<32x128xf32, #tpu.memory_space<vmem>>, %arg7: memref<1x128xf32, #tpu.memory_space<vmem>>, %arg8: memref<128x8xf32, #tpu.memory_space<vmem>>, %arg9: memref<1x8xf32, #tpu.memory_space<vmem>>, %arg10: memref<8x128xf32, #tpu.memory_space<vmem>>, %arg11: memref<1x128xf32, #tpu.memory_space<vmem>>, %arg12: memref<4x8x8x128xf32, #tpu.memory_space<vmem>>, %arg13: memref<4x10x10x32xf32, #tpu.memory_space<vmem>>) attributes {dimension_semantics = [#tpu.dimension_semantics<parallel>], iteration_bounds = array<i64: 2>, scalar_prefetch = 0 : i64, scratch_operands = 1 : i64, tpu.core_type = #tpu.core_type<tc>, window_params = [{transform_indices = @transform_0, window_bounds = array<i64: 4, 8, 8, 128>}, {pipeline_mode = #tpu.pipeline_mode<synchronous>, transform_indices = @transform_1, window_bounds = array<i64: 128, 32>}, {pipeline_mode = #tpu.pipeline_mode<synchronous>, transform_indices = @transform_2, window_bounds = array<i64: 1, 32>}, {pipeline_mode = #tpu.pipeline_mode<synchronous>, transform_indices = @transform_3, window_bounds = array<i64: 9, 32, 32>}, {pipeline_mode = #tpu.pipeline_mode<synchronous>, transform_indices = @transform_4, window_bounds = array<i64: 1, 32>}, {pipeline_mode = #tpu.pipeline_mode<synchronous>, transform_indices = @transform_5, window_bounds = array<i64: 32, 128>}, {pipeline_mode = #tpu.pipeline_mode<synchronous>, transform_indices = @transform_6, window_bounds = array<i64: 1, 128>}, {pipeline_mode = #tpu.pipeline_mode<synchronous>, transform_indices = @transform_7, window_bounds = array<i64: 128, 8>}, {pipeline_mode = #tpu.pipeline_mode<synchronous>, transform_indices = @transform_8, window_bounds = array<i64: 1, 8>}, {pipeline_mode = #tpu.pipeline_mode<synchronous>, transform_indices = @transform_9, window_bounds = array<i64: 8, 128>}, {pipeline_mode = #tpu.pipeline_mode<synchronous>, transform_indices = @transform_10, window_bounds = array<i64: 1, 128>}, {transform_indices = @transform_11, window_bounds = array<i64: 4, 8, 8, 128>}]} {
    %c0 = arith.constant 0 : index
    %c0_0 = arith.constant 0 : index
    %c0_1 = arith.constant 0 : index
    %c0_2 = arith.constant 0 : index
    %0 = vector.load %arg1[%c0, %c0_0, %c0_1, %c0_2] : memref<4x8x8x128xf32, #tpu.memory_space<vmem>>, vector<4x8x8x128xf32>
    %1 = vector.shape_cast %0 : vector<4x8x8x128xf32> to vector<256x128xf32>
    %c0_3 = arith.constant 0 : index
    %c0_4 = arith.constant 0 : index
    %2 = vector.load %arg2[%c0_3, %c0_4] : memref<128x32xf32, #tpu.memory_space<vmem>>, vector<128x32xf32>
    %cst = arith.constant dense<0.000000e+00> : vector<256x32xf32>
    %3 = tpu.matmul %1, %2, %cst {dimension_numbers = #tpu.dot_dimension_numbers<[1], [0], [0], [1], [0, 0, 1, 1], [], []>} : vector<256x128xf32>, vector<128x32xf32>, vector<256x32xf32> -> vector<256x32xf32>
    %c0_5 = arith.constant 0 : index
    %c0_6 = arith.constant 0 : index
    %4 = vector.load %arg3[%c0_5, %c0_6] : memref<1x32xf32, #tpu.memory_space<vmem>>, vector<1x32xf32>
    %5 = vector.broadcast %4 : vector<1x32xf32> to vector<256x32xf32>
    %6 = arith.addf %3, %5 : vector<256x32xf32>
    %cst_7 = arith.constant 0.000000e+00 : f32
    %7 = vector.broadcast %cst_7 : f32 to vector<256x32xf32>
    %8 = arith.maximumf %6, %7 : vector<256x32xf32>
    %cst_8 = arith.constant 0.000000e+00 : f32
    %9 = vector.broadcast %cst_8 : f32 to vector<4x1x10x32xf32>
    %c0_9 = arith.constant 0 : index
    %c0_10 = arith.constant 0 : index
    %c0_11 = arith.constant 0 : index
    %c0_12 = arith.constant 0 : index
    %10 = vector.load %arg13[%c0_9, %c0_10, %c0_11, %c0_12] : memref<4x10x10x32xf32, #tpu.memory_space<vmem>>, vector<4x1x10x32xf32>
    tpu.vector_store %arg13[%c0_9, %c0_10, %c0_11, %c0_12], %9 {strides = array<i32>} : memref<4x10x10x32xf32, #tpu.memory_space<vmem>>, vector<4x1x10x32xf32>,
    %cst_13 = arith.constant 0.000000e+00 : f32
    %11 = vector.broadcast %cst_13 : f32 to vector<4x1x10x32xf32>
    %c0_14 = arith.constant 0 : index
    %c9 = arith.constant 9 : index
    %c0_15 = arith.constant 0 : index
    %c0_16 = arith.constant 0 : index
    %12 = vector.load %arg13[%c0_14, %c9, %c0_15, %c0_16] : memref<4x10x10x32xf32, #tpu.memory_space<vmem>>, vector<4x1x10x32xf32>
    tpu.vector_store %arg13[%c0_14, %c9, %c0_15, %c0_16], %11 {strides = array<i32>} : memref<4x10x10x32xf32, #tpu.memory_space<vmem>>, vector<4x1x10x32xf32>,
    %cst_17 = arith.constant 0.000000e+00 : f32
    %13 = vector.broadcast %cst_17 : f32 to vector<4x8x1x32xf32>
    %c0_18 = arith.constant 0 : index
    %c1 = arith.constant 1 : index
    %c0_19 = arith.constant 0 : index
    %c0_20 = arith.constant 0 : index
    %14 = vector.load %arg13[%c0_18, %c1, %c0_19, %c0_20] : memref<4x10x10x32xf32, #tpu.memory_space<vmem>>, vector<4x8x1x32xf32>
    tpu.vector_store %arg13[%c0_18, %c1, %c0_19, %c0_20], %13 {strides = array<i32>} : memref<4x10x10x32xf32, #tpu.memory_space<vmem>>, vector<4x8x1x32xf32>,
    %cst_21 = arith.constant 0.000000e+00 : f32
    %15 = vector.broadcast %cst_21 : f32 to vector<4x8x1x32xf32>
    %c0_22 = arith.constant 0 : index
    %c1_23 = arith.constant 1 : index
    %c9_24 = arith.constant 9 : index
    %c0_25 = arith.constant 0 : index
    %16 = vector.load %arg13[%c0_22, %c1_23, %c9_24, %c0_25] : memref<4x10x10x32xf32, #tpu.memory_space<vmem>>, vector<4x8x1x32xf32>
    tpu.vector_store %arg13[%c0_22, %c1_23, %c9_24, %c0_25], %15 {strides = array<i32>} : memref<4x10x10x32xf32, #tpu.memory_space<vmem>>, vector<4x8x1x32xf32>,
    %17 = vector.shape_cast %8 : vector<256x32xf32> to vector<4x8x8x32xf32>
    %c0_26 = arith.constant 0 : index
    %c1_27 = arith.constant 1 : index
    %c1_28 = arith.constant 1 : index
    %c0_29 = arith.constant 0 : index
    %18 = vector.load %arg13[%c0_26, %c1_27, %c1_28, %c0_29] : memref<4x10x10x32xf32, #tpu.memory_space<vmem>>, vector<4x8x8x32xf32>
    tpu.vector_store %arg13[%c0_26, %c1_27, %c1_28, %c0_29], %17 {strides = array<i32>} : memref<4x10x10x32xf32, #tpu.memory_space<vmem>>, vector<4x8x8x32xf32>,
    %cst_30 = arith.constant 0.000000e+00 : f32
    %19 = vector.broadcast %cst_30 : f32 to vector<256x32xf32>
    %c0_31 = arith.constant 0 : index
    %c0_32 = arith.constant 0 : index
    %c0_33 = arith.constant 0 : index
    %c0_34 = arith.constant 0 : index
    %20 = vector.load %arg13[%c0_31, %c0_32, %c0_33, %c0_34] : memref<4x10x10x32xf32, #tpu.memory_space<vmem>>, vector<4x8x8x32xf32>
    %21 = vector.shape_cast %20 : vector<4x8x8x32xf32> to vector<256x32xf32>
    %c0_35 = arith.constant 0 : index
    %c0_36 = arith.constant 0 : index
    %c0_37 = arith.constant 0 : index
    %22 = vector.load %arg4[%c0_35, %c0_36, %c0_37] : memref<9x32x32xf32, #tpu.memory_space<vmem>>, vector<1x32x32xf32>
    %23 = vector.shape_cast %22 : vector<1x32x32xf32> to vector<32x32xf32>
    %cst_38 = arith.constant dense<0.000000e+00> : vector<256x32xf32>
    %24 = tpu.matmul %21, %23, %cst_38 {dimension_numbers = #tpu.dot_dimension_numbers<[1], [0], [0], [1], [0, 0, 1, 1], [], []>} : vector<256x32xf32>, vector<32x32xf32>, vector<256x32xf32> -> vector<256x32xf32>
    %25 = arith.addf %19, %24 : vector<256x32xf32>
    %c0_39 = arith.constant 0 : index
    %c0_40 = arith.constant 0 : index
    %c1_41 = arith.constant 1 : index
    %c0_42 = arith.constant 0 : index
    %26 = vector.load %arg13[%c0_39, %c0_40, %c1_41, %c0_42] : memref<4x10x10x32xf32, #tpu.memory_space<vmem>>, vector<4x8x8x32xf32>
    %27 = vector.shape_cast %26 : vector<4x8x8x32xf32> to vector<256x32xf32>
    %c1_43 = arith.constant 1 : index
    %c0_44 = arith.constant 0 : index
    %c0_45 = arith.constant 0 : index
    %28 = vector.load %arg4[%c1_43, %c0_44, %c0_45] : memref<9x32x32xf32, #tpu.memory_space<vmem>>, vector<1x32x32xf32>
    %29 = vector.shape_cast %28 : vector<1x32x32xf32> to vector<32x32xf32>
    %cst_46 = arith.constant dense<0.000000e+00> : vector<256x32xf32>
    %30 = tpu.matmul %27, %29, %cst_46 {dimension_numbers = #tpu.dot_dimension_numbers<[1], [0], [0], [1], [0, 0, 1, 1], [], []>} : vector<256x32xf32>, vector<32x32xf32>, vector<256x32xf32> -> vector<256x32xf32>
    %31 = arith.addf %25, %30 : vector<256x32xf32>
    %c0_47 = arith.constant 0 : index
    %c0_48 = arith.constant 0 : index
    %c2 = arith.constant 2 : index
    %c0_49 = arith.constant 0 : index
    %32 = vector.load %arg13[%c0_47, %c0_48, %c2, %c0_49] : memref<4x10x10x32xf32, #tpu.memory_space<vmem>>, vector<4x8x8x32xf32>
    %33 = vector.shape_cast %32 : vector<4x8x8x32xf32> to vector<256x32xf32>
    %c2_50 = arith.constant 2 : index
    %c0_51 = arith.constant 0 : index
    %c0_52 = arith.constant 0 : index
    %34 = vector.load %arg4[%c2_50, %c0_51, %c0_52] : memref<9x32x32xf32, #tpu.memory_space<vmem>>, vector<1x32x32xf32>
    %35 = vector.shape_cast %34 : vector<1x32x32xf32> to vector<32x32xf32>
    %cst_53 = arith.constant dense<0.000000e+00> : vector<256x32xf32>
    %36 = tpu.matmul %33, %35, %cst_53 {dimension_numbers = #tpu.dot_dimension_numbers<[1], [0], [0], [1], [0, 0, 1, 1], [], []>} : vector<256x32xf32>, vector<32x32xf32>, vector<256x32xf32> -> vector<256x32xf32>
    %37 = arith.addf %31, %36 : vector<256x32xf32>
    %c0_54 = arith.constant 0 : index
    %c1_55 = arith.constant 1 : index
    %c0_56 = arith.constant 0 : index
    %c0_57 = arith.constant 0 : index
    %38 = vector.load %arg13[%c0_54, %c1_55, %c0_56, %c0_57] : memref<4x10x10x32xf32, #tpu.memory_space<vmem>>, vector<4x8x8x32xf32>
    %39 = vector.shape_cast %38 : vector<4x8x8x32xf32> to vector<256x32xf32>
    %c3 = arith.constant 3 : index
    %c0_58 = arith.constant 0 : index
    %c0_59 = arith.constant 0 : index
    %40 = vector.load %arg4[%c3, %c0_58, %c0_59] : memref<9x32x32xf32, #tpu.memory_space<vmem>>, vector<1x32x32xf32>
    %41 = vector.shape_cast %40 : vector<1x32x32xf32> to vector<32x32xf32>
    %cst_60 = arith.constant dense<0.000000e+00> : vector<256x32xf32>
    %42 = tpu.matmul %39, %41, %cst_60 {dimension_numbers = #tpu.dot_dimension_numbers<[1], [0], [0], [1], [0, 0, 1, 1], [], []>} : vector<256x32xf32>, vector<32x32xf32>, vector<256x32xf32> -> vector<256x32xf32>
    %43 = arith.addf %37, %42 : vector<256x32xf32>
    %c0_61 = arith.constant 0 : index
    %c1_62 = arith.constant 1 : index
    %c1_63 = arith.constant 1 : index
    %c0_64 = arith.constant 0 : index
    %44 = vector.load %arg13[%c0_61, %c1_62, %c1_63, %c0_64] : memref<4x10x10x32xf32, #tpu.memory_space<vmem>>, vector<4x8x8x32xf32>
    %45 = vector.shape_cast %44 : vector<4x8x8x32xf32> to vector<256x32xf32>
    %c4 = arith.constant 4 : index
    %c0_65 = arith.constant 0 : index
    %c0_66 = arith.constant 0 : index
    %46 = vector.load %arg4[%c4, %c0_65, %c0_66] : memref<9x32x32xf32, #tpu.memory_space<vmem>>, vector<1x32x32xf32>
    %47 = vector.shape_cast %46 : vector<1x32x32xf32> to vector<32x32xf32>
    %cst_67 = arith.constant dense<0.000000e+00> : vector<256x32xf32>
    %48 = tpu.matmul %45, %47, %cst_67 {dimension_numbers = #tpu.dot_dimension_numbers<[1], [0], [0], [1], [0, 0, 1, 1], [], []>} : vector<256x32xf32>, vector<32x32xf32>, vector<256x32xf32> -> vector<256x32xf32>
    %49 = arith.addf %43, %48 : vector<256x32xf32>
    %c0_68 = arith.constant 0 : index
    %c1_69 = arith.constant 1 : index
    %c2_70 = arith.constant 2 : index
    %c0_71 = arith.constant 0 : index
    %50 = vector.load %arg13[%c0_68, %c1_69, %c2_70, %c0_71] : memref<4x10x10x32xf32, #tpu.memory_space<vmem>>, vector<4x8x8x32xf32>
    %51 = vector.shape_cast %50 : vector<4x8x8x32xf32> to vector<256x32xf32>
    %c5 = arith.constant 5 : index
    %c0_72 = arith.constant 0 : index
    %c0_73 = arith.constant 0 : index
    %52 = vector.load %arg4[%c5, %c0_72, %c0_73] : memref<9x32x32xf32, #tpu.memory_space<vmem>>, vector<1x32x32xf32>
    %53 = vector.shape_cast %52 : vector<1x32x32xf32> to vector<32x32xf32>
    %cst_74 = arith.constant dense<0.000000e+00> : vector<256x32xf32>
    %54 = tpu.matmul %51, %53, %cst_74 {dimension_numbers = #tpu.dot_dimension_numbers<[1], [0], [0], [1], [0, 0, 1, 1], [], []>} : vector<256x32xf32>, vector<32x32xf32>, vector<256x32xf32> -> vector<256x32xf32>
    %55 = arith.addf %49, %54 : vector<256x32xf32>
    %c0_75 = arith.constant 0 : index
    %c2_76 = arith.constant 2 : index
    %c0_77 = arith.constant 0 : index
    %c0_78 = arith.constant 0 : index
    %56 = vector.load %arg13[%c0_75, %c2_76, %c0_77, %c0_78] : memref<4x10x10x32xf32, #tpu.memory_space<vmem>>, vector<4x8x8x32xf32>
    %57 = vector.shape_cast %56 : vector<4x8x8x32xf32> to vector<256x32xf32>
    %c6 = arith.constant 6 : index
    %c0_79 = arith.constant 0 : index
    %c0_80 = arith.constant 0 : index
    %58 = vector.load %arg4[%c6, %c0_79, %c0_80] : memref<9x32x32xf32, #tpu.memory_space<vmem>>, vector<1x32x32xf32>
    %59 = vector.shape_cast %58 : vector<1x32x32xf32> to vector<32x32xf32>
    %cst_81 = arith.constant dense<0.000000e+00> : vector<256x32xf32>
    %60 = tpu.matmul %57, %59, %cst_81 {dimension_numbers = #tpu.dot_dimension_numbers<[1], [0], [0], [1], [0, 0, 1, 1], [], []>} : vector<256x32xf32>, vector<32x32xf32>, vector<256x32xf32> -> vector<256x32xf32>
    %61 = arith.addf %55, %60 : vector<256x32xf32>
    %c0_82 = arith.constant 0 : index
    %c2_83 = arith.constant 2 : index
    %c1_84 = arith.constant 1 : index
    %c0_85 = arith.constant 0 : index
    %62 = vector.load %arg13[%c0_82, %c2_83, %c1_84, %c0_85] : memref<4x10x10x32xf32, #tpu.memory_space<vmem>>, vector<4x8x8x32xf32>
    %63 = vector.shape_cast %62 : vector<4x8x8x32xf32> to vector<256x32xf32>
    %c7 = arith.constant 7 : index
    %c0_86 = arith.constant 0 : index
    %c0_87 = arith.constant 0 : index
    %64 = vector.load %arg4[%c7, %c0_86, %c0_87] : memref<9x32x32xf32, #tpu.memory_space<vmem>>, vector<1x32x32xf32>
    %65 = vector.shape_cast %64 : vector<1x32x32xf32> to vector<32x32xf32>
    %cst_88 = arith.constant dense<0.000000e+00> : vector<256x32xf32>
    %66 = tpu.matmul %63, %65, %cst_88 {dimension_numbers = #tpu.dot_dimension_numbers<[1], [0], [0], [1], [0, 0, 1, 1], [], []>} : vector<256x32xf32>, vector<32x32xf32>, vector<256x32xf32> -> vector<256x32xf32>
    %67 = arith.addf %61, %66 : vector<256x32xf32>
    %c0_89 = arith.constant 0 : index
    %c2_90 = arith.constant 2 : index
    %c2_91 = arith.constant 2 : index
    %c0_92 = arith.constant 0 : index
    %68 = vector.load %arg13[%c0_89, %c2_90, %c2_91, %c0_92] : memref<4x10x10x32xf32, #tpu.memory_space<vmem>>, vector<4x8x8x32xf32>
    %69 = vector.shape_cast %68 : vector<4x8x8x32xf32> to vector<256x32xf32>
    %c8 = arith.constant 8 : index
    %c0_93 = arith.constant 0 : index
    %c0_94 = arith.constant 0 : index
    %70 = vector.load %arg4[%c8, %c0_93, %c0_94] : memref<9x32x32xf32, #tpu.memory_space<vmem>>, vector<1x32x32xf32>
    %71 = vector.shape_cast %70 : vector<1x32x32xf32> to vector<32x32xf32>
    %cst_95 = arith.constant dense<0.000000e+00> : vector<256x32xf32>
    %72 = tpu.matmul %69, %71, %cst_95 {dimension_numbers = #tpu.dot_dimension_numbers<[1], [0], [0], [1], [0, 0, 1, 1], [], []>} : vector<256x32xf32>, vector<32x32xf32>, vector<256x32xf32> -> vector<256x32xf32>
    %73 = arith.addf %67, %72 : vector<256x32xf32>
    %c0_96 = arith.constant 0 : index
    %c0_97 = arith.constant 0 : index
    %74 = vector.load %arg5[%c0_96, %c0_97] : memref<1x32xf32, #tpu.memory_space<vmem>>, vector<1x32xf32>
    %75 = vector.broadcast %74 : vector<1x32xf32> to vector<256x32xf32>
    %76 = arith.addf %73, %75 : vector<256x32xf32>
    %cst_98 = arith.constant 0.000000e+00 : f32
    %77 = vector.broadcast %cst_98 : f32 to vector<256x32xf32>
    %78 = arith.maximumf %76, %77 : vector<256x32xf32>
    %c0_99 = arith.constant 0 : index
    %c0_100 = arith.constant 0 : index
    %79 = vector.load %arg6[%c0_99, %c0_100] : memref<32x128xf32, #tpu.memory_space<vmem>>, vector<32x128xf32>
    %cst_101 = arith.constant dense<0.000000e+00> : vector<256x128xf32>
    %80 = tpu.matmul %78, %79, %cst_101 {dimension_numbers = #tpu.dot_dimension_numbers<[1], [0], [0], [1], [0, 0, 1, 1], [], []>} : vector<256x32xf32>, vector<32x128xf32>, vector<256x128xf32> -> vector<256x128xf32>
    %c0_102 = arith.constant 0 : index
    %c0_103 = arith.constant 0 : index
    %81 = vector.load %arg7[%c0_102, %c0_103] : memref<1x128xf32, #tpu.memory_space<vmem>>, vector<1x128xf32>
    %82 = vector.broadcast %81 : vector<1x128xf32> to vector<256x128xf32>
    %83 = arith.addf %80, %82 : vector<256x128xf32>
    %84 = vector.shape_cast %83 : vector<256x128xf32> to vector<4x64x128xf32>
    %cst_104 = arith.constant dense<0.000000e+00> : vector<4x128xf32>
    %85 = vector.multi_reduction <add>, %84, %cst_104 [1] : vector<4x64x128xf32> to vector<4x128xf32>
    %cst_105 = arith.constant 1.562500e-02 : f32
    %86 = vector.broadcast %cst_105 : f32 to vector<4x128xf32>
    %87 = arith.mulf %85, %86 : vector<4x128xf32>
    %c0_106 = arith.constant 0 : index
    %c0_107 = arith.constant 0 : index
    %88 = vector.load %arg8[%c0_106, %c0_107] : memref<128x8xf32, #tpu.memory_space<vmem>>, vector<128x8xf32>
    %cst_108 = arith.constant dense<0.000000e+00> : vector<4x8xf32>
    %89 = tpu.matmul %87, %88, %cst_108 {dimension_numbers = #tpu.dot_dimension_numbers<[1], [0], [0], [1], [0, 0, 1, 1], [], []>} : vector<4x128xf32>, vector<128x8xf32>, vector<4x8xf32> -> vector<4x8xf32>
    %c0_109 = arith.constant 0 : index
    %c0_110 = arith.constant 0 : index
    %90 = vector.load %arg9[%c0_109, %c0_110] : memref<1x8xf32, #tpu.memory_space<vmem>>, vector<1x8xf32>
    %91 = vector.broadcast %90 : vector<1x8xf32> to vector<4x8xf32>
    %92 = arith.addf %89, %91 : vector<4x8xf32>
    %cst_111 = arith.constant 0.000000e+00 : f32
    %93 = vector.broadcast %cst_111 : f32 to vector<4x8xf32>
    %94 = arith.maximumf %92, %93 : vector<4x8xf32>
    %c0_112 = arith.constant 0 : index
    %c0_113 = arith.constant 0 : index
    %95 = vector.load %arg10[%c0_112, %c0_113] : memref<8x128xf32, #tpu.memory_space<vmem>>, vector<8x128xf32>
    %cst_114 = arith.constant dense<0.000000e+00> : vector<4x128xf32>
    %96 = tpu.matmul %94, %95, %cst_114 {dimension_numbers = #tpu.dot_dimension_numbers<[1], [0], [0], [1], [0, 0, 1, 1], [], []>} : vector<4x8xf32>, vector<8x128xf32>, vector<4x128xf32> -> vector<4x128xf32>
    %c0_115 = arith.constant 0 : index
    %c0_116 = arith.constant 0 : index
    %97 = vector.load %arg11[%c0_115, %c0_116] : memref<1x128xf32, #tpu.memory_space<vmem>>, vector<1x128xf32>
    %98 = vector.broadcast %97 : vector<1x128xf32> to vector<4x128xf32>
    %99 = arith.addf %96, %98 : vector<4x128xf32>
    %100 = arith.negf %99 : vector<4x128xf32>
    %101 = math.exp %100 : vector<4x128xf32>
    %cst_117 = arith.constant 1.000000e+00 : f32
    %102 = vector.broadcast %cst_117 : f32 to vector<4x128xf32>
    %103 = arith.addf %102, %101 : vector<4x128xf32>
    %104 = arith.divf %102, %103 : vector<4x128xf32>
    %105 = vector.shape_cast %104 : vector<4x128xf32> to vector<4x1x128xf32>
    %106 = vector.broadcast %105 : vector<4x1x128xf32> to vector<4x64x128xf32>
    %107 = arith.mulf %84, %106 : vector<4x64x128xf32>
    %108 = vector.shape_cast %1 : vector<256x128xf32> to vector<4x64x128xf32>
    %109 = arith.addf %107, %108 : vector<4x64x128xf32>
    %cst_118 = arith.constant 0.000000e+00 : f32
    %110 = vector.broadcast %cst_118 : f32 to vector<4x64x128xf32>
    %111 = arith.maximumf %109, %110 : vector<4x64x128xf32>
    %112 = vector.shape_cast %111 : vector<4x64x128xf32> to vector<4x8x8x128xf32>
    %c0_119 = arith.constant 0 : index
    %c0_120 = arith.constant 0 : index
    %c0_121 = arith.constant 0 : index
    %c0_122 = arith.constant 0 : index
    %113 = vector.load %arg12[%c0_119, %c0_120, %c0_121, %c0_122] : memref<4x8x8x128xf32, #tpu.memory_space<vmem>>, vector<4x8x8x128xf32>
    tpu.vector_store %arg12[%c0_119, %c0_120, %c0_121, %c0_122], %112 {strides = array<i32>} : memref<4x8x8x128xf32, #tpu.memory_space<vmem>>, vector<4x8x8x128xf32>,
    return
  }
  func.func @transform_0(%arg0: i32) -> (i32, i32, i32, i32) {
    %c0_i32 = arith.constant 0 : i32
    %c0_i32_0 = arith.constant 0 : i32
    %c0_i32_1 = arith.constant 0 : i32
    %c0_i32_2 = arith.constant 0 : i32
    return %arg0, %c0_i32, %c0_i32_0, %c0_i32_1 : i32, i32, i32, i32
  }
  func.func @transform_1(%arg0: i32) -> (i32, i32) {
    %c0_i32 = arith.constant 0 : i32
    %c0_i32_0 = arith.constant 0 : i32
    %c0_i32_1 = arith.constant 0 : i32
    return %c0_i32, %c0_i32_0 : i32, i32
  }
  func.func @transform_2(%arg0: i32) -> (i32, i32) {
    %c0_i32 = arith.constant 0 : i32
    %c0_i32_0 = arith.constant 0 : i32
    %c0_i32_1 = arith.constant 0 : i32
    return %c0_i32, %c0_i32_0 : i32, i32
  }
  func.func @transform_3(%arg0: i32) -> (i32, i32, i32) {
    %c0_i32 = arith.constant 0 : i32
    %c0_i32_0 = arith.constant 0 : i32
    %c0_i32_1 = arith.constant 0 : i32
    %c0_i32_2 = arith.constant 0 : i32
    return %c0_i32, %c0_i32_0, %c0_i32_1 : i32, i32, i32
  }
  func.func @transform_4(%arg0: i32) -> (i32, i32) {
    %c0_i32 = arith.constant 0 : i32
    %c0_i32_0 = arith.constant 0 : i32
    %c0_i32_1 = arith.constant 0 : i32
    return %c0_i32, %c0_i32_0 : i32, i32
  }
  func.func @transform_5(%arg0: i32) -> (i32, i32) {
    %c0_i32 = arith.constant 0 : i32
    %c0_i32_0 = arith.constant 0 : i32
    %c0_i32_1 = arith.constant 0 : i32
    return %c0_i32, %c0_i32_0 : i32, i32
  }
  func.func @transform_6(%arg0: i32) -> (i32, i32) {
    %c0_i32 = arith.constant 0 : i32
    %c0_i32_0 = arith.constant 0 : i32
    %c0_i32_1 = arith.constant 0 : i32
    return %c0_i32, %c0_i32_0 : i32, i32
  }
  func.func @transform_7(%arg0: i32) -> (i32, i32) {
    %c0_i32 = arith.constant 0 : i32
    %c0_i32_0 = arith.constant 0 : i32
    %c0_i32_1 = arith.constant 0 : i32
    return %c0_i32, %c0_i32_0 : i32, i32
  }
  func.func @transform_8(%arg0: i32) -> (i32, i32) {
    %c0_i32 = arith.constant 0 : i32
    %c0_i32_0 = arith.constant 0 : i32
    %c0_i32_1 = arith.constant 0 : i32
    return %c0_i32, %c0_i32_0 : i32, i32
  }
  func.func @transform_9(%arg0: i32) -> (i32, i32) {
    %c0_i32 = arith.constant 0 : i32
    %c0_i32_0 = arith.constant 0 : i32
    %c0_i32_1 = arith.constant 0 : i32
    return %c0_i32, %c0_i32_0 : i32, i32
  }
  func.func @transform_10(%arg0: i32) -> (i32, i32) {
    %c0_i32 = arith.constant 0 : i32
    %c0_i32_0 = arith.constant 0 : i32
    %c0_i32_1 = arith.constant 0 : i32
    return %c0_i32, %c0_i32_0 : i32, i32
  }
  func.func @transform_11(%arg0: i32) -> (i32, i32, i32, i32) {
    %c0_i32 = arith.constant 0 : i32
    %c0_i32_0 = arith.constant 0 : i32
    %c0_i32_1 = arith.constant 0 : i32
    %c0_i32_2 = arith.constant 0 : i32
    return %arg0, %c0_i32, %c0_i32_0, %c0_i32_1 : i32, i32, i32, i32
  }
}

</mosaic_0001>

<llo_original>
// kernel: tpu_custom_call.1
$region0: #{tpu_custom_call.1}
  #allocation0 [shape = 'u32[]', space=smem, size = 0x4, offset = 0x4, fixed_abs, tag = 'smem constant byte address 0x4 - core index']
  #allocation1 [shape = 'u32[72,128]{1,0:T(1,128)}', space=vmem, size = 0x9000, scoped, tag = 'internal scratch']
  #allocation2 [shape = 'f32[4,10,10,32]{3,2,1,0:T(8,128)}', space=vmem, size = 0x50000, scoped, tag = 'scratch operand']
  %s0 = inlined_call_operand.hbm [shape: f32[8,8,8,128], index: 0, kind: input, shape index: {}]
  %s1 = inlined_call_operand.vmem [shape: f32[128,32], index: 1, kind: input, shape index: {}]
  %s2 = inlined_call_operand.vmem [shape: f32[1,32], index: 2, kind: input, shape index: {}]
  %s3 = inlined_call_operand.vmem [shape: f32[9,32,32], index: 3, kind: input, shape index: {}]
  %s4 = inlined_call_operand.vmem [shape: f32[1,32], index: 4, kind: input, shape index: {}]
  %s5 = inlined_call_operand.hbm [shape: f32[32,128], index: 5, kind: input, shape index: {}]
  %s6 = inlined_call_operand.vmem [shape: f32[1,128], index: 6, kind: input, shape index: {}]
  %s7 = inlined_call_operand.vmem [shape: f32[128,8], index: 7, kind: input, shape index: {}]
  %s8 = inlined_call_operand.vmem [shape: f32[1,8], index: 8, kind: input, shape index: {}]
  %s9 = inlined_call_operand.hbm [shape: f32[8,128], index: 9, kind: input, shape index: {}]
  %s10 = inlined_call_operand.vmem [shape: f32[1,128], index: 10, kind: input, shape index: {}]
  %s11 = inlined_call_operand.hbm [shape: f32[8,8,8,128], index: 11, kind: output, shape index: {}]
  %s12 = sld [smem:[#allocation0]]
  $region89: #{tpu_custom_call.1} parent=0
    _
  %s14 = ssub.s32 1, %s12
  %s15 = scalar_select 0, %s14, %s12
  $region1: #{tpu_custom_call.1} parent=0
    #allocation3 [shape = 'u8[262144]{0}', space=vmem, size = 0x40000, scoped, tag = 'input window, operand 0']
    #allocation4 [shape = 's32[2]{0}', space=sflag, size = 0x8, scoped, tag = 'scoped memory for tpu_custom_call.1']
    #allocation5 [shape = 's32[2]{0}', space=sflag, size = 0x8, scoped, tag = 'scoped memory for tpu_custom_call.1']
    #allocation6 [shape = 'u8[16384]{0}', space=vmem, size = 0x4000, scoped, tag = 'input window, operand 5, single buffered']
    #allocation7 [shape = 's32[1]{0}', space=sflag, size = 0x4, scoped, tag = 'scoped memory for tpu_custom_call.1']
    #allocation8 [shape = 'u8[4096]{0}', space=vmem, size = 0x1000, scoped, tag = 'input window, operand 9, single buffered']
    #allocation9 [shape = 'u8[262144]{0}', space=vmem, size = 0x40000, scoped, tag = 'output window, operand 0']
    %16 = vsyncpa [#allocation4], 0
    %s17 = scalar_lea.sflag [#allocation4], 1
    %18 = vsyncpa %s17, 0
    %19 = vsyncpa [#allocation7], 0
    %20 = vsyncpa [#allocation5], 0
    %s21 = scalar_lea.sflag [#allocation5], 1
    %22 = vsyncpa %s21, 0
    loop: start=0, step=1, limit=4
    $region2: #{tpu_custom_call.1} parent=1 // loop_pre_header
      _
    $region3: #{tpu_custom_call.1} parent=1 // loop_header
      %s24 = sphi 0, %s28
      %p25 = scmp.ge.s32.totalorder %s24, 4
      %s34 = sphi 0, %s36
      %s37 = sphi 0, %s34
      %s38 = sphi 0, %s37
      %s54 = sphi 0, %s38
      %s58 = sphi 0, %s58
      %s60 = sphi 0, %s58
      %s61 = sphi 0, %s60
      %s75 = sphi 0, %s61
      %s79 = sphi 0, %s79
      %s81 = sphi 0, %s79
      %s82 = sphi 0, %s81
      %s96 = sphi 0, %s82
      %s100 = sphi 0, %s100
      %s102 = sphi 0, %s100
      %s103 = sphi 0, %s102
      %s117 = sphi 0, %s103
      %s121 = sphi 0, %s121
      %s123 = sphi 0, %s121
      %s124 = sphi 0, %s123
      %s138 = sphi 0, %s124
      %s142 = sphi 0, %s142
      %s144 = sphi 0, %s142
      %s145 = sphi 0, %s144
      %s159 = sphi 0, %s145
      %s163 = sphi 0, %s163
      %s165 = sphi 0, %s163
      %s166 = sphi 0, %s165
      %s180 = sphi 0, %s166
      %s184 = sphi 0, %s184
      %s186 = sphi 0, %s184
      %s187 = sphi 0, %s186
      %s201 = sphi 0, %s187
      %s205 = sphi 0, %s205
      %s207 = sphi 0, %s205
      %s208 = sphi 0, %s207
      %s222 = sphi 0, %s208
      %s226 = sphi 0, %s226
      %s228 = sphi 0, %s226
      %s229 = sphi 0, %s228
      %s243 = sphi 0, %s229
      %s247 = sphi 0, %s247
      %s249 = sphi 0, %s247
      %s250 = sphi 0, %s249
      %s264 = sphi 0, %s250
      %s270 = sphi 0, %s272
      %s273 = sphi 0, %s270
      %s274 = sphi 0, %s273
      %s290 = sphi 0, %s274
    $region4: #{tpu_custom_call.1} parent=1 // loop_header_branch
      %27 = sbr.rel (%p25) target = $region8
    $region5: #{tpu_custom_call.1} parent=1 // loop_body
      %s29 = ssub.s32 %s24, 1
      %s30 = ssub.s32 %s24, 2
      %s31 = sadd.s32 %s24, 1
      %s32 = ssub.s32 %s24, %s31
      %p33 = scmp.eq.s32.totalorder %s32, 0
      %s35 = sadd.s32 %s34, 1
      %s36 = scalar_select %p33, %s34, %s35
      %p39 = pneg %p33
      %p40 = scmp.eq.s32.totalorder %s24, 1
      %p41 = por %p39, %p40
      %p42 = scmp.ne.s32.totalorder %s34, %s37
      %p43 = scmp.eq.s32.totalorder %s24, 0
      %p44 = por %p42, %p43
      %p45 = scmp.ne.s32.totalorder %s34, %s37
      %p46 = scmp.eq.s32.totalorder %s29, 1
      %p47 = por %p45, %p46
      %p48 = scmp.ne.s32.totalorder %s37, %s38
      %p49 = scmp.eq.s32.totalorder %s29, 0
      %p50 = por %p48, %p49
      %p51 = scmp.ne.s32.totalorder %s37, %s38
      %p52 = scmp.eq.s32.totalorder %s30, 1
      %p53 = por %p51, %p52
      %p55 = scmp.ne.s32.totalorder %s38, %s54
      %p56 = scmp.eq.s32.totalorder %s30, 0
      %p57 = por %p55, %p56
      %s59 = sadd.s32 %s58, 1
      %p62 = scmp.eq.s32.totalorder %s24, 1
      %p63 = scmp.ne.s32.totalorder %s58, %s60
      %p64 = scmp.eq.s32.totalorder %s24, 0
      %p65 = por %p63, %p64
      %p66 = scmp.ne.s32.totalorder %s58, %s60
      %p67 = scmp.eq.s32.totalorder %s29, 1
      %p68 = por %p66, %p67
      %p69 = scmp.ne.s32.totalorder %s60, %s61
      %p70 = scmp.eq.s32.totalorder %s29, 0
      %p71 = por %p69, %p70
      %p72 = scmp.ne.s32.totalorder %s60, %s61
      %p73 = scmp.eq.s32.totalorder %s30, 1
      %p74 = por %p72, %p73
      %p76 = scmp.ne.s32.totalorder %s61, %s75
      %p77 = scmp.eq.s32.totalorder %s30, 0
      %p78 = por %p76, %p77
      %s80 = sadd.s32 %s79, 1
      %p83 = scmp.eq.s32.totalorder %s24, 1
      %p84 = scmp.ne.s32.totalorder %s79, %s81
      %p85 = scmp.eq.s32.totalorder %s24, 0
      %p86 = por %p84, %p85
      %p87 = scmp.ne.s32.totalorder %s79, %s81
      %p88 = scmp.eq.s32.totalorder %s29, 1
      %p89 = por %p87, %p88
      %p90 = scmp.ne.s32.totalorder %s81, %s82
      %p91 = scmp.eq.s32.totalorder %s29, 0
      %p92 = por %p90, %p91
      %p93 = scmp.ne.s32.totalorder %s81, %s82
      %p94 = scmp.eq.s32.totalorder %s30, 1
      %p95 = por %p93, %p94
      %p97 = scmp.ne.s32.totalorder %s82, %s96
      %p98 = scmp.eq.s32.totalorder %s30, 0
      %p99 = por %p97, %p98
      %s101 = sadd.s32 %s100, 1
      %p104 = scmp.eq.s32.totalorder %s24, 1
      %p105 = scmp.ne.s32.totalorder %s100, %s102
      %p106 = scmp.eq.s32.totalorder %s24, 0
      %p107 = por %p105, %p106
      %p108 = scmp.ne.s32.totalorder %s100, %s102
      %p109 = scmp.eq.s32.totalorder %s29, 1
      %p110 = por %p108, %p109
      %p111 = scmp.ne.s32.totalorder %s102, %s103
      %p112 = scmp.eq.s32.totalorder %s29, 0
      %p113 = por %p111, %p112
      %p114 = scmp.ne.s32.totalorder %s102, %s103
      %p115 = scmp.eq.s32.totalorder %s30, 1
      %p116 = por %p114, %p115
      %p118 = scmp.ne.s32.totalorder %s103, %s117
      %p119 = scmp.eq.s32.totalorder %s30, 0
      %p120 = por %p118, %p119
      %s122 = sadd.s32 %s121, 1
      %p125 = scmp.eq.s32.totalorder %s24, 1
      %p126 = scmp.ne.s32.totalorder %s121, %s123
      %p127 = scmp.eq.s32.totalorder %s24, 0
      %p128 = por %p126, %p127
      %p129 = scmp.ne.s32.totalorder %s121, %s123
      %p130 = scmp.eq.s32.totalorder %s29, 1
      %p131 = por %p129, %p130
      %p132 = scmp.ne.s32.totalorder %s123, %s124
      %p133 = scmp.eq.s32.totalorder %s29, 0
      %p134 = por %p132, %p133
      %p135 = scmp.ne.s32.totalorder %s123, %s124
      %p136 = scmp.eq.s32.totalorder %s30, 1
      %p137 = por %p135, %p136
      %p139 = scmp.ne.s32.totalorder %s124, %s138
      %p140 = scmp.eq.s32.totalorder %s30, 0
      %p141 = por %p139, %p140
      %s143 = sadd.s32 %s142, 1
      %p146 = scmp.eq.s32.totalorder %s24, 1
      %p147 = scmp.ne.s32.totalorder %s142, %s144
      %p148 = scmp.eq.s32.totalorder %s24, 0
      %p149 = por %p147, %p148
      %p150 = scmp.ne.s32.totalorder %s142, %s144
      %p151 = scmp.eq.s32.totalorder %s29, 1
      %p152 = por %p150, %p151
      %p153 = scmp.ne.s32.totalorder %s144, %s145
      %p154 = scmp.eq.s32.totalorder %s29, 0
      %p155 = por %p153, %p154
      %p156 = scmp.ne.s32.totalorder %s144, %s145
      %p157 = scmp.eq.s32.totalorder %s30, 1
      %p158 = por %p156, %p157
      %p160 = scmp.ne.s32.totalorder %s145, %s159
      %p161 = scmp.eq.s32.totalorder %s30, 0
      %p162 = por %p160, %p161
      %s164 = sadd.s32 %s163, 1
      %p167 = scmp.eq.s32.totalorder %s24, 1
      %p168 = scmp.ne.s32.totalorder %s163, %s165
      %p169 = scmp.eq.s32.totalorder %s24, 0
      %p170 = por %p168, %p169
      %p171 = scmp.ne.s32.totalorder %s163, %s165
      %p172 = scmp.eq.s32.totalorder %s29, 1
      %p173 = por %p171, %p172
      %p174 = scmp.ne.s32.totalorder %s165, %s166
      %p175 = scmp.eq.s32.totalorder %s29, 0
      %p176 = por %p174, %p175
      %p177 = scmp.ne.s32.totalorder %s165, %s166
      %p178 = scmp.eq.s32.totalorder %s30, 1
      %p179 = por %p177, %p178
      %p181 = scmp.ne.s32.totalorder %s166, %s180
      %p182 = scmp.eq.s32.totalorder %s30, 0
      %p183 = por %p181, %p182
      %s185 = sadd.s32 %s184, 1
      %p188 = scmp.eq.s32.totalorder %s24, 1
      %p189 = scmp.ne.s32.totalorder %s184, %s186
      %p190 = scmp.eq.s32.totalorder %s24, 0
      %p191 = por %p189, %p190
      %p192 = scmp.ne.s32.totalorder %s184, %s186
      %p193 = scmp.eq.s32.totalorder %s29, 1
      %p194 = por %p192, %p193
      %p195 = scmp.ne.s32.totalorder %s186, %s187
      %p196 = scmp.eq.s32.totalorder %s29, 0
      %p197 = por %p195, %p196
      %p198 = scmp.ne.s32.totalorder %s186, %s187
      %p199 = scmp.eq.s32.totalorder %s30, 1
      %p200 = por %p198, %p199
      %p202 = scmp.ne.s32.totalorder %s187, %s201
      %p203 = scmp.eq.s32.totalorder %s30, 0
      %p204 = por %p202, %p203
      %s206 = sadd.s32 %s205, 1
      %p209 = scmp.eq.s32.totalorder %s24, 1
      %p210 = scmp.ne.s32.totalorder %s205, %s207
      %p211 = scmp.eq.s32.totalorder %s24, 0
      %p212 = por %p210, %p211
      %p213 = scmp.ne.s32.totalorder %s205, %s207
      %p214 = scmp.eq.s32.totalorder %s29, 1
      %p215 = por %p213, %p214
      %p216 = scmp.ne.s32.totalorder %s207, %s208
      %p217 = scmp.eq.s32.totalorder %s29, 0
      %p218 = por %p216, %p217
      %p219 = scmp.ne.s32.totalorder %s207, %s208
      %p220 = scmp.eq.s32.totalorder %s30, 1
      %p221 = por %p219, %p220
      %p223 = scmp.ne.s32.totalorder %s208, %s222
      %p224 = scmp.eq.s32.totalorder %s30, 0
      %p225 = por %p223, %p224
      %s227 = sadd.s32 %s226, 1
      %p230 = scmp.eq.s32.totalorder %s24, 1
      %p231 = scmp.ne.s32.totalorder %s226, %s228
      %p232 = scmp.eq.s32.totalorder %s24, 0
      %p233 = por %p231, %p232
      %p234 = scmp.ne.s32.totalorder %s226, %s228
      %p235 = scmp.eq.s32.totalorder %s29, 1
      %p236 = por %p234, %p235
      %p237 = scmp.ne.s32.totalorder %s228, %s229
      %p238 = scmp.eq.s32.totalorder %s29, 0
      %p239 = por %p237, %p238
      %p240 = scmp.ne.s32.totalorder %s228, %s229
      %p241 = scmp.eq.s32.totalorder %s30, 1
      %p242 = por %p240, %p241
      %p244 = scmp.ne.s32.totalorder %s229, %s243
      %p245 = scmp.eq.s32.totalorder %s30, 0
      %p246 = por %p244, %p245
      %s248 = sadd.s32 %s247, 1
      %p251 = scmp.eq.s32.totalorder %s24, 1
      %p252 = scmp.ne.s32.totalorder %s247, %s249
      %p253 = scmp.eq.s32.totalorder %s24, 0
      %p254 = por %p252, %p253
      %p255 = scmp.ne.s32.totalorder %s247, %s249
      %p256 = scmp.eq.s32.totalorder %s29, 1
      %p257 = por %p255, %p256
      %p258 = scmp.ne.s32.totalorder %s249, %s250
      %p259 = scmp.eq.s32.totalorder %s29, 0
      %p260 = por %p258, %p259
      %p261 = scmp.ne.s32.totalorder %s249, %s250
      %p262 = scmp.eq.s32.totalorder %s30, 1
      %p263 = por %p261, %p262
      %p265 = scmp.ne.s32.totalorder %s250, %s264
      %p266 = scmp.eq.s32.totalorder %s30, 0
      %p267 = por %p265, %p266
      %s268 = ssub.s32 %s24, %s31
      %p269 = scmp.eq.s32.totalorder %s268, 0
      %s271 = sadd.s32 %s270, 1
      %s272 = scalar_select %p269, %s270, %s271
      %p275 = pneg %p269
      %p276 = scmp.eq.s32.totalorder %s24, 1
      %p277 = por %p275, %p276
      %p278 = scmp.ne.s32.totalorder %s270, %s273
      %p279 = scmp.eq.s32.totalorder %s24, 0
      %p280 = por %p278, %p279
      %p281 = scmp.ne.s32.totalorder %s270, %s273
      %p282 = scmp.eq.s32.totalorder %s29, 1
      %p283 = por %p281, %p282
      %p284 = scmp.ne.s32.totalorder %s273, %s274
      %p285 = scmp.eq.s32.totalorder %s29, 0
      %p286 = por %p284, %p285
      %p287 = scmp.ne.s32.totalorder %s273, %s274
      %p288 = scmp.eq.s32.totalorder %s30, 1
      %p289 = por %p287, %p288
      %p291 = scmp.ne.s32.totalorder %s274, %s290
      %p292 = scmp.eq.s32.totalorder %s30, 0
      %p293 = por %p291, %p292
      %p294 = scmp.le.s32.totalorder 1, %s24
      %p295 = scmp.lt.s32.totalorder %s24, 3
      %p296 = pnand %p294, %p295
      %p297 = pneg %p296
      // Predicated region
      $region9: #{tpu_custom_call.1} parent=5 // pred_check
        _
      $region10: #{tpu_custom_call.1} parent=5 // pred_check_branch
        %299 = sbr.rel (%p296) target = $region12
      $region11: #{tpu_custom_call.1} parent=5 // pred_region
        %s300 = ssub.s32 %s24, 1
        // Predicated region
        $region13: #{tpu_custom_call.1} parent=11 // pred_check
          %p301 = pneg %p71
        $region14: #{tpu_custom_call.1} parent=11 // pred_check_branch
          %303 = sbr.rel (%p301) target = $region16
        $region15: #{tpu_custom_call.1} parent=11 // pred_region
          _
        $region16: #{tpu_custom_call.1} parent=11 // pred_fallthru
          _
        // Predicated region
        $region17: #{tpu_custom_call.1} parent=11 // pred_check
          %p304 = pneg %p92
        $region18: #{tpu_custom_call.1} parent=11 // pred_check_branch
          %306 = sbr.rel (%p304) target = $region20
        $region19: #{tpu_custom_call.1} parent=11 // pred_region
          _
        $region20: #{tpu_custom_call.1} parent=11 // pred_fallthru
          _
        // Predicated region
        $region21: #{tpu_custom_call.1} parent=11 // pred_check
          %p307 = pneg %p113
        $region22: #{tpu_custom_call.1} parent=11 // pred_check_branch
          %309 = sbr.rel (%p307) target = $region24
        $region23: #{tpu_custom_call.1} parent=11 // pred_region
          _
        $region24: #{tpu_custom_call.1} parent=11 // pred_fallthru
          _
        // Predicated region
        $region25: #{tpu_custom_call.1} parent=11 // pred_check
          %p310 = pneg %p134
        $region26: #{tpu_custom_call.1} parent=11 // pred_check_branch
          %312 = sbr.rel (%p310) target = $region28
        $region27: #{tpu_custom_call.1} parent=11 // pred_region
          _
        $region28: #{tpu_custom_call.1} parent=11 // pred_fallthru
          _
        // Predicated region
        $region29: #{tpu_custom_call.1} parent=11 // pred_check
          %p313 = pneg %p155
        $region30: #{tpu_custom_call.1} parent=11 // pred_check_branch
          %315 = sbr.rel (%p313) target = $region32
        $region31: #{tpu_custom_call.1} parent=11 // pred_region
          %317 = vsyncadd [#allocation7], 0
          %s318 = sshll.u32 %s5, 4
          %s319 = int_to_ptr.hbm [resolvable:$true] %s318
          %s320 = sshll.u32 [#allocation6], 4
          %s321 = int_to_ptr.vmem [resolvable:$true] %s320
          %326 = dma.hbm_to_vmem [thread:$0]  %s319, 512, %s321, [#allocation7], 128, 128, 8
        $region32: #{tpu_custom_call.1} parent=11 // pred_fallthru
          _
        // Predicated region
        $region33: #{tpu_custom_call.1} parent=11 // pred_check
          %p327 = pneg %p176
        $region34: #{tpu_custom_call.1} parent=11 // pred_check_branch
          %329 = sbr.rel (%p327) target = $region36
        $region35: #{tpu_custom_call.1} parent=11 // pred_region
          _
        $region36: #{tpu_custom_call.1} parent=11 // pred_fallthru
          _
        // Predicated region
        $region37: #{tpu_custom_call.1} parent=11 // pred_check
          %p330 = pneg %p197
        $region38: #{tpu_custom_call.1} parent=11 // pred_check_branch
          %332 = sbr.rel (%p330) target = $region40
        $region39: #{tpu_custom_call.1} parent=11 // pred_region
          _
        $region40: #{tpu_custom_call.1} parent=11 // pred_fallthru
          _
        // Predicated region
        $region41: #{tpu_custom_call.1} parent=11 // pred_check
          %p333 = pneg %p218
        $region42: #{tpu_custom_call.1} parent=11 // pred_check_branch
          %335 = sbr.rel (%p333) target = $region44
        $region43: #{tpu_custom_call.1} parent=11 // pred_region
          _
        $region44: #{tpu_custom_call.1} parent=11 // pred_fallthru
          _
        // Predicated region
        $region45: #{tpu_custom_call.1} parent=11 // pred_check
          %p336 = pneg %p239
        $region46: #{tpu_custom_call.1} parent=11 // pred_check_branch
          %338 = sbr.rel (%p336) target = $region48
        $region47: #{tpu_custom_call.1} parent=11 // pred_region
          %340 = vsyncadd [#allocation7], 0
          %s342 = sshll.u32 %s9, 4
          %s343 = int_to_ptr.hbm [resolvable:$true] %s342
          %s344 = sshll.u32 [#allocation8], 4
          %s345 = int_to_ptr.vmem [resolvable:$true] %s344
          %347 = dma.hbm_to_vmem [thread:$0]  %s343, 128, %s345, [#allocation7]
        $region48: #{tpu_custom_call.1} parent=11 // pred_fallthru
          _
        // Predicated region
        $region49: #{tpu_custom_call.1} parent=11 // pred_check
          %p348 = pneg %p260
        $region50: #{tpu_custom_call.1} parent=11 // pred_check_branch
          %350 = sbr.rel (%p348) target = $region52
        $region51: #{tpu_custom_call.1} parent=11 // pred_region
          _
        $region52: #{tpu_custom_call.1} parent=11 // pred_fallthru
          _
      $region12: #{tpu_custom_call.1} parent=5 // pred_fallthru
        _
      %p351 = scmp.lt.s32.totalorder %s24, 2
      // Predicated region
      $region53: #{tpu_custom_call.1} parent=5 // pred_check
        %p352 = pneg %p351
      $region54: #{tpu_custom_call.1} parent=5 // pred_check_branch
        %354 = sbr.rel (%p352) target = $region56
      $region55: #{tpu_custom_call.1} parent=5 // pred_region
        // Predicated region
        $region57: #{tpu_custom_call.1} parent=55 // pred_check
          %p355 = pneg %p44
        $region58: #{tpu_custom_call.1} parent=55 // pred_check_branch
          %357 = sbr.rel (%p355) target = $region60
        $region59: #{tpu_custom_call.1} parent=55 // pred_region
          %s358 = sand.u32 %s34, 1
          %s359 = scalar_lea.sflag [#allocation4], %s358
          %s360 = sand.u32 %s34, 1
          %s361 = smul.addr %s360, 256
          %s362 = scalar_lea.vmem [#allocation3], %s361
          %s363 = smul.u32 4, %s24
          %365 = vsyncadd %s359, 0
          %s366 = smul.addr %s363, 8
          %s367 = smul.addr %s366, 8
          %s368 = scalar_lea.hbm %s0, %s367
          %s369 = sshll.u32 %s368, 4
          %s370 = int_to_ptr.hbm [resolvable:$true] %s369
          %s371 = sshll.u32 %s362, 4
          %s372 = int_to_ptr.vmem [resolvable:$true] %s371
          %377 = dma.hbm_to_vmem [thread:$0]  %s370, 4096, %s372, %s359, 128, 128, 8
        $region60: #{tpu_custom_call.1} parent=55 // pred_fallthru
          _
      $region56: #{tpu_custom_call.1} parent=5 // pred_fallthru
        _
      %p378 = scmp.le.s32.totalorder 1, %s24
      %p379 = scmp.lt.s32.totalorder %s24, 3
      %p380 = pnand %p378, %p379
      %p381 = pneg %p380
      // Predicated region
      $region61: #{tpu_custom_call.1} parent=5 // pred_check
        _
      $region62: #{tpu_custom_call.1} parent=5 // pred_check_branch
        %383 = sbr.rel (%p380) target = $region64
      $region63: #{tpu_custom_call.1} parent=5 // pred_region
        %s384 = ssub.s32 %s24, 1
        %s385 = sand.u32 %s37, 1
        %s386 = scalar_lea.sflag [#allocation4], %s385
        %s387 = sand.u32 %s37, 1
        %s388 = smul.addr %s387, 256
        %s389 = scalar_lea.vmem [#allocation3], %s388
        // Predicated region
        $region65: #{tpu_custom_call.1} parent=63 // pred_check
          %p390 = pneg %p50
        $region66: #{tpu_custom_call.1} parent=63 // pred_check_branch
          %392 = sbr.rel (%p390) target = $region68
        $region67: #{tpu_custom_call.1} parent=63 // pred_region
          %394 = dma.done %s386, 4096
        $region68: #{tpu_custom_call.1} parent=63 // pred_fallthru
          _
        // Predicated region
        $region69: #{tpu_custom_call.1} parent=63 // pred_check
          %p395 = pneg %p155
        $region70: #{tpu_custom_call.1} parent=63 // pred_check_branch
          %397 = sbr.rel (%p395) target = $region72
        $region71: #{tpu_custom_call.1} parent=63 // pred_region
          %399 = dma.done [#allocation7], 512
        $region72: #{tpu_custom_call.1} parent=63 // pred_fallthru
          _
        // Predicated region
        $region73: #{tpu_custom_call.1} parent=63 // pred_check
          %p400 = pneg %p239
        $region74: #{tpu_custom_call.1} parent=63 // pred_check_branch
          %402 = sbr.rel (%p400) target = $region76
        $region75: #{tpu_custom_call.1} parent=63 // pred_region
          %404 = dma.done [#allocation7], 128
        $region76: #{tpu_custom_call.1} parent=63 // pred_fallthru
          _
        %s405 = sand.u32 %s37, 1
        %s406 = scalar_lea.sflag [#allocation4], %s405
        %s407 = sand.u32 %s37, 1
        %s408 = smul.addr %s407, 256
        %s409 = scalar_lea.vmem [#allocation3], %s408
        %p410 = pneg %p50
        %p411 = pneg %p47
        %p412 = pneg %p71
        %p413 = pneg %p68
        %p414 = pneg %p92
        %p415 = pneg %p89
        %p416 = pneg %p113
        %p417 = pneg %p110
        %p418 = pneg %p134
        %p419 = pneg %p131
        %p420 = pneg %p155
        %p421 = pneg %p152
        %p422 = pneg %p176
        %p423 = pneg %p173
        %p424 = pneg %p197
        %p425 = pneg %p194
        %p426 = pneg %p218
        %p427 = pneg %p215
        %p428 = pneg %p239
        %p429 = pneg %p236
        %p430 = pneg %p260
        %p431 = pneg %p257
        %p432 = pneg %p286
        %p433 = pneg %p283
        %s434 = sand.u32 %s273, 1
        %s435 = scalar_lea.sflag [#allocation5], %s434
        %s436 = sand.u32 %s273, 1
        %s437 = smul.addr %s436, 256
        %s438 = scalar_lea.vmem [#allocation9], %s437
        %s439 = smul.u32 4, %s29
        %s440 = smul.u32 4, %s29
        %v441 = vld [vmem:[%s389] sm:$0xff]
        %v442 = vld [vmem:[%s389 + $0x8] sm:$0xff]
        %v443 = vld [vmem:[%s389 + $0x10] sm:$0xff]
        %v444 = vld [vmem:[%s389 + $0x18] sm:$0xff]
        %v445 = vld [vmem:[%s389 + $0x20] sm:$0xff]
        %v446 = vld [vmem:[%s389 + $0x28] sm:$0xff]
        %v447 = vld [vmem:[%s389 + $0x30] sm:$0xff]
        %v448 = vld [vmem:[%s389 + $0x38] sm:$0xff]
        %v449 = vld [vmem:[%s389 + $0x40] sm:$0xff]
        %v450 = vld [vmem:[%s389 + $0x48] sm:$0xff]
        %v451 = vld [vmem:[%s389 + $0x50] sm:$0xff]
        %v452 = vld [vmem:[%s389 + $0x58] sm:$0xff]
        %v453 = vld [vmem:[%s389 + $0x60] sm:$0xff]
        %v454 = vld [vmem:[%s389 + $0x68] sm:$0xff]
        %v455 = vld [vmem:[%s389 + $0x70] sm:$0xff]
        %v456 = vld [vmem:[%s389 + $0x78] sm:$0xff]
        %v457 = vld [vmem:[%s389 + $0x80] sm:$0xff]
        %v458 = vld [vmem:[%s389 + $0x88] sm:$0xff]
        %v459 = vld [vmem:[%s389 + $0x90] sm:$0xff]
        %v460 = vld [vmem:[%s389 + $0x98] sm:$0xff]
        %v461 = vld [vmem:[%s389 + $0xa0] sm:$0xff]
        %v462 = vld [vmem:[%s389 + $0xa8] sm:$0xff]
        %v463 = vld [vmem:[%s389 + $0xb0] sm:$0xff]
        %v464 = vld [vmem:[%s389 + $0xb8] sm:$0xff]
        %v465 = vld [vmem:[%s389 + $0xc0] sm:$0xff]
        %v466 = vld [vmem:[%s389 + $0xc8] sm:$0xff]
        %v467 = vld [vmem:[%s389 + $0xd0] sm:$0xff]
        %v468 = vld [vmem:[%s389 + $0xd8] sm:$0xff]
        %v469 = vld [vmem:[%s389 + $0xe0] sm:$0xff]
        %v470 = vld [vmem:[%s389 + $0xe8] sm:$0xff]
        %v471 = vld [vmem:[%s389 + $0xf0] sm:$0xff]
        %v472 = vld [vmem:[%s389 + $0xf8] sm:$0xff]
        %v473 = vld [vmem:[%s1] sm:$0xff]
        %v474 = vld [vmem:[%s1 + $0x8] sm:$0xff]
        %v475 = vld [vmem:[%s1 + $0x10] sm:$0xff]
        %v476 = vld [vmem:[%s1 + $0x18] sm:$0xff]
        %v477 = vld [vmem:[%s1 + $0x20] sm:$0xff]
        %v478 = vld [vmem:[%s1 + $0x28] sm:$0xff]
        %v479 = vld [vmem:[%s1 + $0x30] sm:$0xff]
        %v480 = vld [vmem:[%s1 + $0x38] sm:$0xff]
        %v481 = vld [vmem:[%s1 + $0x40] sm:$0xff]
        %v482 = vld [vmem:[%s1 + $0x48] sm:$0xff]
        %v483 = vld [vmem:[%s1 + $0x50] sm:$0xff]
        %v484 = vld [vmem:[%s1 + $0x58] sm:$0xff]
        %v485 = vld [vmem:[%s1 + $0x60] sm:$0xff]
        %v486 = vld [vmem:[%s1 + $0x68] sm:$0xff]
        %v487 = vld [vmem:[%s1 + $0x70] sm:$0xff]
        %v488 = vld [vmem:[%s1 + $0x78] sm:$0xff]
        %v489 = vld [vmem:[%s2] sm:$0x1]
        %v491 = vperm.slane %v489, 0
        %493 = vmatpush.msra.mxu0 %v488
        %494 = vmatpush.msra.mxu0 %v487
        %495 = vmatpush.msra.mxu0 %v486
        %496 = vmatpush.msra.mxu0 %v485
        %497 = vmatpush.msra.mxu0 %v484
        %498 = vmatpush.msra.mxu0 %v483
        %499 = vmatpush.msra.mxu0 %v482
        %500 = vmatpush.msra.mxu0 %v481
        %501 = vmatpush.msra.mxu0 %v480
        %502 = vmatpush.msra.mxu0 %v479
        %503 = vmatpush.msra.mxu0 %v478
        %504 = vmatpush.msra.mxu0 %v477
        %505 = vmatpush.msra.mxu0 %v476
        %506 = vmatpush.msra.mxu0 %v475
        %507 = vmatpush.msra.mxu0 %v474
        %508 = vmatpush.msra.mxu0 %v473
        %509 = vmatmul.f32.gmra.mxu0 %v441
        %v510 = vpop.f32.mrf.mxu0
        %v511 = vadd.f32 %v491, %v510
        %512 = vmatmul.f32.gmra.mxu0 %v442
        %v513 = vpop.f32.mrf.mxu0
        %v514 = vadd.f32 %v491, %v513
        %515 = vmatmul.f32.gmra.mxu0 %v443
        %v516 = vpop.f32.mrf.mxu0
        %v517 = vadd.f32 %v491, %v516
        %518 = vmatmul.f32.gmra.mxu0 %v444
        %v519 = vpop.f32.mrf.mxu0
        %v520 = vadd.f32 %v491, %v519
        %521 = vmatmul.f32.gmra.mxu0 %v445
        %v522 = vpop.f32.mrf.mxu0
        %v523 = vadd.f32 %v491, %v522
        %524 = vmatmul.f32.gmra.mxu0 %v446
        %v525 = vpop.f32.mrf.mxu0
        %v526 = vadd.f32 %v491, %v525
        %527 = vmatmul.f32.gmra.mxu0 %v447
        %v528 = vpop.f32.mrf.mxu0
        %v529 = vadd.f32 %v491, %v528
        %530 = vmatmul.f32.gmra.mxu0 %v448
        %v531 = vpop.f32.mrf.mxu0
        %v532 = vadd.f32 %v491, %v531
        %533 = vmatmul.f32.gmra.mxu0 %v449
        %v534 = vpop.f32.mrf.mxu0
        %v535 = vadd.f32 %v491, %v534
        %536 = vmatmul.f32.gmra.mxu0 %v450
        %v537 = vpop.f32.mrf.mxu0
        %v538 = vadd.f32 %v491, %v537
        %539 = vmatmul.f32.gmra.mxu0 %v451
        %v540 = vpop.f32.mrf.mxu0
        %v541 = vadd.f32 %v491, %v540
        %542 = vmatmul.f32.gmra.mxu0 %v452
        %v543 = vpop.f32.mrf.mxu0
        %v544 = vadd.f32 %v491, %v543
        %545 = vmatmul.f32.gmra.mxu0 %v453
        %v546 = vpop.f32.mrf.mxu0
        %v547 = vadd.f32 %v491, %v546
        %548 = vmatmul.f32.gmra.mxu0 %v454
        %v549 = vpop.f32.mrf.mxu0
        %v550 = vadd.f32 %v491, %v549
        %551 = vmatmul.f32.gmra.mxu0 %v455
        %v552 = vpop.f32.mrf.mxu0
        %v553 = vadd.f32 %v491, %v552
        %554 = vmatmul.f32.gmra.mxu0 %v456
        %v555 = vpop.f32.mrf.mxu0
        %v556 = vadd.f32 %v491, %v555
        %557 = vmatmul.f32.gmra.mxu0 %v457
        %v558 = vpop.f32.mrf.mxu0
        %v559 = vadd.f32 %v491, %v558
        %560 = vmatmul.f32.gmra.mxu0 %v458
        %v561 = vpop.f32.mrf.mxu0
        %v562 = vadd.f32 %v491, %v561
        %563 = vmatmul.f32.gmra.mxu0 %v459
        %v564 = vpop.f32.mrf.mxu0
        %v565 = vadd.f32 %v491, %v564
        %566 = vmatmul.f32.gmra.mxu0 %v460
        %v567 = vpop.f32.mrf.mxu0
        %v568 = vadd.f32 %v491, %v567
        %569 = vmatmul.f32.gmra.mxu0 %v461
        %v570 = vpop.f32.mrf.mxu0
        %v571 = vadd.f32 %v491, %v570
        %572 = vmatmul.f32.gmra.mxu0 %v462
        %v573 = vpop.f32.mrf.mxu0
        %v574 = vadd.f32 %v491, %v573
        %575 = vmatmul.f32.gmra.mxu0 %v463
        %v576 = vpop.f32.mrf.mxu0
        %v577 = vadd.f32 %v491, %v576
        %578 = vmatmul.f32.gmra.mxu0 %v464
        %v579 = vpop.f32.mrf.mxu0
        %v580 = vadd.f32 %v491, %v579
        %581 = vmatmul.f32.gmra.mxu0 %v465
        %v582 = vpop.f32.mrf.mxu0
        %v583 = vadd.f32 %v491, %v582
        %584 = vmatmul.f32.gmra.mxu0 %v466
        %v585 = vpop.f32.mrf.mxu0
        %v586 = vadd.f32 %v491, %v585
        %587 = vmatmul.f32.gmra.mxu0 %v467
        %v588 = vpop.f32.mrf.mxu0
        %v589 = vadd.f32 %v491, %v588
        %590 = vmatmul.f32.gmra.mxu0 %v468
        %v591 = vpop.f32.mrf.mxu0
        %v592 = vadd.f32 %v491, %v591
        %593 = vmatmul.f32.gmra.mxu0 %v469
        %v594 = vpop.f32.mrf.mxu0
        %v595 = vadd.f32 %v491, %v594
        %596 = vmatmul.f32.gmra.mxu0 %v470
        %v597 = vpop.f32.mrf.mxu0
        %v598 = vadd.f32 %v491, %v597
        %599 = vmatmul.f32.gmra.mxu0 %v471
        %v600 = vpop.f32.mrf.mxu0
        %v601 = vadd.f32 %v491, %v600
        %602 = vmatmul.f32.gmra.mxu0 %v472
        %v603 = vpop.f32.mrf.mxu0
        %v604 = vadd.f32 %v491, %v603
        %605 = vdwg.mxu0
        %v606 = vmax.f32 %v511, 0.0
        %v607 = vmax.f32 %v514, 0.0
        %v608 = vmax.f32 %v517, 0.0
        %v609 = vmax.f32 %v520, 0.0
        %v610 = vmax.f32 %v523, 0.0
        %v611 = vmax.f32 %v526, 0.0
        %v612 = vmax.f32 %v529, 0.0
        %v613 = vmax.f32 %v532, 0.0
        %v614 = vmax.f32 %v535, 0.0
        %v615 = vmax.f32 %v538, 0.0
        %v616 = vmax.f32 %v541, 0.0
        %v617 = vmax.f32 %v544, 0.0
        %v618 = vmax.f32 %v547, 0.0
        %v619 = vmax.f32 %v550, 0.0
        %v620 = vmax.f32 %v553, 0.0
        %v621 = vmax.f32 %v556, 0.0
        %v622 = vmax.f32 %v559, 0.0
        %v623 = vmax.f32 %v562, 0.0
        %v624 = vmax.f32 %v565, 0.0
        %v625 = vmax.f32 %v568, 0.0
        %v626 = vmax.f32 %v571, 0.0
        %v627 = vmax.f32 %v574, 0.0
        %v628 = vmax.f32 %v577, 0.0
        %v629 = vmax.f32 %v580, 0.0
        %v630 = vmax.f32 %v583, 0.0
        %v631 = vmax.f32 %v586, 0.0
        %v632 = vmax.f32 %v589, 0.0
        %v633 = vmax.f32 %v592, 0.0
        %v634 = vmax.f32 %v595, 0.0
        %v635 = vmax.f32 %v598, 0.0
        %v636 = vmax.f32 %v601, 0.0
        %v637 = vmax.f32 %v604, 0.0
        %vm638 = vcmask 261120
        %639 = vst.msk [vmem:[#allocation2] sm:$0xff] %vm638, 0.0
        %vm640 = vcmask 254976
        %641 = vst.msk [vmem:[#allocation2 + $0x8] sm:$0x3] %vm640, 0.0
        %642 = vst.msk [vmem:[#allocation2 + $0xa0] sm:$0xff] %vm638, 0.0
        %643 = vst.msk [vmem:[#allocation2 + $0xa8] sm:$0x3] %vm640, 0.0
        %644 = vst.msk [vmem:[#allocation2 + $0x140] sm:$0xff] %vm638, 0.0
        %645 = vst.msk [vmem:[#allocation2 + $0x148] sm:$0x3] %vm640, 0.0
        %646 = vst.msk [vmem:[#allocation2 + $0x1e0] sm:$0xff] %vm638, 0.0
        %647 = vst.msk [vmem:[#allocation2 + $0x1e8] sm:$0x3] %vm640, 0.0
        %s648 = scalar_lea.vmem [#allocation2], 144
        %649 = vst.msk [vmem:[%s648] sm:$0xff] %vm638, 0.0
        %650 = vst.msk [vmem:[%s648 + $0x8] sm:$0x3] %vm640, 0.0
        %651 = vst.msk [vmem:[%s648 + $0xa0] sm:$0xff] %vm638, 0.0
        %652 = vst.msk [vmem:[%s648 + $0xa8] sm:$0x3] %vm640, 0.0
        %653 = vst.msk [vmem:[%s648 + $0x140] sm:$0xff] %vm638, 0.0
        %654 = vst.msk [vmem:[%s648 + $0x148] sm:$0x3] %vm640, 0.0
        %655 = vst.msk [vmem:[%s648 + $0x1e0] sm:$0xff] %vm638, 0.0
        %656 = vst.msk [vmem:[%s648 + $0x1e8] sm:$0x3] %vm640, 0.0
        %s657 = scalar_lea.vmem [#allocation2], 16
        %vm658 = vcmask 253952
        %659 = vst.msk [vmem:[%s657] sm:$0x1] %vm658, 0.0
        %660 = vst.msk [vmem:[%s657 + $0x10] sm:$0x1] %vm658, 0.0
        %661 = vst.msk [vmem:[%s657 + $0x20] sm:$0x1] %vm658, 0.0
        %662 = vst.msk [vmem:[%s657 + $0x30] sm:$0x1] %vm658, 0.0
        %663 = vst.msk [vmem:[%s657 + $0x40] sm:$0x1] %vm658, 0.0
        %664 = vst.msk [vmem:[%s657 + $0x50] sm:$0x1] %vm658, 0.0
        %665 = vst.msk [vmem:[%s657 + $0x60] sm:$0x1] %vm658, 0.0
        %666 = vst.msk [vmem:[%s657 + $0x70] sm:$0x1] %vm658, 0.0
        %667 = vst.msk [vmem:[%s657 + $0xa0] sm:$0x1] %vm658, 0.0
        %668 = vst.msk [vmem:[%s657 + $0xb0] sm:$0x1] %vm658, 0.0
        %669 = vst.msk [vmem:[%s657 + $0xc0] sm:$0x1] %vm658, 0.0
        %670 = vst.msk [vmem:[%s657 + $0xd0] sm:$0x1] %vm658, 0.0
        %671 = vst.msk [vmem:[%s657 + $0xe0] sm:$0x1] %vm658, 0.0
        %672 = vst.msk [vmem:[%s657 + $0xf0] sm:$0x1] %vm658, 0.0
        %673 = vst.msk [vmem:[%s657 + $0x100] sm:$0x1] %vm658, 0.0
        %674 = vst.msk [vmem:[%s657 + $0x110] sm:$0x1] %vm658, 0.0
        %675 = vst.msk [vmem:[%s657 + $0x140] sm:$0x1] %vm658, 0.0
        %676 = vst.msk [vmem:[%s657 + $0x150] sm:$0x1] %vm658, 0.0
        %677 = vst.msk [vmem:[%s657 + $0x160] sm:$0x1] %vm658, 0.0
        %678 = vst.msk [vmem:[%s657 + $0x170] sm:$0x1] %vm658, 0.0
        %679 = vst.msk [vmem:[%s657 + $0x180] sm:$0x1] %vm658, 0.0
        %680 = vst.msk [vmem:[%s657 + $0x190] sm:$0x1] %vm658, 0.0
        %681 = vst.msk [vmem:[%s657 + $0x1a0] sm:$0x1] %vm658, 0.0
        %682 = vst.msk [vmem:[%s657 + $0x1b0] sm:$0x1] %vm658, 0.0
        %683 = vst.msk [vmem:[%s657 + $0x1e0] sm:$0x1] %vm658, 0.0
        %684 = vst.msk [vmem:[%s657 + $0x1f0] sm:$0x1] %vm658, 0.0
        %685 = vst.msk [vmem:[%s657 + $0x200] sm:$0x1] %vm658, 0.0
        %686 = vst.msk [vmem:[%s657 + $0x210] sm:$0x1] %vm658, 0.0
        %687 = vst.msk [vmem:[%s657 + $0x220] sm:$0x1] %vm658, 0.0
        %688 = vst.msk [vmem:[%s657 + $0x230] sm:$0x1] %vm658, 0.0
        %689 = vst.msk [vmem:[%s657 + $0x240] sm:$0x1] %vm658, 0.0
        %690 = vst.msk [vmem:[%s657 + $0x250] sm:$0x1] %vm658, 0.0
        %691 = vst.msk [vmem:[%s657 + $0x9] sm:$0x1] %vm658, 0.0
        %692 = vst.msk [vmem:[%s657 + $0x19] sm:$0x1] %vm658, 0.0
        %693 = vst.msk [vmem:[%s657 + $0x29] sm:$0x1] %vm658, 0.0
        %694 = vst.msk [vmem:[%s657 + $0x39] sm:$0x1] %vm658, 0.0
        %695 = vst.msk [vmem:[%s657 + $0x49] sm:$0x1] %vm658, 0.0
        %696 = vst.msk [vmem:[%s657 + $0x59] sm:$0x1] %vm658, 0.0
        %697 = vst.msk [vmem:[%s657 + $0x69] sm:$0x1] %vm658, 0.0
        %698 = vst.msk [vmem:[%s657 + $0x79] sm:$0x1] %vm658, 0.0
        %699 = vst.msk [vmem:[%s657 + $0xa9] sm:$0x1] %vm658, 0.0
        %700 = vst.msk [vmem:[%s657 + $0xb9] sm:$0x1] %vm658, 0.0
        %701 = vst.msk [vmem:[%s657 + $0xc9] sm:$0x1] %vm658, 0.0
        %702 = vst.msk [vmem:[%s657 + $0xd9] sm:$0x1] %vm658, 0.0
        %703 = vst.msk [vmem:[%s657 + $0xe9] sm:$0x1] %vm658, 0.0
        %704 = vst.msk [vmem:[%s657 + $0xf9] sm:$0x1] %vm658, 0.0
        %705 = vst.msk [vmem:[%s657 + $0x109] sm:$0x1] %vm658, 0.0
        %706 = vst.msk [vmem:[%s657 + $0x119] sm:$0x1] %vm658, 0.0
        %707 = vst.msk [vmem:[%s657 + $0x149] sm:$0x1] %vm658, 0.0
        %708 = vst.msk [vmem:[%s657 + $0x159] sm:$0x1] %vm658, 0.0
        %709 = vst.msk [vmem:[%s657 + $0x169] sm:$0x1] %vm658, 0.0
        %710 = vst.msk [vmem:[%s657 + $0x179] sm:$0x1] %vm658, 0.0
        %711 = vst.msk [vmem:[%s657 + $0x189] sm:$0x1] %vm658, 0.0
        %712 = vst.msk [vmem:[%s657 + $0x199] sm:$0x1] %vm658, 0.0
        %713 = vst.msk [vmem:[%s657 + $0x1a9] sm:$0x1] %vm658, 0.0
        %714 = vst.msk [vmem:[%s657 + $0x1b9] sm:$0x1] %vm658, 0.0
        %715 = vst.msk [vmem:[%s657 + $0x1e9] sm:$0x1] %vm658, 0.0
        %716 = vst.msk [vmem:[%s657 + $0x1f9] sm:$0x1] %vm658, 0.0
        %717 = vst.msk [vmem:[%s657 + $0x209] sm:$0x1] %vm658, 0.0
        %718 = vst.msk [vmem:[%s657 + $0x219] sm:$0x1] %vm658, 0.0
        %719 = vst.msk [vmem:[%s657 + $0x229] sm:$0x1] %vm658, 0.0
        %720 = vst.msk [vmem:[%s657 + $0x239] sm:$0x1] %vm658, 0.0
        %721 = vst.msk [vmem:[%s657 + $0x249] sm:$0x1] %vm658, 0.0
        %722 = vst.msk [vmem:[%s657 + $0x259] sm:$0x1] %vm658, 0.0
        %723 = vst.msk [vmem:[%s657 + $0x1] sm:$0xff] %vm638, %v606
        %724 = vst.msk [vmem:[%s657 + $0x11] sm:$0xff] %vm638, %v607
        %725 = vst.msk [vmem:[%s657 + $0x21] sm:$0xff] %vm638, %v608
        %726 = vst.msk [vmem:[%s657 + $0x31] sm:$0xff] %vm638, %v609
        %727 = vst.msk [vmem:[%s657 + $0x41] sm:$0xff] %vm638, %v610
        %728 = vst.msk [vmem:[%s657 + $0x51] sm:$0xff] %vm638, %v611
        %729 = vst.msk [vmem:[%s657 + $0x61] sm:$0xff] %vm638, %v612
        %730 = vst.msk [vmem:[%s657 + $0x71] sm:$0xff] %vm638, %v613
        %731 = vst.msk [vmem:[%s657 + $0xa1] sm:$0xff] %vm638, %v614
        %732 = vst.msk [vmem:[%s657 + $0xb1] sm:$0xff] %vm638, %v615
        %733 = vst.msk [vmem:[%s657 + $0xc1] sm:$0xff] %vm638, %v616
        %734 = vst.msk [vmem:[%s657 + $0xd1] sm:$0xff] %vm638, %v617
        %735 = vst.msk [vmem:[%s657 + $0xe1] sm:$0xff] %vm638, %v618
        %736 = vst.msk [vmem:[%s657 + $0xf1] sm:$0xff] %vm638, %v619
        %737 = vst.msk [vmem:[%s657 + $0x101] sm:$0xff] %vm638, %v620
        %738 = vst.msk [vmem:[%s657 + $0x111] sm:$0xff] %vm638, %v621
        %739 = vst.msk [vmem:[%s657 + $0x141] sm:$0xff] %vm638, %v622
        %740 = vst.msk [vmem:[%s657 + $0x151] sm:$0xff] %vm638, %v623
        %741 = vst.msk [vmem:[%s657 + $0x161] sm:$0xff] %vm638, %v624
        %742 = vst.msk [vmem:[%s657 + $0x171] sm:$0xff] %vm638, %v625
        %743 = vst.msk [vmem:[%s657 + $0x181] sm:$0xff] %vm638, %v626
        %744 = vst.msk [vmem:[%s657 + $0x191] sm:$0xff] %vm638, %v627
        %745 = vst.msk [vmem:[%s657 + $0x1a1] sm:$0xff] %vm638, %v628
        %746 = vst.msk [vmem:[%s657 + $0x1b1] sm:$0xff] %vm638, %v629
        %747 = vst.msk [vmem:[%s657 + $0x1e1] sm:$0xff] %vm638, %v630
        %748 = vst.msk [vmem:[%s657 + $0x1f1] sm:$0xff] %vm638, %v631
        %749 = vst.msk [vmem:[%s657 + $0x201] sm:$0xff] %vm638, %v632
        %750 = vst.msk [vmem:[%s657 + $0x211] sm:$0xff] %vm638, %v633
        %751 = vst.msk [vmem:[%s657 + $0x221] sm:$0xff] %vm638, %v634
        %752 = vst.msk [vmem:[%s657 + $0x231] sm:$0xff] %vm638, %v635
        %753 = vst.msk [vmem:[%s657 + $0x241] sm:$0xff] %vm638, %v636
        %754 = vst.msk [vmem:[%s657 + $0x251] sm:$0xff] %vm638, %v637
        %v755 = vld [vmem:[#allocation2] sm:$0xff]
        %v756 = vld [vmem:[#allocation2 + $0x10] sm:$0xff]
        %v757 = vld [vmem:[#allocation2 + $0x20] sm:$0xff]
        %v758 = vld [vmem:[#allocation2 + $0x30] sm:$0xff]
        %v759 = vld [vmem:[#allocation2 + $0x40] sm:$0xff]
        %v760 = vld [vmem:[#allocation2 + $0x50] sm:$0xff]
        %v761 = vld [vmem:[#allocation2 + $0x60] sm:$0xff]
        %v762 = vld [vmem:[#allocation2 + $0x70] sm:$0xff]
        %v763 = vld [vmem:[#allocation2 + $0xa0] sm:$0xff]
        %v764 = vld [vmem:[#allocation2 + $0xb0] sm:$0xff]
        %v765 = vld [vmem:[#allocation2 + $0xc0] sm:$0xff]
        %v766 = vld [vmem:[#allocation2 + $0xd0] sm:$0xff]
        %v767 = vld [vmem:[#allocation2 + $0xe0] sm:$0xff]
        %v768 = vld [vmem:[#allocation2 + $0xf0] sm:$0xff]
        %v769 = vld [vmem:[#allocation2 + $0x100] sm:$0xff]
        %v770 = vld [vmem:[#allocation2 + $0x110] sm:$0xff]
        %v771 = vld [vmem:[#allocation2 + $0x140] sm:$0xff]
        %v772 = vld [vmem:[#allocation2 + $0x150] sm:$0xff]
        %v773 = vld [vmem:[#allocation2 + $0x160] sm:$0xff]
        %v774 = vld [vmem:[#allocation2 + $0x170] sm:$0xff]
        %v775 = vld [vmem:[#allocation2 + $0x180] sm:$0xff]
        %v776 = vld [vmem:[#allocation2 + $0x190] sm:$0xff]
        %v777 = vld [vmem:[#allocation2 + $0x1a0] sm:$0xff]
        %v778 = vld [vmem:[#allocation2 + $0x1b0] sm:$0xff]
        %v779 = vld [vmem:[#allocation2 + $0x1e0] sm:$0xff]
        %v780 = vld [vmem:[#allocation2 + $0x1f0] sm:$0xff]
        %v781 = vld [vmem:[#allocation2 + $0x200] sm:$0xff]
        %v782 = vld [vmem:[#allocation2 + $0x210] sm:$0xff]
        %v783 = vld [vmem:[#allocation2 + $0x220] sm:$0xff]
        %v784 = vld [vmem:[#allocation2 + $0x230] sm:$0xff]
        %v785 = vld [vmem:[#allocation2 + $0x240] sm:$0xff]
        %v786 = vld [vmem:[#allocation2 + $0x250] sm:$0xff]
        %v787 = vld [vmem:[%s3] sm:$0xff]
        %v788 = vld [vmem:[%s3 + $0x8] sm:$0xff]
        %v789 = vld [vmem:[%s3 + $0x10] sm:$0xff]
        %v790 = vld [vmem:[%s3 + $0x18] sm:$0xff]
        %v791 = vld [vmem:[#allocation2 + $0x1] sm:$0xff]
        %v792 = vld [vmem:[#allocation2 + $0x11] sm:$0xff]
        %v793 = vld [vmem:[#allocation2 + $0x21] sm:$0xff]
        %v794 = vld [vmem:[#allocation2 + $0x31] sm:$0xff]
        %v795 = vld [vmem:[#allocation2 + $0x41] sm:$0xff]
        %v796 = vld [vmem:[#allocation2 + $0x51] sm:$0xff]
        %v797 = vld [vmem:[#allocation2 + $0x61] sm:$0xff]
        %v798 = vld [vmem:[#allocation2 + $0x71] sm:$0xff]
        %v799 = vld [vmem:[#allocation2 + $0xa1] sm:$0xff]
        %v800 = vld [vmem:[#allocation2 + $0xb1] sm:$0xff]
        %v801 = vld [vmem:[#allocation2 + $0xc1] sm:$0xff]
        %v802 = vld [vmem:[#allocation2 + $0xd1] sm:$0xff]
        %v803 = vld [vmem:[#allocation2 + $0xe1] sm:$0xff]
        %v804 = vld [vmem:[#allocation2 + $0xf1] sm:$0xff]
        %v805 = vld [vmem:[#allocation2 + $0x101] sm:$0xff]
        %v806 = vld [vmem:[#allocation2 + $0x111] sm:$0xff]
        %v807 = vld [vmem:[#allocation2 + $0x141] sm:$0xff]
        %v808 = vld [vmem:[#allocation2 + $0x151] sm:$0xff]
        %v809 = vld [vmem:[#allocation2 + $0x161] sm:$0xff]
        %v810 = vld [vmem:[#allocation2 + $0x171] sm:$0xff]
        %v811 = vld [vmem:[#allocation2 + $0x181] sm:$0xff]
        %v812 = vld [vmem:[#allocation2 + $0x191] sm:$0xff]
        %v813 = vld [vmem:[#allocation2 + $0x1a1] sm:$0xff]
        %v814 = vld [vmem:[#allocation2 + $0x1b1] sm:$0xff]
        %v815 = vld [vmem:[#allocation2 + $0x1e1] sm:$0xff]
        %v816 = vld [vmem:[#allocation2 + $0x1f1] sm:$0xff]
        %v817 = vld [vmem:[#allocation2 + $0x201] sm:$0xff]
        %v818 = vld [vmem:[#allocation2 + $0x211] sm:$0xff]
        %v819 = vld [vmem:[#allocation2 + $0x221] sm:$0xff]
        %v820 = vld [vmem:[#allocation2 + $0x231] sm:$0xff]
        %v821 = vld [vmem:[#allocation2 + $0x241] sm:$0xff]
        %v822 = vld [vmem:[#allocation2 + $0x251] sm:$0xff]
        %s823 = scalar_lea.vmem %s3, 32
        %v824 = vld [vmem:[%s823] sm:$0xff]
        %v825 = vld [vmem:[%s823 + $0x8] sm:$0xff]
        %v826 = vld [vmem:[%s823 + $0x10] sm:$0xff]
        %v827 = vld [vmem:[%s823 + $0x18] sm:$0xff]
        %v829 = vsel %vm638, %v791, 0
        %v832 = vsel %vm638, %v792, 0
        %v835 = vsel %vm638, %v793, 0
        %v838 = vsel %vm638, %v794, 0
        %v841 = vsel %vm638, %v795, 0
        %v844 = vsel %vm638, %v796, 0
        %v847 = vsel %vm638, %v797, 0
        %v850 = vsel %vm638, %v798, 0
        %v853 = vsel %vm638, %v799, 0
        %v856 = vsel %vm638, %v800, 0
        %v859 = vsel %vm638, %v801, 0
        %v862 = vsel %vm638, %v802, 0
        %v865 = vsel %vm638, %v803, 0
        %v868 = vsel %vm638, %v804, 0
        %v871 = vsel %vm638, %v805, 0
        %v874 = vsel %vm638, %v806, 0
        %v877 = vsel %vm638, %v807, 0
        %v880 = vsel %vm638, %v808, 0
        %v883 = vsel %vm638, %v809, 0
        %v886 = vsel %vm638, %v810, 0
        %v889 = vsel %vm638, %v811, 0
        %v892 = vsel %vm638, %v812, 0
        %v895 = vsel %vm638, %v813, 0
        %v898 = vsel %vm638, %v814, 0
        %v901 = vsel %vm638, %v815, 0
        %v904 = vsel %vm638, %v816, 0
        %v907 = vsel %vm638, %v817, 0
        %v910 = vsel %vm638, %v818, 0
        %v913 = vsel %vm638, %v819, 0
        %v916 = vsel %vm638, %v820, 0
        %v919 = vsel %vm638, %v821, 0
        %v922 = vsel %vm638, %v822, 0
        %924 = vmatpush.msra.mxu0 0.0
        %925 = vmatpush.msra.mxu0 0.0
        %926 = vmatpush.msra.mxu0 0.0
        %927 = vmatpush.msra.mxu0 0.0
        %928 = vmatpush.msra.mxu0 0.0
        %929 = vmatpush.msra.mxu0 0.0
        %930 = vmatpush.msra.mxu0 0.0
        %931 = vmatpush.msra.mxu0 0.0
        %932 = vmatpush.msra.mxu0 0.0
        %933 = vmatpush.msra.mxu0 0.0
        %934 = vmatpush.msra.mxu0 0.0
        %935 = vmatpush.msra.mxu0 0.0
        %936 = vmatpush.msra.mxu0 %v827
        %937 = vmatpush.msra.mxu0 %v826
        %938 = vmatpush.msra.mxu0 %v825
        %939 = vmatpush.msra.mxu0 %v824
        %940 = vmatmul.f32.gmra.mxu0 %v829
        %v941 = vpop.f32.mrf.mxu0
        %v942 = vadd.f32 0.0, %v941
        %943 = vmatmul.f32.gmra.mxu0 %v832
        %v944 = vpop.f32.mrf.mxu0
        %v945 = vadd.f32 0.0, %v944
        %946 = vmatmul.f32.gmra.mxu0 %v835
        %v947 = vpop.f32.mrf.mxu0
        %v948 = vadd.f32 0.0, %v947
        %949 = vmatmul.f32.gmra.mxu0 %v838
        %v950 = vpop.f32.mrf.mxu0
        %v951 = vadd.f32 0.0, %v950
        %952 = vmatmul.f32.gmra.mxu0 %v841
        %v953 = vpop.f32.mrf.mxu0
        %v954 = vadd.f32 0.0, %v953
        %955 = vmatmul.f32.gmra.mxu0 %v844
        %v956 = vpop.f32.mrf.mxu0
        %v957 = vadd.f32 0.0, %v956
        %958 = vmatmul.f32.gmra.mxu0 %v847
        %v959 = vpop.f32.mrf.mxu0
        %v960 = vadd.f32 0.0, %v959
        %961 = vmatmul.f32.gmra.mxu0 %v850
        %v962 = vpop.f32.mrf.mxu0
        %v963 = vadd.f32 0.0, %v962
        %964 = vmatmul.f32.gmra.mxu0 %v853
        %v965 = vpop.f32.mrf.mxu0
        %v966 = vadd.f32 0.0, %v965
        %967 = vmatmul.f32.gmra.mxu0 %v856
        %v968 = vpop.f32.mrf.mxu0
        %v969 = vadd.f32 0.0, %v968
        %970 = vmatmul.f32.gmra.mxu0 %v859
        %v971 = vpop.f32.mrf.mxu0
        %v972 = vadd.f32 0.0, %v971
        %973 = vmatmul.f32.gmra.mxu0 %v862
        %v974 = vpop.f32.mrf.mxu0
        %v975 = vadd.f32 0.0, %v974
        %976 = vmatmul.f32.gmra.mxu0 %v865
        %v977 = vpop.f32.mrf.mxu0
        %v978 = vadd.f32 0.0, %v977
        %979 = vmatmul.f32.gmra.mxu0 %v868
        %v980 = vpop.f32.mrf.mxu0
        %v981 = vadd.f32 0.0, %v980
        %982 = vmatmul.f32.gmra.mxu0 %v871
        %v983 = vpop.f32.mrf.mxu0
        %v984 = vadd.f32 0.0, %v983
        %985 = vmatmul.f32.gmra.mxu0 %v874
        %v986 = vpop.f32.mrf.mxu0
        %v987 = vadd.f32 0.0, %v986
        %988 = vmatmul.f32.gmra.mxu0 %v877
        %v989 = vpop.f32.mrf.mxu0
        %v990 = vadd.f32 0.0, %v989
        %991 = vmatmul.f32.gmra.mxu0 %v880
        %v992 = vpop.f32.mrf.mxu0
        %v993 = vadd.f32 0.0, %v992
        %994 = vmatmul.f32.gmra.mxu0 %v883
        %v995 = vpop.f32.mrf.mxu0
        %v996 = vadd.f32 0.0, %v995
        %997 = vmatmul.f32.gmra.mxu0 %v886
        %v998 = vpop.f32.mrf.mxu0
        %v999 = vadd.f32 0.0, %v998
        %1000 = vmatmul.f32.gmra.mxu0 %v889
        %v1001 = vpop.f32.mrf.mxu0
        %v1002 = vadd.f32 0.0, %v1001
        %1003 = vmatmul.f32.gmra.mxu0 %v892
        %v1004 = vpop.f32.mrf.mxu0
        %v1005 = vadd.f32 0.0, %v1004
        %1006 = vmatmul.f32.gmra.mxu0 %v895
        %v1007 = vpop.f32.mrf.mxu0
        %v1008 = vadd.f32 0.0, %v1007
        %1009 = vmatmul.f32.gmra.mxu0 %v898
        %v1010 = vpop.f32.mrf.mxu0
        %v1011 = vadd.f32 0.0, %v1010
        %1012 = vmatmul.f32.gmra.mxu0 %v901
        %v1013 = vpop.f32.mrf.mxu0
        %v1014 = vadd.f32 0.0, %v1013
        %1015 = vmatmul.f32.gmra.mxu0 %v904
        %v1016 = vpop.f32.mrf.mxu0
        %v1017 = vadd.f32 0.0, %v1016
        %1018 = vmatmul.f32.gmra.mxu0 %v907
        %v1019 = vpop.f32.mrf.mxu0
        %v1020 = vadd.f32 0.0, %v1019
        %1021 = vmatmul.f32.gmra.mxu0 %v910
        %v1022 = vpop.f32.mrf.mxu0
        %v1023 = vadd.f32 0.0, %v1022
        %1024 = vmatmul.f32.gmra.mxu0 %v913
        %v1025 = vpop.f32.mrf.mxu0
        %v1026 = vadd.f32 0.0, %v1025
        %1027 = vmatmul.f32.gmra.mxu0 %v916
        %v1028 = vpop.f32.mrf.mxu0
        %v1029 = vadd.f32 0.0, %v1028
        %1030 = vmatmul.f32.gmra.mxu0 %v919
        %v1031 = vpop.f32.mrf.mxu0
        %v1032 = vadd.f32 0.0, %v1031
        %1033 = vmatmul.f32.gmra.mxu0 %v922
        %v1034 = vpop.f32.mrf.mxu0
        %v1035 = vadd.f32 0.0, %v1034
        %1036 = vdwg.mxu0
        %v1038 = vsel %vm638, %v755, 0
        %v1041 = vsel %vm638, %v756, 0
        %v1044 = vsel %vm638, %v757, 0
        %v1047 = vsel %vm638, %v758, 0
        %v1050 = vsel %vm638, %v759, 0
        %v1053 = vsel %vm638, %v760, 0
        %v1056 = vsel %vm638, %v761, 0
        %v1059 = vsel %vm638, %v762, 0
        %v1062 = vsel %vm638, %v763, 0
        %v1065 = vsel %vm638, %v764, 0
        %v1068 = vsel %vm638, %v765, 0
        %v1071 = vsel %vm638, %v766, 0
        %v1074 = vsel %vm638, %v767, 0
        %v1077 = vsel %vm638, %v768, 0
        %v1080 = vsel %vm638, %v769, 0
        %v1083 = vsel %vm638, %v770, 0
        %v1086 = vsel %vm638, %v771, 0
        %v1089 = vsel %vm638, %v772, 0
        %v1092 = vsel %vm638, %v773, 0
        %v1095 = vsel %vm638, %v774, 0
        %v1098 = vsel %vm638, %v775, 0
        %v1101 = vsel %vm638, %v776, 0
        %v1104 = vsel %vm638, %v777, 0
        %v1107 = vsel %vm638, %v778, 0
        %v1110 = vsel %vm638, %v779, 0
        %v1113 = vsel %vm638, %v780, 0
        %v1116 = vsel %vm638, %v781, 0
        %v1119 = vsel %vm638, %v782, 0
        %v1122 = vsel %vm638, %v783, 0
        %v1125 = vsel %vm638, %v784, 0
        %v1128 = vsel %vm638, %v785, 0
        %v1131 = vsel %vm638, %v786, 0
        %1133 = vmatpush.msra.mxu0 0.0
        %1134 = vmatpush.msra.mxu0 0.0
        %1135 = vmatpush.msra.mxu0 0.0
        %1136 = vmatpush.msra.mxu0 0.0
        %1137 = vmatpush.msra.mxu0 0.0
        %1138 = vmatpush.msra.mxu0 0.0
        %1139 = vmatpush.msra.mxu0 0.0
        %1140 = vmatpush.msra.mxu0 0.0
        %1141 = vmatpush.msra.mxu0 0.0
        %1142 = vmatpush.msra.mxu0 0.0
        %1143 = vmatpush.msra.mxu0 0.0
        %1144 = vmatpush.msra.mxu0 0.0
        %1145 = vmatpush.msra.mxu0 %v790
        %1146 = vmatpush.msra.mxu0 %v789
        %1147 = vmatpush.msra.mxu0 %v788
        %1148 = vmatpush.msra.mxu0 %v787
        %1149 = vmatmul.f32.gmra.mxu0 %v1038
        %v1150 = vpop.f32.mrf.mxu0
        %v1151 = vadd.f32 %v942, %v1150
        %1152 = vmatmul.f32.gmra.mxu0 %v1041
        %v1153 = vpop.f32.mrf.mxu0
        %v1154 = vadd.f32 %v945, %v1153
        %1155 = vmatmul.f32.gmra.mxu0 %v1044
        %v1156 = vpop.f32.mrf.mxu0
        %v1157 = vadd.f32 %v948, %v1156
        %1158 = vmatmul.f32.gmra.mxu0 %v1047
        %v1159 = vpop.f32.mrf.mxu0
        %v1160 = vadd.f32 %v951, %v1159
        %1161 = vmatmul.f32.gmra.mxu0 %v1050
        %v1162 = vpop.f32.mrf.mxu0
        %v1163 = vadd.f32 %v954, %v1162
        %1164 = vmatmul.f32.gmra.mxu0 %v1053
        %v1165 = vpop.f32.mrf.mxu0
        %v1166 = vadd.f32 %v957, %v1165
        %1167 = vmatmul.f32.gmra.mxu0 %v1056
        %v1168 = vpop.f32.mrf.mxu0
        %v1169 = vadd.f32 %v960, %v1168
        %1170 = vmatmul.f32.gmra.mxu0 %v1059
        %v1171 = vpop.f32.mrf.mxu0
        %v1172 = vadd.f32 %v963, %v1171
        %1173 = vmatmul.f32.gmra.mxu0 %v1062
        %v1174 = vpop.f32.mrf.mxu0
        %v1175 = vadd.f32 %v966, %v1174
        %1176 = vmatmul.f32.gmra.mxu0 %v1065
        %v1177 = vpop.f32.mrf.mxu0
        %v1178 = vadd.f32 %v969, %v1177
        %1179 = vmatmul.f32.gmra.mxu0 %v1068
        %v1180 = vpop.f32.mrf.mxu0
        %v1181 = vadd.f32 %v972, %v1180
        %1182 = vmatmul.f32.gmra.mxu0 %v1071
        %v1183 = vpop.f32.mrf.mxu0
        %v1184 = vadd.f32 %v975, %v1183
        %1185 = vmatmul.f32.gmra.mxu0 %v1074
        %v1186 = vpop.f32.mrf.mxu0
        %v1187 = vadd.f32 %v978, %v1186
        %1188 = vmatmul.f32.gmra.mxu0 %v1077
        %v1189 = vpop.f32.mrf.mxu0
        %v1190 = vadd.f32 %v981, %v1189
        %1191 = vmatmul.f32.gmra.mxu0 %v1080
        %v1192 = vpop.f32.mrf.mxu0
        %v1193 = vadd.f32 %v984, %v1192
        %1194 = vmatmul.f32.gmra.mxu0 %v1083
        %v1195 = vpop.f32.mrf.mxu0
        %v1196 = vadd.f32 %v987, %v1195
        %1197 = vmatmul.f32.gmra.mxu0 %v1086
        %v1198 = vpop.f32.mrf.mxu0
        %v1199 = vadd.f32 %v990, %v1198
        %1200 = vmatmul.f32.gmra.mxu0 %v1089
        %v1201 = vpop.f32.mrf.mxu0
        %v1202 = vadd.f32 %v993, %v1201
        %1203 = vmatmul.f32.gmra.mxu0 %v1092
        %v1204 = vpop.f32.mrf.mxu0
        %v1205 = vadd.f32 %v996, %v1204
        %1206 = vmatmul.f32.gmra.mxu0 %v1095
        %v1207 = vpop.f32.mrf.mxu0
        %v1208 = vadd.f32 %v999, %v1207
        %1209 = vmatmul.f32.gmra.mxu0 %v1098
        %v1210 = vpop.f32.mrf.mxu0
        %v1211 = vadd.f32 %v1002, %v1210
        %1212 = vmatmul.f32.gmra.mxu0 %v1101
        %v1213 = vpop.f32.mrf.mxu0
        %v1214 = vadd.f32 %v1005, %v1213
        %1215 = vmatmul.f32.gmra.mxu0 %v1104
        %v1216 = vpop.f32.mrf.mxu0
        %v1217 = vadd.f32 %v1008, %v1216
        %1218 = vmatmul.f32.gmra.mxu0 %v1107
        %v1219 = vpop.f32.mrf.mxu0
        %v1220 = vadd.f32 %v1011, %v1219
        %1221 = vmatmul.f32.gmra.mxu0 %v1110
        %v1222 = vpop.f32.mrf.mxu0
        %v1223 = vadd.f32 %v1014, %v1222
        %1224 = vmatmul.f32.gmra.mxu0 %v1113
        %v1225 = vpop.f32.mrf.mxu0
        %v1226 = vadd.f32 %v1017, %v1225
        %1227 = vmatmul.f32.gmra.mxu0 %v1116
        %v1228 = vpop.f32.mrf.mxu0
        %v1229 = vadd.f32 %v1020, %v1228
        %1230 = vmatmul.f32.gmra.mxu0 %v1119
        %v1231 = vpop.f32.mrf.mxu0
        %v1232 = vadd.f32 %v1023, %v1231
        %1233 = vmatmul.f32.gmra.mxu0 %v1122
        %v1234 = vpop.f32.mrf.mxu0
        %v1235 = vadd.f32 %v1026, %v1234
        %1236 = vmatmul.f32.gmra.mxu0 %v1125
        %v1237 = vpop.f32.mrf.mxu0
        %v1238 = vadd.f32 %v1029, %v1237
        %1239 = vmatmul.f32.gmra.mxu0 %v1128
        %v1240 = vpop.f32.mrf.mxu0
        %v1241 = vadd.f32 %v1032, %v1240
        %1242 = vmatmul.f32.gmra.mxu0 %v1131
        %v1243 = vpop.f32.mrf.mxu0
        %v1244 = vadd.f32 %v1035, %v1243
        %1245 = vdwg.mxu0
        %v1246 = vld [vmem:[#allocation2 + $0x2] sm:$0xff]
        %v1247 = vld [vmem:[#allocation2 + $0x12] sm:$0xff]
        %v1248 = vld [vmem:[#allocation2 + $0x22] sm:$0xff]
        %v1249 = vld [vmem:[#allocation2 + $0x32] sm:$0xff]
        %v1250 = vld [vmem:[#allocation2 + $0x42] sm:$0xff]
        %v1251 = vld [vmem:[#allocation2 + $0x52] sm:$0xff]
        %v1252 = vld [vmem:[#allocation2 + $0x62] sm:$0xff]
        %v1253 = vld [vmem:[#allocation2 + $0x72] sm:$0xff]
        %v1254 = vld [vmem:[#allocation2 + $0xa2] sm:$0xff]
        %v1255 = vld [vmem:[#allocation2 + $0xb2] sm:$0xff]
        %v1256 = vld [vmem:[#allocation2 + $0xc2] sm:$0xff]
        %v1257 = vld [vmem:[#allocation2 + $0xd2] sm:$0xff]
        %v1258 = vld [vmem:[#allocation2 + $0xe2] sm:$0xff]
        %v1259 = vld [vmem:[#allocation2 + $0xf2] sm:$0xff]
        %v1260 = vld [vmem:[#allocation2 + $0x102] sm:$0xff]
        %v1261 = vld [vmem:[#allocation2 + $0x112] sm:$0xff]
        %v1262 = vld [vmem:[#allocation2 + $0x142] sm:$0xff]
        %v1263 = vld [vmem:[#allocation2 + $0x152] sm:$0xff]
        %v1264 = vld [vmem:[#allocation2 + $0x162] sm:$0xff]
        %v1265 = vld [vmem:[#allocation2 + $0x172] sm:$0xff]
        %v1266 = vld [vmem:[#allocation2 + $0x182] sm:$0xff]
        %v1267 = vld [vmem:[#allocation2 + $0x192] sm:$0xff]
        %v1268 = vld [vmem:[#allocation2 + $0x1a2] sm:$0xff]
        %v1269 = vld [vmem:[#allocation2 + $0x1b2] sm:$0xff]
        %v1270 = vld [vmem:[#allocation2 + $0x1e2] sm:$0xff]
        %v1271 = vld [vmem:[#allocation2 + $0x1f2] sm:$0xff]
        %v1272 = vld [vmem:[#allocation2 + $0x202] sm:$0xff]
        %v1273 = vld [vmem:[#allocation2 + $0x212] sm:$0xff]
        %v1274 = vld [vmem:[#allocation2 + $0x222] sm:$0xff]
        %v1275 = vld [vmem:[#allocation2 + $0x232] sm:$0xff]
        %v1276 = vld [vmem:[#allocation2 + $0x242] sm:$0xff]
        %v1277 = vld [vmem:[#allocation2 + $0x252] sm:$0xff]
        %s1278 = scalar_lea.vmem %s3, 64
        %v1279 = vld [vmem:[%s1278] sm:$0xff]
        %v1280 = vld [vmem:[%s1278 + $0x8] sm:$0xff]
        %v1281 = vld [vmem:[%s1278 + $0x10] sm:$0xff]
        %v1282 = vld [vmem:[%s1278 + $0x18] sm:$0xff]
        %v1284 = vsel %vm638, %v1246, 0
        %v1287 = vsel %vm638, %v1247, 0
        %v1290 = vsel %vm638, %v1248, 0
        %v1293 = vsel %vm638, %v1249, 0
        %v1296 = vsel %vm638, %v1250, 0
        %v1299 = vsel %vm638, %v1251, 0
        %v1302 = vsel %vm638, %v1252, 0
        %v1305 = vsel %vm638, %v1253, 0
        %v1308 = vsel %vm638, %v1254, 0
        %v1311 = vsel %vm638, %v1255, 0
        %v1314 = vsel %vm638, %v1256, 0
        %v1317 = vsel %vm638, %v1257, 0
        %v1320 = vsel %vm638, %v1258, 0
        %v1323 = vsel %vm638, %v1259, 0
        %v1326 = vsel %vm638, %v1260, 0
        %v1329 = vsel %vm638, %v1261, 0
        %v1332 = vsel %vm638, %v1262, 0
        %v1335 = vsel %vm638, %v1263, 0
        %v1338 = vsel %vm638, %v1264, 0
        %v1341 = vsel %vm638, %v1265, 0
        %v1344 = vsel %vm638, %v1266, 0
        %v1347 = vsel %vm638, %v1267, 0
        %v1350 = vsel %vm638, %v1268, 0
        %v1353 = vsel %vm638, %v1269, 0
        %v1356 = vsel %vm638, %v1270, 0
        %v1359 = vsel %vm638, %v1271, 0
        %v1362 = vsel %vm638, %v1272, 0
        %v1365 = vsel %vm638, %v1273, 0
        %v1368 = vsel %vm638, %v1274, 0
        %v1371 = vsel %vm638, %v1275, 0
        %v1374 = vsel %vm638, %v1276, 0
        %v1377 = vsel %vm638, %v1277, 0
        %1379 = vmatpush.msra.mxu0 0.0
        %1380 = vmatpush.msra.mxu0 0.0
        %1381 = vmatpush.msra.mxu0 0.0
        %1382 = vmatpush.msra.mxu0 0.0
        %1383 = vmatpush.msra.mxu0 0.0
        %1384 = vmatpush.msra.mxu0 0.0
        %1385 = vmatpush.msra.mxu0 0.0
        %1386 = vmatpush.msra.mxu0 0.0
        %1387 = vmatpush.msra.mxu0 0.0
        %1388 = vmatpush.msra.mxu0 0.0
        %1389 = vmatpush.msra.mxu0 0.0
        %1390 = vmatpush.msra.mxu0 0.0
        %1391 = vmatpush.msra.mxu0 %v1282
        %1392 = vmatpush.msra.mxu0 %v1281
        %1393 = vmatpush.msra.mxu0 %v1280
        %1394 = vmatpush.msra.mxu0 %v1279
        %1395 = vmatmul.f32.gmra.mxu0 %v1284
        %v1396 = vpop.f32.mrf.mxu0
        %v1397 = vadd.f32 0.0, %v1396
        %1398 = vmatmul.f32.gmra.mxu0 %v1287
        %v1399 = vpop.f32.mrf.mxu0
        %v1400 = vadd.f32 0.0, %v1399
        %1401 = vmatmul.f32.gmra.mxu0 %v1290
        %v1402 = vpop.f32.mrf.mxu0
        %v1403 = vadd.f32 0.0, %v1402
        %1404 = vmatmul.f32.gmra.mxu0 %v1293
        %v1405 = vpop.f32.mrf.mxu0
        %v1406 = vadd.f32 0.0, %v1405
        %1407 = vmatmul.f32.gmra.mxu0 %v1296
        %v1408 = vpop.f32.mrf.mxu0
        %v1409 = vadd.f32 0.0, %v1408
        %1410 = vmatmul.f32.gmra.mxu0 %v1299
        %v1411 = vpop.f32.mrf.mxu0
        %v1412 = vadd.f32 0.0, %v1411
        %1413 = vmatmul.f32.gmra.mxu0 %v1302
        %v1414 = vpop.f32.mrf.mxu0
        %v1415 = vadd.f32 0.0, %v1414
        %1416 = vmatmul.f32.gmra.mxu0 %v1305
        %v1417 = vpop.f32.mrf.mxu0
        %v1418 = vadd.f32 0.0, %v1417
        %1419 = vmatmul.f32.gmra.mxu0 %v1308
        %v1420 = vpop.f32.mrf.mxu0
        %v1421 = vadd.f32 0.0, %v1420
        %1422 = vmatmul.f32.gmra.mxu0 %v1311
        %v1423 = vpop.f32.mrf.mxu0
        %v1424 = vadd.f32 0.0, %v1423
        %1425 = vmatmul.f32.gmra.mxu0 %v1314
        %v1426 = vpop.f32.mrf.mxu0
        %v1427 = vadd.f32 0.0, %v1426
        %1428 = vmatmul.f32.gmra.mxu0 %v1317
        %v1429 = vpop.f32.mrf.mxu0
        %v1430 = vadd.f32 0.0, %v1429
        %1431 = vmatmul.f32.gmra.mxu0 %v1320
        %v1432 = vpop.f32.mrf.mxu0
        %v1433 = vadd.f32 0.0, %v1432
        %1434 = vmatmul.f32.gmra.mxu0 %v1323
        %v1435 = vpop.f32.mrf.mxu0
        %v1436 = vadd.f32 0.0, %v1435
        %1437 = vmatmul.f32.gmra.mxu0 %v1326
        %v1438 = vpop.f32.mrf.mxu0
        %v1439 = vadd.f32 0.0, %v1438
        %1440 = vmatmul.f32.gmra.mxu0 %v1329
        %v1441 = vpop.f32.mrf.mxu0
        %v1442 = vadd.f32 0.0, %v1441
        %1443 = vmatmul.f32.gmra.mxu0 %v1332
        %v1444 = vpop.f32.mrf.mxu0
        %v1445 = vadd.f32 0.0, %v1444
        %1446 = vmatmul.f32.gmra.mxu0 %v1335
        %v1447 = vpop.f32.mrf.mxu0
        %v1448 = vadd.f32 0.0, %v1447
        %1449 = vmatmul.f32.gmra.mxu0 %v1338
        %v1450 = vpop.f32.mrf.mxu0
        %v1451 = vadd.f32 0.0, %v1450
        %1452 = vmatmul.f32.gmra.mxu0 %v1341
        %v1453 = vpop.f32.mrf.mxu0
        %v1454 = vadd.f32 0.0, %v1453
        %1455 = vmatmul.f32.gmra.mxu0 %v1344
        %v1456 = vpop.f32.mrf.mxu0
        %v1457 = vadd.f32 0.0, %v1456
        %1458 = vmatmul.f32.gmra.mxu0 %v1347
        %v1459 = vpop.f32.mrf.mxu0
        %v1460 = vadd.f32 0.0, %v1459
        %1461 = vmatmul.f32.gmra.mxu0 %v1350
        %v1462 = vpop.f32.mrf.mxu0
        %v1463 = vadd.f32 0.0, %v1462
        %1464 = vmatmul.f32.gmra.mxu0 %v1353
        %v1465 = vpop.f32.mrf.mxu0
        %v1466 = vadd.f32 0.0, %v1465
        %1467 = vmatmul.f32.gmra.mxu0 %v1356
        %v1468 = vpop.f32.mrf.mxu0
        %v1469 = vadd.f32 0.0, %v1468
        %1470 = vmatmul.f32.gmra.mxu0 %v1359
        %v1471 = vpop.f32.mrf.mxu0
        %v1472 = vadd.f32 0.0, %v1471
        %1473 = vmatmul.f32.gmra.mxu0 %v1362
        %v1474 = vpop.f32.mrf.mxu0
        %v1475 = vadd.f32 0.0, %v1474
        %1476 = vmatmul.f32.gmra.mxu0 %v1365
        %v1477 = vpop.f32.mrf.mxu0
        %v1478 = vadd.f32 0.0, %v1477
        %1479 = vmatmul.f32.gmra.mxu0 %v1368
        %v1480 = vpop.f32.mrf.mxu0
        %v1481 = vadd.f32 0.0, %v1480
        %1482 = vmatmul.f32.gmra.mxu0 %v1371
        %v1483 = vpop.f32.mrf.mxu0
        %v1484 = vadd.f32 0.0, %v1483
        %1485 = vmatmul.f32.gmra.mxu0 %v1374
        %v1486 = vpop.f32.mrf.mxu0
        %v1487 = vadd.f32 0.0, %v1486
        %1488 = vmatmul.f32.gmra.mxu0 %v1377
        %v1489 = vpop.f32.mrf.mxu0
        %v1490 = vadd.f32 0.0, %v1489
        %1491 = vdwg.mxu0
        %v1492 = vadd.f32 %v1151, %v1397
        %v1493 = vadd.f32 %v1154, %v1400
        %v1494 = vadd.f32 %v1157, %v1403
        %v1495 = vadd.f32 %v1160, %v1406
        %v1496 = vadd.f32 %v1163, %v1409
        %v1497 = vadd.f32 %v1166, %v1412
        %v1498 = vadd.f32 %v1169, %v1415
        %v1499 = vadd.f32 %v1172, %v1418
        %v1500 = vadd.f32 %v1175, %v1421
        %v1501 = vadd.f32 %v1178, %v1424
        %v1502 = vadd.f32 %v1181, %v1427
        %v1503 = vadd.f32 %v1184, %v1430
        %v1504 = vadd.f32 %v1187, %v1433
        %v1505 = vadd.f32 %v1190, %v1436
        %v1506 = vadd.f32 %v1193, %v1439
        %v1507 = vadd.f32 %v1196, %v1442
        %v1508 = vadd.f32 %v1199, %v1445
        %v1509 = vadd.f32 %v1202, %v1448
        %v1510 = vadd.f32 %v1205, %v1451
        %v1511 = vadd.f32 %v1208, %v1454
        %v1512 = vadd.f32 %v1211, %v1457
        %v1513 = vadd.f32 %v1214, %v1460
        %v1514 = vadd.f32 %v1217, %v1463
        %v1515 = vadd.f32 %v1220, %v1466
        %v1516 = vadd.f32 %v1223, %v1469
        %v1517 = vadd.f32 %v1226, %v1472
        %v1518 = vadd.f32 %v1229, %v1475
        %v1519 = vadd.f32 %v1232, %v1478
        %v1520 = vadd.f32 %v1235, %v1481
        %v1521 = vadd.f32 %v1238, %v1484
        %v1522 = vadd.f32 %v1241, %v1487
        %v1523 = vadd.f32 %v1244, %v1490
        %v1524 = vld [vmem:[%s657] sm:$0xff]
        %v1525 = vld [vmem:[%s657 + $0x10] sm:$0xff]
        %v1526 = vld [vmem:[%s657 + $0x20] sm:$0xff]
        %v1527 = vld [vmem:[%s657 + $0x30] sm:$0xff]
        %v1528 = vld [vmem:[%s657 + $0x40] sm:$0xff]
        %v1529 = vld [vmem:[%s657 + $0x50] sm:$0xff]
        %v1530 = vld [vmem:[%s657 + $0x60] sm:$0xff]
        %v1531 = vld [vmem:[%s657 + $0x70] sm:$0xff]
        %v1532 = vld [vmem:[%s657 + $0xa0] sm:$0xff]
        %v1533 = vld [vmem:[%s657 + $0xb0] sm:$0xff]
        %v1534 = vld [vmem:[%s657 + $0xc0] sm:$0xff]
        %v1535 = vld [vmem:[%s657 + $0xd0] sm:$0xff]
        %v1536 = vld [vmem:[%s657 + $0xe0] sm:$0xff]
        %v1537 = vld [vmem:[%s657 + $0xf0] sm:$0xff]
        %v1538 = vld [vmem:[%s657 + $0x100] sm:$0xff]
        %v1539 = vld [vmem:[%s657 + $0x110] sm:$0xff]
        %v1540 = vld [vmem:[%s657 + $0x140] sm:$0xff]
        %v1541 = vld [vmem:[%s657 + $0x150] sm:$0xff]
        %v1542 = vld [vmem:[%s657 + $0x160] sm:$0xff]
        %v1543 = vld [vmem:[%s657 + $0x170] sm:$0xff]
        %v1544 = vld [vmem:[%s657 + $0x180] sm:$0xff]
        %v1545 = vld [vmem:[%s657 + $0x190] sm:$0xff]
        %v1546 = vld [vmem:[%s657 + $0x1a0] sm:$0xff]
        %v1547 = vld [vmem:[%s657 + $0x1b0] sm:$0xff]
        %v1548 = vld [vmem:[%s657 + $0x1e0] sm:$0xff]
        %v1549 = vld [vmem:[%s657 + $0x1f0] sm:$0xff]
        %v1550 = vld [vmem:[%s657 + $0x200] sm:$0xff]
        %v1551 = vld [vmem:[%s657 + $0x210] sm:$0xff]
        %v1552 = vld [vmem:[%s657 + $0x220] sm:$0xff]
        %v1553 = vld [vmem:[%s657 + $0x230] sm:$0xff]
        %v1554 = vld [vmem:[%s657 + $0x240] sm:$0xff]
        %v1555 = vld [vmem:[%s657 + $0x250] sm:$0xff]
        %s1556 = scalar_lea.vmem %s3, 96
        %v1557 = vld [vmem:[%s1556] sm:$0xff]
        %v1558 = vld [vmem:[%s1556 + $0x8] sm:$0xff]
        %v1559 = vld [vmem:[%s1556 + $0x10] sm:$0xff]
        %v1560 = vld [vmem:[%s1556 + $0x18] sm:$0xff]
        %v1562 = vsel %vm638, %v1524, 0
        %v1565 = vsel %vm638, %v1525, 0
        %v1568 = vsel %vm638, %v1526, 0
        %v1571 = vsel %vm638, %v1527, 0
        %v1574 = vsel %vm638, %v1528, 0
        %v1577 = vsel %vm638, %v1529, 0
        %v1580 = vsel %vm638, %v1530, 0
        %v1583 = vsel %vm638, %v1531, 0
        %v1586 = vsel %vm638, %v1532, 0
        %v1589 = vsel %vm638, %v1533, 0
        %v1592 = vsel %vm638, %v1534, 0
        %v1595 = vsel %vm638, %v1535, 0
        %v1598 = vsel %vm638, %v1536, 0
        %v1601 = vsel %vm638, %v1537, 0
        %v1604 = vsel %vm638, %v1538, 0
        %v1607 = vsel %vm638, %v1539, 0
        %v1610 = vsel %vm638, %v1540, 0
        %v1613 = vsel %vm638, %v1541, 0
        %v1616 = vsel %vm638, %v1542, 0
        %v1619 = vsel %vm638, %v1543, 0
        %v1622 = vsel %vm638, %v1544, 0
        %v1625 = vsel %vm638, %v1545, 0
        %v1628 = vsel %vm638, %v1546, 0
        %v1631 = vsel %vm638, %v1547, 0
        %v1634 = vsel %vm638, %v1548, 0
        %v1637 = vsel %vm638, %v1549, 0
        %v1640 = vsel %vm638, %v1550, 0
        %v1643 = vsel %vm638, %v1551, 0
        %v1646 = vsel %vm638, %v1552, 0
        %v1649 = vsel %vm638, %v1553, 0
        %v1652 = vsel %vm638, %v1554, 0
        %v1655 = vsel %vm638, %v1555, 0
        %1657 = vmatpush.msra.mxu0 0.0
        %1658 = vmatpush.msra.mxu0 0.0
        %1659 = vmatpush.msra.mxu0 0.0
        %1660 = vmatpush.msra.mxu0 0.0
        %1661 = vmatpush.msra.mxu0 0.0
        %1662 = vmatpush.msra.mxu0 0.0
        %1663 = vmatpush.msra.mxu0 0.0
        %1664 = vmatpush.msra.mxu0 0.0
        %1665 = vmatpush.msra.mxu0 0.0
        %1666 = vmatpush.msra.mxu0 0.0
        %1667 = vmatpush.msra.mxu0 0.0
        %1668 = vmatpush.msra.mxu0 0.0
        %1669 = vmatpush.msra.mxu0 %v1560
        %1670 = vmatpush.msra.mxu0 %v1559
        %1671 = vmatpush.msra.mxu0 %v1558
        %1672 = vmatpush.msra.mxu0 %v1557
        %1673 = vmatmul.f32.gmra.mxu0 %v1562
        %v1674 = vpop.f32.mrf.mxu0
        %v1675 = vadd.f32 0.0, %v1674
        %1676 = vmatmul.f32.gmra.mxu0 %v1565
        %v1677 = vpop.f32.mrf.mxu0
        %v1678 = vadd.f32 0.0, %v1677
        %1679 = vmatmul.f32.gmra.mxu0 %v1568
        %v1680 = vpop.f32.mrf.mxu0
        %v1681 = vadd.f32 0.0, %v1680
        %1682 = vmatmul.f32.gmra.mxu0 %v1571
        %v1683 = vpop.f32.mrf.mxu0
        %v1684 = vadd.f32 0.0, %v1683
        %1685 = vmatmul.f32.gmra.mxu0 %v1574
        %v1686 = vpop.f32.mrf.mxu0
        %v1687 = vadd.f32 0.0, %v1686
        %1688 = vmatmul.f32.gmra.mxu0 %v1577
        %v1689 = vpop.f32.mrf.mxu0
        %v1690 = vadd.f32 0.0, %v1689
        %1691 = vmatmul.f32.gmra.mxu0 %v1580
        %v1692 = vpop.f32.mrf.mxu0
        %v1693 = vadd.f32 0.0, %v1692
        %1694 = vmatmul.f32.gmra.mxu0 %v1583
        %v1695 = vpop.f32.mrf.mxu0
        %v1696 = vadd.f32 0.0, %v1695
        %1697 = vmatmul.f32.gmra.mxu0 %v1586
        %v1698 = vpop.f32.mrf.mxu0
        %v1699 = vadd.f32 0.0, %v1698
        %1700 = vmatmul.f32.gmra.mxu0 %v1589
        %v1701 = vpop.f32.mrf.mxu0
        %v1702 = vadd.f32 0.0, %v1701
        %1703 = vmatmul.f32.gmra.mxu0 %v1592
        %v1704 = vpop.f32.mrf.mxu0
        %v1705 = vadd.f32 0.0, %v1704
        %1706 = vmatmul.f32.gmra.mxu0 %v1595
        %v1707 = vpop.f32.mrf.mxu0
        %v1708 = vadd.f32 0.0, %v1707
        %1709 = vmatmul.f32.gmra.mxu0 %v1598
        %v1710 = vpop.f32.mrf.mxu0
        %v1711 = vadd.f32 0.0, %v1710
        %1712 = vmatmul.f32.gmra.mxu0 %v1601
        %v1713 = vpop.f32.mrf.mxu0
        %v1714 = vadd.f32 0.0, %v1713
        %1715 = vmatmul.f32.gmra.mxu0 %v1604
        %v1716 = vpop.f32.mrf.mxu0
        %v1717 = vadd.f32 0.0, %v1716
        %1718 = vmatmul.f32.gmra.mxu0 %v1607
        %v1719 = vpop.f32.mrf.mxu0
        %v1720 = vadd.f32 0.0, %v1719
        %1721 = vmatmul.f32.gmra.mxu0 %v1610
        %v1722 = vpop.f32.mrf.mxu0
        %v1723 = vadd.f32 0.0, %v1722
        %1724 = vmatmul.f32.gmra.mxu0 %v1613
        %v1725 = vpop.f32.mrf.mxu0
        %v1726 = vadd.f32 0.0, %v1725
        %1727 = vmatmul.f32.gmra.mxu0 %v1616
        %v1728 = vpop.f32.mrf.mxu0
        %v1729 = vadd.f32 0.0, %v1728
        %1730 = vmatmul.f32.gmra.mxu0 %v1619
        %v1731 = vpop.f32.mrf.mxu0
        %v1732 = vadd.f32 0.0, %v1731
        %1733 = vmatmul.f32.gmra.mxu0 %v1622
        %v1734 = vpop.f32.mrf.mxu0
        %v1735 = vadd.f32 0.0, %v1734
        %1736 = vmatmul.f32.gmra.mxu0 %v1625
        %v1737 = vpop.f32.mrf.mxu0
        %v1738 = vadd.f32 0.0, %v1737
        %1739 = vmatmul.f32.gmra.mxu0 %v1628
        %v1740 = vpop.f32.mrf.mxu0
        %v1741 = vadd.f32 0.0, %v1740
        %1742 = vmatmul.f32.gmra.mxu0 %v1631
        %v1743 = vpop.f32.mrf.mxu0
        %v1744 = vadd.f32 0.0, %v1743
        %1745 = vmatmul.f32.gmra.mxu0 %v1634
        %v1746 = vpop.f32.mrf.mxu0
        %v1747 = vadd.f32 0.0, %v1746
        %1748 = vmatmul.f32.gmra.mxu0 %v1637
        %v1749 = vpop.f32.mrf.mxu0
        %v1750 = vadd.f32 0.0, %v1749
        %1751 = vmatmul.f32.gmra.mxu0 %v1640
        %v1752 = vpop.f32.mrf.mxu0
        %v1753 = vadd.f32 0.0, %v1752
        %1754 = vmatmul.f32.gmra.mxu0 %v1643
        %v1755 = vpop.f32.mrf.mxu0
        %v1756 = vadd.f32 0.0, %v1755
        %1757 = vmatmul.f32.gmra.mxu0 %v1646
        %v1758 = vpop.f32.mrf.mxu0
        %v1759 = vadd.f32 0.0, %v1758
        %1760 = vmatmul.f32.gmra.mxu0 %v1649
        %v1761 = vpop.f32.mrf.mxu0
        %v1762 = vadd.f32 0.0, %v1761
        %1763 = vmatmul.f32.gmra.mxu0 %v1652
        %v1764 = vpop.f32.mrf.mxu0
        %v1765 = vadd.f32 0.0, %v1764
        %1766 = vmatmul.f32.gmra.mxu0 %v1655
        %v1767 = vpop.f32.mrf.mxu0
        %v1768 = vadd.f32 0.0, %v1767
        %1769 = vdwg.mxu0
        %v1770 = vadd.f32 %v1492, %v1675
        %v1771 = vadd.f32 %v1493, %v1678
        %v1772 = vadd.f32 %v1494, %v1681
        %v1773 = vadd.f32 %v1495, %v1684
        %v1774 = vadd.f32 %v1496, %v1687
        %v1775 = vadd.f32 %v1497, %v1690
        %v1776 = vadd.f32 %v1498, %v1693
        %v1777 = vadd.f32 %v1499, %v1696
        %v1778 = vadd.f32 %v1500, %v1699
        %v1779 = vadd.f32 %v1501, %v1702
        %v1780 = vadd.f32 %v1502, %v1705
        %v1781 = vadd.f32 %v1503, %v1708
        %v1782 = vadd.f32 %v1504, %v1711
        %v1783 = vadd.f32 %v1505, %v1714
        %v1784 = vadd.f32 %v1506, %v1717
        %v1785 = vadd.f32 %v1507, %v1720
        %v1786 = vadd.f32 %v1508, %v1723
        %v1787 = vadd.f32 %v1509, %v1726
        %v1788 = vadd.f32 %v1510, %v1729
        %v1789 = vadd.f32 %v1511, %v1732
        %v1790 = vadd.f32 %v1512, %v1735
        %v1791 = vadd.f32 %v1513, %v1738
        %v1792 = vadd.f32 %v1514, %v1741
        %v1793 = vadd.f32 %v1515, %v1744
        %v1794 = vadd.f32 %v1516, %v1747
        %v1795 = vadd.f32 %v1517, %v1750
        %v1796 = vadd.f32 %v1518, %v1753
        %v1797 = vadd.f32 %v1519, %v1756
        %v1798 = vadd.f32 %v1520, %v1759
        %v1799 = vadd.f32 %v1521, %v1762
        %v1800 = vadd.f32 %v1522, %v1765
        %v1801 = vadd.f32 %v1523, %v1768
        %v1802 = vld [vmem:[%s657 + $0x1] sm:$0xff]
        %v1803 = vld [vmem:[%s657 + $0x11] sm:$0xff]
        %v1804 = vld [vmem:[%s657 + $0x21] sm:$0xff]
        %v1805 = vld [vmem:[%s657 + $0x31] sm:$0xff]
        %v1806 = vld [vmem:[%s657 + $0x41] sm:$0xff]
        %v1807 = vld [vmem:[%s657 + $0x51] sm:$0xff]
        %v1808 = vld [vmem:[%s657 + $0x61] sm:$0xff]
        %v1809 = vld [vmem:[%s657 + $0x71] sm:$0xff]
        %v1810 = vld [vmem:[%s657 + $0xa1] sm:$0xff]
        %v1811 = vld [vmem:[%s657 + $0xb1] sm:$0xff]
        %v1812 = vld [vmem:[%s657 + $0xc1] sm:$0xff]
        %v1813 = vld [vmem:[%s657 + $0xd1] sm:$0xff]
        %v1814 = vld [vmem:[%s657 + $0xe1] sm:$0xff]
        %v1815 = vld [vmem:[%s657 + $0xf1] sm:$0xff]
        %v1816 = vld [vmem:[%s657 + $0x101] sm:$0xff]
        %v1817 = vld [vmem:[%s657 + $0x111] sm:$0xff]
        %v1818 = vld [vmem:[%s657 + $0x141] sm:$0xff]
        %v1819 = vld [vmem:[%s657 + $0x151] sm:$0xff]
        %v1820 = vld [vmem:[%s657 + $0x161] sm:$0xff]
        %v1821 = vld [vmem:[%s657 + $0x171] sm:$0xff]
        %v1822 = vld [vmem:[%s657 + $0x181] sm:$0xff]
        %v1823 = vld [vmem:[%s657 + $0x191] sm:$0xff]
        %v1824 = vld [vmem:[%s657 + $0x1a1] sm:$0xff]
        %v1825 = vld [vmem:[%s657 + $0x1b1] sm:$0xff]
        %v1826 = vld [vmem:[%s657 + $0x1e1] sm:$0xff]
        %v1827 = vld [vmem:[%s657 + $0x1f1] sm:$0xff]
        %v1828 = vld [vmem:[%s657 + $0x201] sm:$0xff]
        %v1829 = vld [vmem:[%s657 + $0x211] sm:$0xff]
        %v1830 = vld [vmem:[%s657 + $0x221] sm:$0xff]
        %v1831 = vld [vmem:[%s657 + $0x231] sm:$0xff]
        %v1832 = vld [vmem:[%s657 + $0x241] sm:$0xff]
        %v1833 = vld [vmem:[%s657 + $0x251] sm:$0xff]
        %s1834 = scalar_lea.vmem %s3, 128
        %v1835 = vld [vmem:[%s1834] sm:$0xff]
        %v1836 = vld [vmem:[%s1834 + $0x8] sm:$0xff]
        %v1837 = vld [vmem:[%s1834 + $0x10] sm:$0xff]
        %v1838 = vld [vmem:[%s1834 + $0x18] sm:$0xff]
        %v1840 = vsel %vm638, %v1802, 0
        %v1843 = vsel %vm638, %v1803, 0
        %v1846 = vsel %vm638, %v1804, 0
        %v1849 = vsel %vm638, %v1805, 0
        %v1852 = vsel %vm638, %v1806, 0
        %v1855 = vsel %vm638, %v1807, 0
        %v1858 = vsel %vm638, %v1808, 0
        %v1861 = vsel %vm638, %v1809, 0
        %v1864 = vsel %vm638, %v1810, 0
        %v1867 = vsel %vm638, %v1811, 0
        %v1870 = vsel %vm638, %v1812, 0
        %v1873 = vsel %vm638, %v1813, 0
        %v1876 = vsel %vm638, %v1814, 0
        %v1879 = vsel %vm638, %v1815, 0
        %v1882 = vsel %vm638, %v1816, 0
        %v1885 = vsel %vm638, %v1817, 0
        %v1888 = vsel %vm638, %v1818, 0
        %v1891 = vsel %vm638, %v1819, 0
        %v1894 = vsel %vm638, %v1820, 0
        %v1897 = vsel %vm638, %v1821, 0
        %v1900 = vsel %vm638, %v1822, 0
        %v1903 = vsel %vm638, %v1823, 0
        %v1906 = vsel %vm638, %v1824, 0
        %v1909 = vsel %vm638, %v1825, 0
        %v1912 = vsel %vm638, %v1826, 0
        %v1915 = vsel %vm638, %v1827, 0
        %v1918 = vsel %vm638, %v1828, 0
        %v1921 = vsel %vm638, %v1829, 0
        %v1924 = vsel %vm638, %v1830, 0
        %v1927 = vsel %vm638, %v1831, 0
        %v1930 = vsel %vm638, %v1832, 0
        %v1933 = vsel %vm638, %v1833, 0
        %1935 = vmatpush.msra.mxu0 0.0
        %1936 = vmatpush.msra.mxu0 0.0
        %1937 = vmatpush.msra.mxu0 0.0
        %1938 = vmatpush.msra.mxu0 0.0
        %1939 = vmatpush.msra.mxu0 0.0
        %1940 = vmatpush.msra.mxu0 0.0
        %1941 = vmatpush.msra.mxu0 0.0
        %1942 = vmatpush.msra.mxu0 0.0
        %1943 = vmatpush.msra.mxu0 0.0
        %1944 = vmatpush.msra.mxu0 0.0
        %1945 = vmatpush.msra.mxu0 0.0
        %1946 = vmatpush.msra.mxu0 0.0
        %1947 = vmatpush.msra.mxu0 %v1838
        %1948 = vmatpush.msra.mxu0 %v1837
        %1949 = vmatpush.msra.mxu0 %v1836
        %1950 = vmatpush.msra.mxu0 %v1835
        %1951 = vmatmul.f32.gmra.mxu0 %v1840
        %v1952 = vpop.f32.mrf.mxu0
        %v1953 = vadd.f32 0.0, %v1952
        %1954 = vmatmul.f32.gmra.mxu0 %v1843
        %v1955 = vpop.f32.mrf.mxu0
        %v1956 = vadd.f32 0.0, %v1955
        %1957 = vmatmul.f32.gmra.mxu0 %v1846
        %v1958 = vpop.f32.mrf.mxu0
        %v1959 = vadd.f32 0.0, %v1958
        %1960 = vmatmul.f32.gmra.mxu0 %v1849
        %v1961 = vpop.f32.mrf.mxu0
        %v1962 = vadd.f32 0.0, %v1961
        %1963 = vmatmul.f32.gmra.mxu0 %v1852
        %v1964 = vpop.f32.mrf.mxu0
        %v1965 = vadd.f32 0.0, %v1964
        %1966 = vmatmul.f32.gmra.mxu0 %v1855
        %v1967 = vpop.f32.mrf.mxu0
        %v1968 = vadd.f32 0.0, %v1967
        %1969 = vmatmul.f32.gmra.mxu0 %v1858
        %v1970 = vpop.f32.mrf.mxu0
        %v1971 = vadd.f32 0.0, %v1970
        %1972 = vmatmul.f32.gmra.mxu0 %v1861
        %v1973 = vpop.f32.mrf.mxu0
        %v1974 = vadd.f32 0.0, %v1973
        %1975 = vmatmul.f32.gmra.mxu0 %v1864
        %v1976 = vpop.f32.mrf.mxu0
        %v1977 = vadd.f32 0.0, %v1976
        %1978 = vmatmul.f32.gmra.mxu0 %v1867
        %v1979 = vpop.f32.mrf.mxu0
        %v1980 = vadd.f32 0.0, %v1979
        %1981 = vmatmul.f32.gmra.mxu0 %v1870
        %v1982 = vpop.f32.mrf.mxu0
        %v1983 = vadd.f32 0.0, %v1982
        %1984 = vmatmul.f32.gmra.mxu0 %v1873
        %v1985 = vpop.f32.mrf.mxu0
        %v1986 = vadd.f32 0.0, %v1985
        %1987 = vmatmul.f32.gmra.mxu0 %v1876
        %v1988 = vpop.f32.mrf.mxu0
        %v1989 = vadd.f32 0.0, %v1988
        %1990 = vmatmul.f32.gmra.mxu0 %v1879
        %v1991 = vpop.f32.mrf.mxu0
        %v1992 = vadd.f32 0.0, %v1991
        %1993 = vmatmul.f32.gmra.mxu0 %v1882
        %v1994 = vpop.f32.mrf.mxu0
        %v1995 = vadd.f32 0.0, %v1994
        %1996 = vmatmul.f32.gmra.mxu0 %v1885
        %v1997 = vpop.f32.mrf.mxu0
        %v1998 = vadd.f32 0.0, %v1997
        %1999 = vmatmul.f32.gmra.mxu0 %v1888
        %v2000 = vpop.f32.mrf.mxu0
        %v2001 = vadd.f32 0.0, %v2000
        %2002 = vmatmul.f32.gmra.mxu0 %v1891
        %v2003 = vpop.f32.mrf.mxu0
        %v2004 = vadd.f32 0.0, %v2003
        %2005 = vmatmul.f32.gmra.mxu0 %v1894
        %v2006 = vpop.f32.mrf.mxu0
        %v2007 = vadd.f32 0.0, %v2006
        %2008 = vmatmul.f32.gmra.mxu0 %v1897
        %v2009 = vpop.f32.mrf.mxu0
        %v2010 = vadd.f32 0.0, %v2009
        %2011 = vmatmul.f32.gmra.mxu0 %v1900
        %v2012 = vpop.f32.mrf.mxu0
        %v2013 = vadd.f32 0.0, %v2012
        %2014 = vmatmul.f32.gmra.mxu0 %v1903
        %v2015 = vpop.f32.mrf.mxu0
        %v2016 = vadd.f32 0.0, %v2015
        %2017 = vmatmul.f32.gmra.mxu0 %v1906
        %v2018 = vpop.f32.mrf.mxu0
        %v2019 = vadd.f32 0.0, %v2018
        %2020 = vmatmul.f32.gmra.mxu0 %v1909
        %v2021 = vpop.f32.mrf.mxu0
        %v2022 = vadd.f32 0.0, %v2021
        %2023 = vmatmul.f32.gmra.mxu0 %v1912
        %v2024 = vpop.f32.mrf.mxu0
        %v2025 = vadd.f32 0.0, %v2024
        %2026 = vmatmul.f32.gmra.mxu0 %v1915
        %v2027 = vpop.f32.mrf.mxu0
        %v2028 = vadd.f32 0.0, %v2027
        %2029 = vmatmul.f32.gmra.mxu0 %v1918
        %v2030 = vpop.f32.mrf.mxu0
        %v2031 = vadd.f32 0.0, %v2030
        %2032 = vmatmul.f32.gmra.mxu0 %v1921
        %v2033 = vpop.f32.mrf.mxu0
        %v2034 = vadd.f32 0.0, %v2033
        %2035 = vmatmul.f32.gmra.mxu0 %v1924
        %v2036 = vpop.f32.mrf.mxu0
        %v2037 = vadd.f32 0.0, %v2036
        %2038 = vmatmul.f32.gmra.mxu0 %v1927
        %v2039 = vpop.f32.mrf.mxu0
        %v2040 = vadd.f32 0.0, %v2039
        %2041 = vmatmul.f32.gmra.mxu0 %v1930
        %v2042 = vpop.f32.mrf.mxu0
        %v2043 = vadd.f32 0.0, %v2042
        %2044 = vmatmul.f32.gmra.mxu0 %v1933
        %v2045 = vpop.f32.mrf.mxu0
        %v2046 = vadd.f32 0.0, %v2045
        %2047 = vdwg.mxu0
        %v2048 = vadd.f32 %v1770, %v1953
        %v2049 = vadd.f32 %v1771, %v1956
        %v2050 = vadd.f32 %v1772, %v1959
        %v2051 = vadd.f32 %v1773, %v1962
        %v2052 = vadd.f32 %v1774, %v1965
        %v2053 = vadd.f32 %v1775, %v1968
        %v2054 = vadd.f32 %v1776, %v1971
        %v2055 = vadd.f32 %v1777, %v1974
        %v2056 = vadd.f32 %v1778, %v1977
        %v2057 = vadd.f32 %v1779, %v1980
        %v2058 = vadd.f32 %v1780, %v1983
        %v2059 = vadd.f32 %v1781, %v1986
        %v2060 = vadd.f32 %v1782, %v1989
        %v2061 = vadd.f32 %v1783, %v1992
        %v2062 = vadd.f32 %v1784, %v1995
        %v2063 = vadd.f32 %v1785, %v1998
        %v2064 = vadd.f32 %v1786, %v2001
        %v2065 = vadd.f32 %v1787, %v2004
        %v2066 = vadd.f32 %v1788, %v2007
        %v2067 = vadd.f32 %v1789, %v2010
        %v2068 = vadd.f32 %v1790, %v2013
        %v2069 = vadd.f32 %v1791, %v2016
        %v2070 = vadd.f32 %v1792, %v2019
        %v2071 = vadd.f32 %v1793, %v2022
        %v2072 = vadd.f32 %v1794, %v2025
        %v2073 = vadd.f32 %v1795, %v2028
        %v2074 = vadd.f32 %v1796, %v2031
        %v2075 = vadd.f32 %v1797, %v2034
        %v2076 = vadd.f32 %v1798, %v2037
        %v2077 = vadd.f32 %v1799, %v2040
        %v2078 = vadd.f32 %v1800, %v2043
        %v2079 = vadd.f32 %v1801, %v2046
        %v2080 = vld [vmem:[%s657 + $0x2] sm:$0xff]
        %v2081 = vld [vmem:[%s657 + $0x12] sm:$0xff]
        %v2082 = vld [vmem:[%s657 + $0x22] sm:$0xff]
        %v2083 = vld [vmem:[%s657 + $0x32] sm:$0xff]
        %v2084 = vld [vmem:[%s657 + $0x42] sm:$0xff]
        %v2085 = vld [vmem:[%s657 + $0x52] sm:$0xff]
        %v2086 = vld [vmem:[%s657 + $0x62] sm:$0xff]
        %v2087 = vld [vmem:[%s657 + $0x72] sm:$0xff]
        %v2088 = vld [vmem:[%s657 + $0xa2] sm:$0xff]
        %v2089 = vld [vmem:[%s657 + $0xb2] sm:$0xff]
        %v2090 = vld [vmem:[%s657 + $0xc2] sm:$0xff]
        %v2091 = vld [vmem:[%s657 + $0xd2] sm:$0xff]
        %v2092 = vld [vmem:[%s657 + $0xe2] sm:$0xff]
        %v2093 = vld [vmem:[%s657 + $0xf2] sm:$0xff]
        %v2094 = vld [vmem:[%s657 + $0x102] sm:$0xff]
        %v2095 = vld [vmem:[%s657 + $0x112] sm:$0xff]
        %v2096 = vld [vmem:[%s657 + $0x142] sm:$0xff]
        %v2097 = vld [vmem:[%s657 + $0x152] sm:$0xff]
        %v2098 = vld [vmem:[%s657 + $0x162] sm:$0xff]
        %v2099 = vld [vmem:[%s657 + $0x172] sm:$0xff]
        %v2100 = vld [vmem:[%s657 + $0x182] sm:$0xff]
        %v2101 = vld [vmem:[%s657 + $0x192] sm:$0xff]
        %v2102 = vld [vmem:[%s657 + $0x1a2] sm:$0xff]
        %v2103 = vld [vmem:[%s657 + $0x1b2] sm:$0xff]
        %v2104 = vld [vmem:[%s657 + $0x1e2] sm:$0xff]
        %v2105 = vld [vmem:[%s657 + $0x1f2] sm:$0xff]
        %v2106 = vld [vmem:[%s657 + $0x202] sm:$0xff]
        %v2107 = vld [vmem:[%s657 + $0x212] sm:$0xff]
        %v2108 = vld [vmem:[%s657 + $0x222] sm:$0xff]
        %v2109 = vld [vmem:[%s657 + $0x232] sm:$0xff]
        %v2110 = vld [vmem:[%s657 + $0x242] sm:$0xff]
        %v2111 = vld [vmem:[%s657 + $0x252] sm:$0xff]
        %s2112 = scalar_lea.vmem %s3, 160
        %v2113 = vld [vmem:[%s2112] sm:$0xff]
        %v2114 = vld [vmem:[%s2112 + $0x8] sm:$0xff]
        %v2115 = vld [vmem:[%s2112 + $0x10] sm:$0xff]
        %v2116 = vld [vmem:[%s2112 + $0x18] sm:$0xff]
        %v2118 = vsel %vm638, %v2080, 0
        %v2121 = vsel %vm638, %v2081, 0
        %v2124 = vsel %vm638, %v2082, 0
        %v2127 = vsel %vm638, %v2083, 0
        %v2130 = vsel %vm638, %v2084, 0
        %v2133 = vsel %vm638, %v2085, 0
        %v2136 = vsel %vm638, %v2086, 0
        %v2139 = vsel %vm638, %v2087, 0
        %v2142 = vsel %vm638, %v2088, 0
        %v2145 = vsel %vm638, %v2089, 0
        %v2148 = vsel %vm638, %v2090, 0
        %v2151 = vsel %vm638, %v2091, 0
        %v2154 = vsel %vm638, %v2092, 0
        %v2157 = vsel %vm638, %v2093, 0
        %v2160 = vsel %vm638, %v2094, 0
        %v2163 = vsel %vm638, %v2095, 0
        %v2166 = vsel %vm638, %v2096, 0
        %v2169 = vsel %vm638, %v2097, 0
        %v2172 = vsel %vm638, %v2098, 0
        %v2175 = vsel %vm638, %v2099, 0
        %v2178 = vsel %vm638, %v2100, 0
        %v2181 = vsel %vm638, %v2101, 0
        %v2184 = vsel %vm638, %v2102, 0
        %v2187 = vsel %vm638, %v2103, 0
        %v2190 = vsel %vm638, %v2104, 0
        %v2193 = vsel %vm638, %v2105, 0
        %v2196 = vsel %vm638, %v2106, 0
        %v2199 = vsel %vm638, %v2107, 0
        %v2202 = vsel %vm638, %v2108, 0
        %v2205 = vsel %vm638, %v2109, 0
        %v2208 = vsel %vm638, %v2110, 0
        %v2211 = vsel %vm638, %v2111, 0
        %2213 = vmatpush.msra.mxu0 0.0
        %2214 = vmatpush.msra.mxu0 0.0
        %2215 = vmatpush.msra.mxu0 0.0
        %2216 = vmatpush.msra.mxu0 0.0
        %2217 = vmatpush.msra.mxu0 0.0
        %2218 = vmatpush.msra.mxu0 0.0
        %2219 = vmatpush.msra.mxu0 0.0
        %2220 = vmatpush.msra.mxu0 0.0
        %2221 = vmatpush.msra.mxu0 0.0
        %2222 = vmatpush.msra.mxu0 0.0
        %2223 = vmatpush.msra.mxu0 0.0
        %2224 = vmatpush.msra.mxu0 0.0
        %2225 = vmatpush.msra.mxu0 %v2116
        %2226 = vmatpush.msra.mxu0 %v2115
        %2227 = vmatpush.msra.mxu0 %v2114
        %2228 = vmatpush.msra.mxu0 %v2113
        %2229 = vmatmul.f32.gmra.mxu0 %v2118
        %v2230 = vpop.f32.mrf.mxu0
        %v2231 = vadd.f32 0.0, %v2230
        %2232 = vmatmul.f32.gmra.mxu0 %v2121
        %v2233 = vpop.f32.mrf.mxu0
        %v2234 = vadd.f32 0.0, %v2233
        %2235 = vmatmul.f32.gmra.mxu0 %v2124
        %v2236 = vpop.f32.mrf.mxu0
        %v2237 = vadd.f32 0.0, %v2236
        %2238 = vmatmul.f32.gmra.mxu0 %v2127
        %v2239 = vpop.f32.mrf.mxu0
        %v2240 = vadd.f32 0.0, %v2239
        %2241 = vmatmul.f32.gmra.mxu0 %v2130
        %v2242 = vpop.f32.mrf.mxu0
        %v2243 = vadd.f32 0.0, %v2242
        %2244 = vmatmul.f32.gmra.mxu0 %v2133
        %v2245 = vpop.f32.mrf.mxu0
        %v2246 = vadd.f32 0.0, %v2245
        %2247 = vmatmul.f32.gmra.mxu0 %v2136
        %v2248 = vpop.f32.mrf.mxu0
        %v2249 = vadd.f32 0.0, %v2248
        %2250 = vmatmul.f32.gmra.mxu0 %v2139
        %v2251 = vpop.f32.mrf.mxu0
        %v2252 = vadd.f32 0.0, %v2251
        %2253 = vmatmul.f32.gmra.mxu0 %v2142
        %v2254 = vpop.f32.mrf.mxu0
        %v2255 = vadd.f32 0.0, %v2254
        %2256 = vmatmul.f32.gmra.mxu0 %v2145
        %v2257 = vpop.f32.mrf.mxu0
        %v2258 = vadd.f32 0.0, %v2257
        %2259 = vmatmul.f32.gmra.mxu0 %v2148
        %v2260 = vpop.f32.mrf.mxu0
        %v2261 = vadd.f32 0.0, %v2260
        %2262 = vmatmul.f32.gmra.mxu0 %v2151
        %v2263 = vpop.f32.mrf.mxu0
        %v2264 = vadd.f32 0.0, %v2263
        %2265 = vmatmul.f32.gmra.mxu0 %v2154
        %v2266 = vpop.f32.mrf.mxu0
        %v2267 = vadd.f32 0.0, %v2266
        %2268 = vmatmul.f32.gmra.mxu0 %v2157
        %v2269 = vpop.f32.mrf.mxu0
        %v2270 = vadd.f32 0.0, %v2269
        %2271 = vmatmul.f32.gmra.mxu0 %v2160
        %v2272 = vpop.f32.mrf.mxu0
        %v2273 = vadd.f32 0.0, %v2272
        %2274 = vmatmul.f32.gmra.mxu0 %v2163
        %v2275 = vpop.f32.mrf.mxu0
        %v2276 = vadd.f32 0.0, %v2275
        %2277 = vmatmul.f32.gmra.mxu0 %v2166
        %v2278 = vpop.f32.mrf.mxu0
        %v2279 = vadd.f32 0.0, %v2278
        %2280 = vmatmul.f32.gmra.mxu0 %v2169
        %v2281 = vpop.f32.mrf.mxu0
        %v2282 = vadd.f32 0.0, %v2281
        %2283 = vmatmul.f32.gmra.mxu0 %v2172
        %v2284 = vpop.f32.mrf.mxu0
        %v2285 = vadd.f32 0.0, %v2284
        %2286 = vmatmul.f32.gmra.mxu0 %v2175
        %v2287 = vpop.f32.mrf.mxu0
        %v2288 = vadd.f32 0.0, %v2287
        %2289 = vmatmul.f32.gmra.mxu0 %v2178
        %v2290 = vpop.f32.mrf.mxu0
        %v2291 = vadd.f32 0.0, %v2290
        %2292 = vmatmul.f32.gmra.mxu0 %v2181
        %v2293 = vpop.f32.mrf.mxu0
        %v2294 = vadd.f32 0.0, %v2293
        %2295 = vmatmul.f32.gmra.mxu0 %v2184
        %v2296 = vpop.f32.mrf.mxu0
        %v2297 = vadd.f32 0.0, %v2296
        %2298 = vmatmul.f32.gmra.mxu0 %v2187
        %v2299 = vpop.f32.mrf.mxu0
        %v2300 = vadd.f32 0.0, %v2299
        %2301 = vmatmul.f32.gmra.mxu0 %v2190
        %v2302 = vpop.f32.mrf.mxu0
        %v2303 = vadd.f32 0.0, %v2302
        %2304 = vmatmul.f32.gmra.mxu0 %v2193
        %v2305 = vpop.f32.mrf.mxu0
        %v2306 = vadd.f32 0.0, %v2305
        %2307 = vmatmul.f32.gmra.mxu0 %v2196
        %v2308 = vpop.f32.mrf.mxu0
        %v2309 = vadd.f32 0.0, %v2308
        %2310 = vmatmul.f32.gmra.mxu0 %v2199
        %v2311 = vpop.f32.mrf.mxu0
        %v2312 = vadd.f32 0.0, %v2311
        %2313 = vmatmul.f32.gmra.mxu0 %v2202
        %v2314 = vpop.f32.mrf.mxu0
        %v2315 = vadd.f32 0.0, %v2314
        %2316 = vmatmul.f32.gmra.mxu0 %v2205
        %v2317 = vpop.f32.mrf.mxu0
        %v2318 = vadd.f32 0.0, %v2317
        %2319 = vmatmul.f32.gmra.mxu0 %v2208
        %v2320 = vpop.f32.mrf.mxu0
        %v2321 = vadd.f32 0.0, %v2320
        %2322 = vmatmul.f32.gmra.mxu0 %v2211
        %v2323 = vpop.f32.mrf.mxu0
        %v2324 = vadd.f32 0.0, %v2323
        %2325 = vdwg.mxu0
        %v2326 = vadd.f32 %v2048, %v2231
        %v2327 = vadd.f32 %v2049, %v2234
        %v2328 = vadd.f32 %v2050, %v2237
        %v2329 = vadd.f32 %v2051, %v2240
        %v2330 = vadd.f32 %v2052, %v2243
        %v2331 = vadd.f32 %v2053, %v2246
        %v2332 = vadd.f32 %v2054, %v2249
        %v2333 = vadd.f32 %v2055, %v2252
        %v2334 = vadd.f32 %v2056, %v2255
        %v2335 = vadd.f32 %v2057, %v2258
        %v2336 = vadd.f32 %v2058, %v2261
        %v2337 = vadd.f32 %v2059, %v2264
        %v2338 = vadd.f32 %v2060, %v2267
        %v2339 = vadd.f32 %v2061, %v2270
        %v2340 = vadd.f32 %v2062, %v2273
        %v2341 = vadd.f32 %v2063, %v2276
        %v2342 = vadd.f32 %v2064, %v2279
        %v2343 = vadd.f32 %v2065, %v2282
        %v2344 = vadd.f32 %v2066, %v2285
        %v2345 = vadd.f32 %v2067, %v2288
        %v2346 = vadd.f32 %v2068, %v2291
        %v2347 = vadd.f32 %v2069, %v2294
        %v2348 = vadd.f32 %v2070, %v2297
        %v2349 = vadd.f32 %v2071, %v2300
        %v2350 = vadd.f32 %v2072, %v2303
        %v2351 = vadd.f32 %v2073, %v2306
        %v2352 = vadd.f32 %v2074, %v2309
        %v2353 = vadd.f32 %v2075, %v2312
        %v2354 = vadd.f32 %v2076, %v2315
        %v2355 = vadd.f32 %v2077, %v2318
        %v2356 = vadd.f32 %v2078, %v2321
        %v2357 = vadd.f32 %v2079, %v2324
        %s2358 = scalar_lea.vmem [#allocation2], 32
        %v2359 = vld [vmem:[%s2358] sm:$0xff]
        %v2360 = vld [vmem:[%s2358 + $0x10] sm:$0xff]
        %v2361 = vld [vmem:[%s2358 + $0x20] sm:$0xff]
        %v2362 = vld [vmem:[%s2358 + $0x30] sm:$0xff]
        %v2363 = vld [vmem:[%s2358 + $0x40] sm:$0xff]
        %v2364 = vld [vmem:[%s2358 + $0x50] sm:$0xff]
        %v2365 = vld [vmem:[%s2358 + $0x60] sm:$0xff]
        %v2366 = vld [vmem:[%s2358 + $0x70] sm:$0xff]
        %v2367 = vld [vmem:[%s2358 + $0xa0] sm:$0xff]
        %v2368 = vld [vmem:[%s2358 + $0xb0] sm:$0xff]
        %v2369 = vld [vmem:[%s2358 + $0xc0] sm:$0xff]
        %v2370 = vld [vmem:[%s2358 + $0xd0] sm:$0xff]
        %v2371 = vld [vmem:[%s2358 + $0xe0] sm:$0xff]
        %v2372 = vld [vmem:[%s2358 + $0xf0] sm:$0xff]
        %v2373 = vld [vmem:[%s2358 + $0x100] sm:$0xff]
        %v2374 = vld [vmem:[%s2358 + $0x110] sm:$0xff]
        %v2375 = vld [vmem:[%s2358 + $0x140] sm:$0xff]
        %v2376 = vld [vmem:[%s2358 + $0x150] sm:$0xff]
        %v2377 = vld [vmem:[%s2358 + $0x160] sm:$0xff]
        %v2378 = vld [vmem:[%s2358 + $0x170] sm:$0xff]
        %v2379 = vld [vmem:[%s2358 + $0x180] sm:$0xff]
        %v2380 = vld [vmem:[%s2358 + $0x190] sm:$0xff]
        %v2381 = vld [vmem:[%s2358 + $0x1a0] sm:$0xff]
        %v2382 = vld [vmem:[%s2358 + $0x1b0] sm:$0xff]
        %v2383 = vld [vmem:[%s2358 + $0x1e0] sm:$0xff]
        %v2384 = vld [vmem:[%s2358 + $0x1f0] sm:$0xff]
        %v2385 = vld [vmem:[%s2358 + $0x200] sm:$0xff]
        %v2386 = vld [vmem:[%s2358 + $0x210] sm:$0xff]
        %v2387 = vld [vmem:[%s2358 + $0x220] sm:$0xff]
        %v2388 = vld [vmem:[%s2358 + $0x230] sm:$0xff]
        %v2389 = vld [vmem:[%s2358 + $0x240] sm:$0xff]
        %v2390 = vld [vmem:[%s2358 + $0x250] sm:$0xff]
        %s2391 = scalar_lea.vmem %s3, 192
        %v2392 = vld [vmem:[%s2391] sm:$0xff]
        %v2393 = vld [vmem:[%s2391 + $0x8] sm:$0xff]
        %v2394 = vld [vmem:[%s2391 + $0x10] sm:$0xff]
        %v2395 = vld [vmem:[%s2391 + $0x18] sm:$0xff]
        %v2397 = vsel %vm638, %v2359, 0
        %v2400 = vsel %vm638, %v2360, 0
        %v2403 = vsel %vm638, %v2361, 0
        %v2406 = vsel %vm638, %v2362, 0
        %v2409 = vsel %vm638, %v2363, 0
        %v2412 = vsel %vm638, %v2364, 0
        %v2415 = vsel %vm638, %v2365, 0
        %v2418 = vsel %vm638, %v2366, 0
        %v2421 = vsel %vm638, %v2367, 0
        %v2424 = vsel %vm638, %v2368, 0
        %v2427 = vsel %vm638, %v2369, 0
        %v2430 = vsel %vm638, %v2370, 0
        %v2433 = vsel %vm638, %v2371, 0
        %v2436 = vsel %vm638, %v2372, 0
        %v2439 = vsel %vm638, %v2373, 0
        %v2442 = vsel %vm638, %v2374, 0
        %v2445 = vsel %vm638, %v2375, 0
        %v2448 = vsel %vm638, %v2376, 0
        %v2451 = vsel %vm638, %v2377, 0
        %v2454 = vsel %vm638, %v2378, 0
        %v2457 = vsel %vm638, %v2379, 0
        %v2460 = vsel %vm638, %v2380, 0
        %v2463 = vsel %vm638, %v2381, 0
        %v2466 = vsel %vm638, %v2382, 0
        %v2469 = vsel %vm638, %v2383, 0
        %v2472 = vsel %vm638, %v2384, 0
        %v2475 = vsel %vm638, %v2385, 0
        %v2478 = vsel %vm638, %v2386, 0
        %v2481 = vsel %vm638, %v2387, 0
        %v2484 = vsel %vm638, %v2388, 0
        %v2487 = vsel %vm638, %v2389, 0
        %v2490 = vsel %vm638, %v2390, 0
        %2492 = vmatpush.msra.mxu0 0.0
        %2493 = vmatpush.msra.mxu0 0.0
        %2494 = vmatpush.msra.mxu0 0.0
        %2495 = vmatpush.msra.mxu0 0.0
        %2496 = vmatpush.msra.mxu0 0.0
        %2497 = vmatpush.msra.mxu0 0.0
        %2498 = vmatpush.msra.mxu0 0.0
        %2499 = vmatpush.msra.mxu0 0.0
        %2500 = vmatpush.msra.mxu0 0.0
        %2501 = vmatpush.msra.mxu0 0.0
        %2502 = vmatpush.msra.mxu0 0.0
        %2503 = vmatpush.msra.mxu0 0.0
        %2504 = vmatpush.msra.mxu0 %v2395
        %2505 = vmatpush.msra.mxu0 %v2394
        %2506 = vmatpush.msra.mxu0 %v2393
        %2507 = vmatpush.msra.mxu0 %v2392
        %2508 = vmatmul.f32.gmra.mxu0 %v2397
        %v2509 = vpop.f32.mrf.mxu0
        %v2510 = vadd.f32 0.0, %v2509
        %2511 = vmatmul.f32.gmra.mxu0 %v2400
        %v2512 = vpop.f32.mrf.mxu0
        %v2513 = vadd.f32 0.0, %v2512
        %2514 = vmatmul.f32.gmra.mxu0 %v2403
        %v2515 = vpop.f32.mrf.mxu0
        %v2516 = vadd.f32 0.0, %v2515
        %2517 = vmatmul.f32.gmra.mxu0 %v2406
        %v2518 = vpop.f32.mrf.mxu0
        %v2519 = vadd.f32 0.0, %v2518
        %2520 = vmatmul.f32.gmra.mxu0 %v2409
        %v2521 = vpop.f32.mrf.mxu0
        %v2522 = vadd.f32 0.0, %v2521
        %2523 = vmatmul.f32.gmra.mxu0 %v2412
        %v2524 = vpop.f32.mrf.mxu0
        %v2525 = vadd.f32 0.0, %v2524
        %2526 = vmatmul.f32.gmra.mxu0 %v2415
        %v2527 = vpop.f32.mrf.mxu0
        %v2528 = vadd.f32 0.0, %v2527
        %2529 = vmatmul.f32.gmra.mxu0 %v2418
        %v2530 = vpop.f32.mrf.mxu0
        %v2531 = vadd.f32 0.0, %v2530
        %2532 = vmatmul.f32.gmra.mxu0 %v2421
        %v2533 = vpop.f32.mrf.mxu0
        %v2534 = vadd.f32 0.0, %v2533
        %2535 = vmatmul.f32.gmra.mxu0 %v2424
        %v2536 = vpop.f32.mrf.mxu0
        %v2537 = vadd.f32 0.0, %v2536
        %2538 = vmatmul.f32.gmra.mxu0 %v2427
        %v2539 = vpop.f32.mrf.mxu0
        %v2540 = vadd.f32 0.0, %v2539
        %2541 = vmatmul.f32.gmra.mxu0 %v2430
        %v2542 = vpop.f32.mrf.mxu0
        %v2543 = vadd.f32 0.0, %v2542
        %2544 = vmatmul.f32.gmra.mxu0 %v2433
        %v2545 = vpop.f32.mrf.mxu0
        %v2546 = vadd.f32 0.0, %v2545
        %2547 = vmatmul.f32.gmra.mxu0 %v2436
        %v2548 = vpop.f32.mrf.mxu0
        %v2549 = vadd.f32 0.0, %v2548
        %2550 = vmatmul.f32.gmra.mxu0 %v2439
        %v2551 = vpop.f32.mrf.mxu0
        %v2552 = vadd.f32 0.0, %v2551
        %2553 = vmatmul.f32.gmra.mxu0 %v2442
        %v2554 = vpop.f32.mrf.mxu0
        %v2555 = vadd.f32 0.0, %v2554
        %2556 = vmatmul.f32.gmra.mxu0 %v2445
        %v2557 = vpop.f32.mrf.mxu0
        %v2558 = vadd.f32 0.0, %v2557
        %2559 = vmatmul.f32.gmra.mxu0 %v2448
        %v2560 = vpop.f32.mrf.mxu0
        %v2561 = vadd.f32 0.0, %v2560
        %2562 = vmatmul.f32.gmra.mxu0 %v2451
        %v2563 = vpop.f32.mrf.mxu0
        %v2564 = vadd.f32 0.0, %v2563
        %2565 = vmatmul.f32.gmra.mxu0 %v2454
        %v2566 = vpop.f32.mrf.mxu0
        %v2567 = vadd.f32 0.0, %v2566
        %2568 = vmatmul.f32.gmra.mxu0 %v2457
        %v2569 = vpop.f32.mrf.mxu0
        %v2570 = vadd.f32 0.0, %v2569
        %2571 = vmatmul.f32.gmra.mxu0 %v2460
        %v2572 = vpop.f32.mrf.mxu0
        %v2573 = vadd.f32 0.0, %v2572
        %2574 = vmatmul.f32.gmra.mxu0 %v2463
        %v2575 = vpop.f32.mrf.mxu0
        %v2576 = vadd.f32 0.0, %v2575
        %2577 = vmatmul.f32.gmra.mxu0 %v2466
        %v2578 = vpop.f32.mrf.mxu0
        %v2579 = vadd.f32 0.0, %v2578
        %2580 = vmatmul.f32.gmra.mxu0 %v2469
        %v2581 = vpop.f32.mrf.mxu0
        %v2582 = vadd.f32 0.0, %v2581
        %2583 = vmatmul.f32.gmra.mxu0 %v2472
        %v2584 = vpop.f32.mrf.mxu0
        %v2585 = vadd.f32 0.0, %v2584
        %2586 = vmatmul.f32.gmra.mxu0 %v2475
        %v2587 = vpop.f32.mrf.mxu0
        %v2588 = vadd.f32 0.0, %v2587
        %2589 = vmatmul.f32.gmra.mxu0 %v2478
        %v2590 = vpop.f32.mrf.mxu0
        %v2591 = vadd.f32 0.0, %v2590
        %2592 = vmatmul.f32.gmra.mxu0 %v2481
        %v2593 = vpop.f32.mrf.mxu0
        %v2594 = vadd.f32 0.0, %v2593
        %2595 = vmatmul.f32.gmra.mxu0 %v2484
        %v2596 = vpop.f32.mrf.mxu0
        %v2597 = vadd.f32 0.0, %v2596
        %2598 = vmatmul.f32.gmra.mxu0 %v2487
        %v2599 = vpop.f32.mrf.mxu0
        %v2600 = vadd.f32 0.0, %v2599
        %2601 = vmatmul.f32.gmra.mxu0 %v2490
        %v2602 = vpop.f32.mrf.mxu0
        %v2603 = vadd.f32 0.0, %v2602
        %2604 = vdwg.mxu0
        %v2605 = vadd.f32 %v2326, %v2510
        %v2606 = vadd.f32 %v2327, %v2513
        %v2607 = vadd.f32 %v2328, %v2516
        %v2608 = vadd.f32 %v2329, %v2519
        %v2609 = vadd.f32 %v2330, %v2522
        %v2610 = vadd.f32 %v2331, %v2525
        %v2611 = vadd.f32 %v2332, %v2528
        %v2612 = vadd.f32 %v2333, %v2531
        %v2613 = vadd.f32 %v2334, %v2534
        %v2614 = vadd.f32 %v2335, %v2537
        %v2615 = vadd.f32 %v2336, %v2540
        %v2616 = vadd.f32 %v2337, %v2543
        %v2617 = vadd.f32 %v2338, %v2546
        %v2618 = vadd.f32 %v2339, %v2549
        %v2619 = vadd.f32 %v2340, %v2552
        %v2620 = vadd.f32 %v2341, %v2555
        %v2621 = vadd.f32 %v2342, %v2558
        %v2622 = vadd.f32 %v2343, %v2561
        %v2623 = vadd.f32 %v2344, %v2564
        %v2624 = vadd.f32 %v2345, %v2567
        %v2625 = vadd.f32 %v2346, %v2570
        %v2626 = vadd.f32 %v2347, %v2573
        %v2627 = vadd.f32 %v2348, %v2576
        %v2628 = vadd.f32 %v2349, %v2579
        %v2629 = vadd.f32 %v2350, %v2582
        %v2630 = vadd.f32 %v2351, %v2585
        %v2631 = vadd.f32 %v2352, %v2588
        %v2632 = vadd.f32 %v2353, %v2591
        %v2633 = vadd.f32 %v2354, %v2594
        %v2634 = vadd.f32 %v2355, %v2597
        %v2635 = vadd.f32 %v2356, %v2600
        %v2636 = vadd.f32 %v2357, %v2603
        %v2637 = vld [vmem:[%s2358 + $0x1] sm:$0xff]
        %v2638 = vld [vmem:[%s2358 + $0x11] sm:$0xff]
        %v2639 = vld [vmem:[%s2358 + $0x21] sm:$0xff]
        %v2640 = vld [vmem:[%s2358 + $0x31] sm:$0xff]
        %v2641 = vld [vmem:[%s2358 + $0x41] sm:$0xff]
        %v2642 = vld [vmem:[%s2358 + $0x51] sm:$0xff]
        %v2643 = vld [vmem:[%s2358 + $0x61] sm:$0xff]
        %v2644 = vld [vmem:[%s2358 + $0x71] sm:$0xff]
        %v2645 = vld [vmem:[%s2358 + $0xa1] sm:$0xff]
        %v2646 = vld [vmem:[%s2358 + $0xb1] sm:$0xff]
        %v2647 = vld [vmem:[%s2358 + $0xc1] sm:$0xff]
        %v2648 = vld [vmem:[%s2358 + $0xd1] sm:$0xff]
        %v2649 = vld [vmem:[%s2358 + $0xe1] sm:$0xff]
        %v2650 = vld [vmem:[%s2358 + $0xf1] sm:$0xff]
        %v2651 = vld [vmem:[%s2358 + $0x101] sm:$0xff]
        %v2652 = vld [vmem:[%s2358 + $0x111] sm:$0xff]
        %v2653 = vld [vmem:[%s2358 + $0x141] sm:$0xff]
        %v2654 = vld [vmem:[%s2358 + $0x151] sm:$0xff]
        %v2655 = vld [vmem:[%s2358 + $0x161] sm:$0xff]
        %v2656 = vld [vmem:[%s2358 + $0x171] sm:$0xff]
        %v2657 = vld [vmem:[%s2358 + $0x181] sm:$0xff]
        %v2658 = vld [vmem:[%s2358 + $0x191] sm:$0xff]
        %v2659 = vld [vmem:[%s2358 + $0x1a1] sm:$0xff]
        %v2660 = vld [vmem:[%s2358 + $0x1b1] sm:$0xff]
        %v2661 = vld [vmem:[%s2358 + $0x1e1] sm:$0xff]
        %v2662 = vld [vmem:[%s2358 + $0x1f1] sm:$0xff]
        %v2663 = vld [vmem:[%s2358 + $0x201] sm:$0xff]
        %v2664 = vld [vmem:[%s2358 + $0x211] sm:$0xff]
        %v2665 = vld [vmem:[%s2358 + $0x221] sm:$0xff]
        %v2666 = vld [vmem:[%s2358 + $0x231] sm:$0xff]
        %v2667 = vld [vmem:[%s2358 + $0x241] sm:$0xff]
        %v2668 = vld [vmem:[%s2358 + $0x251] sm:$0xff]
        %s2669 = scalar_lea.vmem %s3, 224
        %v2670 = vld [vmem:[%s2669] sm:$0xff]
        %v2671 = vld [vmem:[%s2669 + $0x8] sm:$0xff]
        %v2672 = vld [vmem:[%s2669 + $0x10] sm:$0xff]
        %v2673 = vld [vmem:[%s2669 + $0x18] sm:$0xff]
        %v2675 = vsel %vm638, %v2637, 0
        %v2678 = vsel %vm638, %v2638, 0
        %v2681 = vsel %vm638, %v2639, 0
        %v2684 = vsel %vm638, %v2640, 0
        %v2687 = vsel %vm638, %v2641, 0
        %v2690 = vsel %vm638, %v2642, 0
        %v2693 = vsel %vm638, %v2643, 0
        %v2696 = vsel %vm638, %v2644, 0
        %v2699 = vsel %vm638, %v2645, 0
        %v2702 = vsel %vm638, %v2646, 0
        %v2705 = vsel %vm638, %v2647, 0
        %v2708 = vsel %vm638, %v2648, 0
        %v2711 = vsel %vm638, %v2649, 0
        %v2714 = vsel %vm638, %v2650, 0
        %v2717 = vsel %vm638, %v2651, 0
        %v2720 = vsel %vm638, %v2652, 0
        %v2723 = vsel %vm638, %v2653, 0
        %v2726 = vsel %vm638, %v2654, 0
        %v2729 = vsel %vm638, %v2655, 0
        %v2732 = vsel %vm638, %v2656, 0
        %v2735 = vsel %vm638, %v2657, 0
        %v2738 = vsel %vm638, %v2658, 0
        %v2741 = vsel %vm638, %v2659, 0
        %v2744 = vsel %vm638, %v2660, 0
        %v2747 = vsel %vm638, %v2661, 0
        %v2750 = vsel %vm638, %v2662, 0
        %v2753 = vsel %vm638, %v2663, 0
        %v2756 = vsel %vm638, %v2664, 0
        %v2759 = vsel %vm638, %v2665, 0
        %v2762 = vsel %vm638, %v2666, 0
        %v2765 = vsel %vm638, %v2667, 0
        %v2768 = vsel %vm638, %v2668, 0
        %2770 = vmatpush.msra.mxu0 0.0
        %2771 = vmatpush.msra.mxu0 0.0
        %2772 = vmatpush.msra.mxu0 0.0
        %2773 = vmatpush.msra.mxu0 0.0
        %2774 = vmatpush.msra.mxu0 0.0
        %2775 = vmatpush.msra.mxu0 0.0
        %2776 = vmatpush.msra.mxu0 0.0
        %2777 = vmatpush.msra.mxu0 0.0
        %2778 = vmatpush.msra.mxu0 0.0
        %2779 = vmatpush.msra.mxu0 0.0
        %2780 = vmatpush.msra.mxu0 0.0
        %2781 = vmatpush.msra.mxu0 0.0
        %2782 = vmatpush.msra.mxu0 %v2673
        %2783 = vmatpush.msra.mxu0 %v2672
        %2784 = vmatpush.msra.mxu0 %v2671
        %2785 = vmatpush.msra.mxu0 %v2670
        %2786 = vmatmul.f32.gmra.mxu0 %v2675
        %v2787 = vpop.f32.mrf.mxu0
        %v2788 = vadd.f32 0.0, %v2787
        %2789 = vmatmul.f32.gmra.mxu0 %v2678
        %v2790 = vpop.f32.mrf.mxu0
        %v2791 = vadd.f32 0.0, %v2790
        %2792 = vmatmul.f32.gmra.mxu0 %v2681
        %v2793 = vpop.f32.mrf.mxu0
        %v2794 = vadd.f32 0.0, %v2793
        %2795 = vmatmul.f32.gmra.mxu0 %v2684
        %v2796 = vpop.f32.mrf.mxu0
        %v2797 = vadd.f32 0.0, %v2796
        %2798 = vmatmul.f32.gmra.mxu0 %v2687
        %v2799 = vpop.f32.mrf.mxu0
        %v2800 = vadd.f32 0.0, %v2799
        %2801 = vmatmul.f32.gmra.mxu0 %v2690
        %v2802 = vpop.f32.mrf.mxu0
        %v2803 = vadd.f32 0.0, %v2802
        %2804 = vmatmul.f32.gmra.mxu0 %v2693
        %v2805 = vpop.f32.mrf.mxu0
        %v2806 = vadd.f32 0.0, %v2805
        %2807 = vmatmul.f32.gmra.mxu0 %v2696
        %v2808 = vpop.f32.mrf.mxu0
        %v2809 = vadd.f32 0.0, %v2808
        %2810 = vmatmul.f32.gmra.mxu0 %v2699
        %v2811 = vpop.f32.mrf.mxu0
        %v2812 = vadd.f32 0.0, %v2811
        %2813 = vmatmul.f32.gmra.mxu0 %v2702
        %v2814 = vpop.f32.mrf.mxu0
        %v2815 = vadd.f32 0.0, %v2814
        %2816 = vmatmul.f32.gmra.mxu0 %v2705
        %v2817 = vpop.f32.mrf.mxu0
        %v2818 = vadd.f32 0.0, %v2817
        %2819 = vmatmul.f32.gmra.mxu0 %v2708
        %v2820 = vpop.f32.mrf.mxu0
        %v2821 = vadd.f32 0.0, %v2820
        %2822 = vmatmul.f32.gmra.mxu0 %v2711
        %v2823 = vpop.f32.mrf.mxu0
        %v2824 = vadd.f32 0.0, %v2823
        %2825 = vmatmul.f32.gmra.mxu0 %v2714
        %v2826 = vpop.f32.mrf.mxu0
        %v2827 = vadd.f32 0.0, %v2826
        %2828 = vmatmul.f32.gmra.mxu0 %v2717
        %v2829 = vpop.f32.mrf.mxu0
        %v2830 = vadd.f32 0.0, %v2829
        %2831 = vmatmul.f32.gmra.mxu0 %v2720
        %v2832 = vpop.f32.mrf.mxu0
        %v2833 = vadd.f32 0.0, %v2832
        %2834 = vmatmul.f32.gmra.mxu0 %v2723
        %v2835 = vpop.f32.mrf.mxu0
        %v2836 = vadd.f32 0.0, %v2835
        %2837 = vmatmul.f32.gmra.mxu0 %v2726
        %v2838 = vpop.f32.mrf.mxu0
        %v2839 = vadd.f32 0.0, %v2838
        %2840 = vmatmul.f32.gmra.mxu0 %v2729
        %v2841 = vpop.f32.mrf.mxu0
        %v2842 = vadd.f32 0.0, %v2841
        %2843 = vmatmul.f32.gmra.mxu0 %v2732
        %v2844 = vpop.f32.mrf.mxu0
        %v2845 = vadd.f32 0.0, %v2844
        %2846 = vmatmul.f32.gmra.mxu0 %v2735
        %v2847 = vpop.f32.mrf.mxu0
        %v2848 = vadd.f32 0.0, %v2847
        %2849 = vmatmul.f32.gmra.mxu0 %v2738
        %v2850 = vpop.f32.mrf.mxu0
        %v2851 = vadd.f32 0.0, %v2850
        %2852 = vmatmul.f32.gmra.mxu0 %v2741
        %v2853 = vpop.f32.mrf.mxu0
        %v2854 = vadd.f32 0.0, %v2853
        %2855 = vmatmul.f32.gmra.mxu0 %v2744
        %v2856 = vpop.f32.mrf.mxu0
        %v2857 = vadd.f32 0.0, %v2856
        %2858 = vmatmul.f32.gmra.mxu0 %v2747
        %v2859 = vpop.f32.mrf.mxu0
        %v2860 = vadd.f32 0.0, %v2859
        %2861 = vmatmul.f32.gmra.mxu0 %v2750
        %v2862 = vpop.f32.mrf.mxu0
        %v2863 = vadd.f32 0.0, %v2862
        %2864 = vmatmul.f32.gmra.mxu0 %v2753
        %v2865 = vpop.f32.mrf.mxu0
        %v2866 = vadd.f32 0.0, %v2865
        %2867 = vmatmul.f32.gmra.mxu0 %v2756
        %v2868 = vpop.f32.mrf.mxu0
        %v2869 = vadd.f32 0.0, %v2868
        %2870 = vmatmul.f32.gmra.mxu0 %v2759
        %v2871 = vpop.f32.mrf.mxu0
        %v2872 = vadd.f32 0.0, %v2871
        %2873 = vmatmul.f32.gmra.mxu0 %v2762
        %v2874 = vpop.f32.mrf.mxu0
        %v2875 = vadd.f32 0.0, %v2874
        %2876 = vmatmul.f32.gmra.mxu0 %v2765
        %v2877 = vpop.f32.mrf.mxu0
        %v2878 = vadd.f32 0.0, %v2877
        %2879 = vmatmul.f32.gmra.mxu0 %v2768
        %v2880 = vpop.f32.mrf.mxu0
        %v2881 = vadd.f32 0.0, %v2880
        %2882 = vdwg.mxu0
        %v2883 = vadd.f32 %v2605, %v2788
        %v2884 = vadd.f32 %v2606, %v2791
        %v2885 = vadd.f32 %v2607, %v2794
        %v2886 = vadd.f32 %v2608, %v2797
        %v2887 = vadd.f32 %v2609, %v2800
        %v2888 = vadd.f32 %v2610, %v2803
        %v2889 = vadd.f32 %v2611, %v2806
        %v2890 = vadd.f32 %v2612, %v2809
        %v2891 = vadd.f32 %v2613, %v2812
        %v2892 = vadd.f32 %v2614, %v2815
        %v2893 = vadd.f32 %v2615, %v2818
        %v2894 = vadd.f32 %v2616, %v2821
        %v2895 = vadd.f32 %v2617, %v2824
        %v2896 = vadd.f32 %v2618, %v2827
        %v2897 = vadd.f32 %v2619, %v2830
        %v2898 = vadd.f32 %v2620, %v2833
        %v2899 = vadd.f32 %v2621, %v2836
        %v2900 = vadd.f32 %v2622, %v2839
        %v2901 = vadd.f32 %v2623, %v2842
        %v2902 = vadd.f32 %v2624, %v2845
        %v2903 = vadd.f32 %v2625, %v2848
        %v2904 = vadd.f32 %v2626, %v2851
        %v2905 = vadd.f32 %v2627, %v2854
        %v2906 = vadd.f32 %v2628, %v2857
        %v2907 = vadd.f32 %v2629, %v2860
        %v2908 = vadd.f32 %v2630, %v2863
        %v2909 = vadd.f32 %v2631, %v2866
        %v2910 = vadd.f32 %v2632, %v2869
        %v2911 = vadd.f32 %v2633, %v2872
        %v2912 = vadd.f32 %v2634, %v2875
        %v2913 = vadd.f32 %v2635, %v2878
        %v2914 = vadd.f32 %v2636, %v2881
        %v2915 = vld [vmem:[%s2358 + $0x2] sm:$0xff]
        %v2916 = vld [vmem:[%s2358 + $0x12] sm:$0xff]
        %v2917 = vld [vmem:[%s2358 + $0x22] sm:$0xff]
        %v2918 = vld [vmem:[%s2358 + $0x32] sm:$0xff]
        %v2919 = vld [vmem:[%s2358 + $0x42] sm:$0xff]
        %v2920 = vld [vmem:[%s2358 + $0x52] sm:$0xff]
        %v2921 = vld [vmem:[%s2358 + $0x62] sm:$0xff]
        %v2922 = vld [vmem:[%s2358 + $0x72] sm:$0xff]
        %v2923 = vld [vmem:[%s2358 + $0xa2] sm:$0xff]
        %v2924 = vld [vmem:[%s2358 + $0xb2] sm:$0xff]
        %v2925 = vld [vmem:[%s2358 + $0xc2] sm:$0xff]
        %v2926 = vld [vmem:[%s2358 + $0xd2] sm:$0xff]
        %v2927 = vld [vmem:[%s2358 + $0xe2] sm:$0xff]
        %v2928 = vld [vmem:[%s2358 + $0xf2] sm:$0xff]
        %v2929 = vld [vmem:[%s2358 + $0x102] sm:$0xff]
        %v2930 = vld [vmem:[%s2358 + $0x112] sm:$0xff]
        %v2931 = vld [vmem:[%s2358 + $0x142] sm:$0xff]
        %v2932 = vld [vmem:[%s2358 + $0x152] sm:$0xff]
        %v2933 = vld [vmem:[%s2358 + $0x162] sm:$0xff]
        %v2934 = vld [vmem:[%s2358 + $0x172] sm:$0xff]
        %v2935 = vld [vmem:[%s2358 + $0x182] sm:$0xff]
        %v2936 = vld [vmem:[%s2358 + $0x192] sm:$0xff]
        %v2937 = vld [vmem:[%s2358 + $0x1a2] sm:$0xff]
        %v2938 = vld [vmem:[%s2358 + $0x1b2] sm:$0xff]
        %v2939 = vld [vmem:[%s2358 + $0x1e2] sm:$0xff]
        %v2940 = vld [vmem:[%s2358 + $0x1f2] sm:$0xff]
        %v2941 = vld [vmem:[%s2358 + $0x202] sm:$0xff]
        %v2942 = vld [vmem:[%s2358 + $0x212] sm:$0xff]
        %v2943 = vld [vmem:[%s2358 + $0x222] sm:$0xff]
        %v2944 = vld [vmem:[%s2358 + $0x232] sm:$0xff]
        %v2945 = vld [vmem:[%s2358 + $0x242] sm:$0xff]
        %v2946 = vld [vmem:[%s2358 + $0x252] sm:$0xff]
        %s2947 = scalar_lea.vmem %s3, 256
        %v2948 = vld [vmem:[%s2947] sm:$0xff]
        %v2949 = vld [vmem:[%s2947 + $0x8] sm:$0xff]
        %v2950 = vld [vmem:[%s2947 + $0x10] sm:$0xff]
        %v2951 = vld [vmem:[%s2947 + $0x18] sm:$0xff]
        %v2953 = vsel %vm638, %v2915, 0
        %v2956 = vsel %vm638, %v2916, 0
        %v2959 = vsel %vm638, %v2917, 0
        %v2962 = vsel %vm638, %v2918, 0
        %v2965 = vsel %vm638, %v2919, 0
        %v2968 = vsel %vm638, %v2920, 0
        %v2971 = vsel %vm638, %v2921, 0
        %v2974 = vsel %vm638, %v2922, 0
        %v2977 = vsel %vm638, %v2923, 0
        %v2980 = vsel %vm638, %v2924, 0
        %v2983 = vsel %vm638, %v2925, 0
        %v2986 = vsel %vm638, %v2926, 0
        %v2989 = vsel %vm638, %v2927, 0
        %v2992 = vsel %vm638, %v2928, 0
        %v2995 = vsel %vm638, %v2929, 0
        %v2998 = vsel %vm638, %v2930, 0
        %v3001 = vsel %vm638, %v2931, 0
        %v3004 = vsel %vm638, %v2932, 0
        %v3007 = vsel %vm638, %v2933, 0
        %v3010 = vsel %vm638, %v2934, 0
        %v3013 = vsel %vm638, %v2935, 0
        %v3016 = vsel %vm638, %v2936, 0
        %v3019 = vsel %vm638, %v2937, 0
        %v3022 = vsel %vm638, %v2938, 0
        %v3025 = vsel %vm638, %v2939, 0
        %v3028 = vsel %vm638, %v2940, 0
        %v3031 = vsel %vm638, %v2941, 0
        %v3034 = vsel %vm638, %v2942, 0
        %v3037 = vsel %vm638, %v2943, 0
        %v3040 = vsel %vm638, %v2944, 0
        %v3043 = vsel %vm638, %v2945, 0
        %v3046 = vsel %vm638, %v2946, 0
        %3048 = vmatpush.msra.mxu0 0.0
        %3049 = vmatpush.msra.mxu0 0.0
        %3050 = vmatpush.msra.mxu0 0.0
        %3051 = vmatpush.msra.mxu0 0.0
        %3052 = vmatpush.msra.mxu0 0.0
        %3053 = vmatpush.msra.mxu0 0.0
        %3054 = vmatpush.msra.mxu0 0.0
        %3055 = vmatpush.msra.mxu0 0.0
        %3056 = vmatpush.msra.mxu0 0.0
        %3057 = vmatpush.msra.mxu0 0.0
        %3058 = vmatpush.msra.mxu0 0.0
        %3059 = vmatpush.msra.mxu0 0.0
        %3060 = vmatpush.msra.mxu0 %v2951
        %3061 = vmatpush.msra.mxu0 %v2950
        %3062 = vmatpush.msra.mxu0 %v2949
        %3063 = vmatpush.msra.mxu0 %v2948
        %3064 = vmatmul.f32.gmra.mxu0 %v2953
        %v3065 = vpop.f32.mrf.mxu0
        %v3066 = vadd.f32 0.0, %v3065
        %3067 = vmatmul.f32.gmra.mxu0 %v2956
        %v3068 = vpop.f32.mrf.mxu0
        %v3069 = vadd.f32 0.0, %v3068
        %3070 = vmatmul.f32.gmra.mxu0 %v2959
        %v3071 = vpop.f32.mrf.mxu0
        %v3072 = vadd.f32 0.0, %v3071
        %3073 = vmatmul.f32.gmra.mxu0 %v2962
        %v3074 = vpop.f32.mrf.mxu0
        %v3075 = vadd.f32 0.0, %v3074
        %3076 = vmatmul.f32.gmra.mxu0 %v2965
        %v3077 = vpop.f32.mrf.mxu0
        %v3078 = vadd.f32 0.0, %v3077
        %3079 = vmatmul.f32.gmra.mxu0 %v2968
        %v3080 = vpop.f32.mrf.mxu0
        %v3081 = vadd.f32 0.0, %v3080
        %3082 = vmatmul.f32.gmra.mxu0 %v2971
        %v3083 = vpop.f32.mrf.mxu0
        %v3084 = vadd.f32 0.0, %v3083
        %3085 = vmatmul.f32.gmra.mxu0 %v2974
        %v3086 = vpop.f32.mrf.mxu0
        %v3087 = vadd.f32 0.0, %v3086
        %3088 = vmatmul.f32.gmra.mxu0 %v2977
        %v3089 = vpop.f32.mrf.mxu0
        %v3090 = vadd.f32 0.0, %v3089
        %3091 = vmatmul.f32.gmra.mxu0 %v2980
        %v3092 = vpop.f32.mrf.mxu0
        %v3093 = vadd.f32 0.0, %v3092
        %3094 = vmatmul.f32.gmra.mxu0 %v2983
        %v3095 = vpop.f32.mrf.mxu0
        %v3096 = vadd.f32 0.0, %v3095
        %3097 = vmatmul.f32.gmra.mxu0 %v2986
        %v3098 = vpop.f32.mrf.mxu0
        %v3099 = vadd.f32 0.0, %v3098
        %3100 = vmatmul.f32.gmra.mxu0 %v2989
        %v3101 = vpop.f32.mrf.mxu0
        %v3102 = vadd.f32 0.0, %v3101
        %3103 = vmatmul.f32.gmra.mxu0 %v2992
        %v3104 = vpop.f32.mrf.mxu0
        %v3105 = vadd.f32 0.0, %v3104
        %3106 = vmatmul.f32.gmra.mxu0 %v2995
        %v3107 = vpop.f32.mrf.mxu0
        %v3108 = vadd.f32 0.0, %v3107
        %3109 = vmatmul.f32.gmra.mxu0 %v2998
        %v3110 = vpop.f32.mrf.mxu0
        %v3111 = vadd.f32 0.0, %v3110
        %3112 = vmatmul.f32.gmra.mxu0 %v3001
        %v3113 = vpop.f32.mrf.mxu0
        %v3114 = vadd.f32 0.0, %v3113
        %3115 = vmatmul.f32.gmra.mxu0 %v3004
        %v3116 = vpop.f32.mrf.mxu0
        %v3117 = vadd.f32 0.0, %v3116
        %3118 = vmatmul.f32.gmra.mxu0 %v3007
        %v3119 = vpop.f32.mrf.mxu0
        %v3120 = vadd.f32 0.0, %v3119
        %3121 = vmatmul.f32.gmra.mxu0 %v3010
        %v3122 = vpop.f32.mrf.mxu0
        %v3123 = vadd.f32 0.0, %v3122
        %3124 = vmatmul.f32.gmra.mxu0 %v3013
        %v3125 = vpop.f32.mrf.mxu0
        %v3126 = vadd.f32 0.0, %v3125
        %3127 = vmatmul.f32.gmra.mxu0 %v3016
        %v3128 = vpop.f32.mrf.mxu0
        %v3129 = vadd.f32 0.0, %v3128
        %3130 = vmatmul.f32.gmra.mxu0 %v3019
        %v3131 = vpop.f32.mrf.mxu0
        %v3132 = vadd.f32 0.0, %v3131
        %3133 = vmatmul.f32.gmra.mxu0 %v3022
        %v3134 = vpop.f32.mrf.mxu0
        %v3135 = vadd.f32 0.0, %v3134
        %3136 = vmatmul.f32.gmra.mxu0 %v3025
        %v3137 = vpop.f32.mrf.mxu0
        %v3138 = vadd.f32 0.0, %v3137
        %3139 = vmatmul.f32.gmra.mxu0 %v3028
        %v3140 = vpop.f32.mrf.mxu0
        %v3141 = vadd.f32 0.0, %v3140
        %3142 = vmatmul.f32.gmra.mxu0 %v3031
        %v3143 = vpop.f32.mrf.mxu0
        %v3144 = vadd.f32 0.0, %v3143
        %3145 = vmatmul.f32.gmra.mxu0 %v3034
        %v3146 = vpop.f32.mrf.mxu0
        %v3147 = vadd.f32 0.0, %v3146
        %3148 = vmatmul.f32.gmra.mxu0 %v3037
        %v3149 = vpop.f32.mrf.mxu0
        %v3150 = vadd.f32 0.0, %v3149
        %3151 = vmatmul.f32.gmra.mxu0 %v3040
        %v3152 = vpop.f32.mrf.mxu0
        %v3153 = vadd.f32 0.0, %v3152
        %3154 = vmatmul.f32.gmra.mxu0 %v3043
        %v3155 = vpop.f32.mrf.mxu0
        %v3156 = vadd.f32 0.0, %v3155
        %3157 = vmatmul.f32.gmra.mxu0 %v3046
        %v3158 = vpop.f32.mrf.mxu0
        %v3159 = vadd.f32 0.0, %v3158
        %3160 = vdwg.mxu0
        %v3161 = vadd.f32 %v2883, %v3066
        %v3162 = vadd.f32 %v2884, %v3069
        %v3163 = vadd.f32 %v2885, %v3072
        %v3164 = vadd.f32 %v2886, %v3075
        %v3165 = vadd.f32 %v2887, %v3078
        %v3166 = vadd.f32 %v2888, %v3081
        %v3167 = vadd.f32 %v2889, %v3084
        %v3168 = vadd.f32 %v2890, %v3087
        %v3169 = vadd.f32 %v2891, %v3090
        %v3170 = vadd.f32 %v2892, %v3093
        %v3171 = vadd.f32 %v2893, %v3096
        %v3172 = vadd.f32 %v2894, %v3099
        %v3173 = vadd.f32 %v2895, %v3102
        %v3174 = vadd.f32 %v2896, %v3105
        %v3175 = vadd.f32 %v2897, %v3108
        %v3176 = vadd.f32 %v2898, %v3111
        %v3177 = vadd.f32 %v2899, %v3114
        %v3178 = vadd.f32 %v2900, %v3117
        %v3179 = vadd.f32 %v2901, %v3120
        %v3180 = vadd.f32 %v2902, %v3123
        %v3181 = vadd.f32 %v2903, %v3126
        %v3182 = vadd.f32 %v2904, %v3129
        %v3183 = vadd.f32 %v2905, %v3132
        %v3184 = vadd.f32 %v2906, %v3135
        %v3185 = vadd.f32 %v2907, %v3138
        %v3186 = vadd.f32 %v2908, %v3141
        %v3187 = vadd.f32 %v2909, %v3144
        %v3188 = vadd.f32 %v2910, %v3147
        %v3189 = vadd.f32 %v2911, %v3150
        %v3190 = vadd.f32 %v2912, %v3153
        %v3191 = vadd.f32 %v2913, %v3156
        %v3192 = vadd.f32 %v2914, %v3159
        %v3193 = vld [vmem:[%s4] sm:$0x1]
        %v3195 = vperm.slane %v3193, 0
        %v3197 = vadd.f32 %v3161, %v3195
        %v3198 = vadd.f32 %v3162, %v3195
        %v3199 = vadd.f32 %v3163, %v3195
        %v3200 = vadd.f32 %v3164, %v3195
        %v3201 = vadd.f32 %v3165, %v3195
        %v3202 = vadd.f32 %v3166, %v3195
        %v3203 = vadd.f32 %v3167, %v3195
        %v3204 = vadd.f32 %v3168, %v3195
        %v3205 = vadd.f32 %v3169, %v3195
        %v3206 = vadd.f32 %v3170, %v3195
        %v3207 = vadd.f32 %v3171, %v3195
        %v3208 = vadd.f32 %v3172, %v3195
        %v3209 = vadd.f32 %v3173, %v3195
        %v3210 = vadd.f32 %v3174, %v3195
        %v3211 = vadd.f32 %v3175, %v3195
        %v3212 = vadd.f32 %v3176, %v3195
        %v3213 = vadd.f32 %v3177, %v3195
        %v3214 = vadd.f32 %v3178, %v3195
        %v3215 = vadd.f32 %v3179, %v3195
        %v3216 = vadd.f32 %v3180, %v3195
        %v3217 = vadd.f32 %v3181, %v3195
        %v3218 = vadd.f32 %v3182, %v3195
        %v3219 = vadd.f32 %v3183, %v3195
        %v3220 = vadd.f32 %v3184, %v3195
        %v3221 = vadd.f32 %v3185, %v3195
        %v3222 = vadd.f32 %v3186, %v3195
        %v3223 = vadd.f32 %v3187, %v3195
        %v3224 = vadd.f32 %v3188, %v3195
        %v3225 = vadd.f32 %v3189, %v3195
        %v3226 = vadd.f32 %v3190, %v3195
        %v3227 = vadd.f32 %v3191, %v3195
        %v3228 = vadd.f32 %v3192, %v3195
        %v3229 = vmax.f32 %v3197, 0.0
        %v3230 = vmax.f32 %v3198, 0.0
        %v3231 = vmax.f32 %v3199, 0.0
        %v3232 = vmax.f32 %v3200, 0.0
        %v3233 = vmax.f32 %v3201, 0.0
        %v3234 = vmax.f32 %v3202, 0.0
        %v3235 = vmax.f32 %v3203, 0.0
        %v3236 = vmax.f32 %v3204, 0.0
        %v3237 = vmax.f32 %v3205, 0.0
        %v3238 = vmax.f32 %v3206, 0.0
        %v3239 = vmax.f32 %v3207, 0.0
        %v3240 = vmax.f32 %v3208, 0.0
        %v3241 = vmax.f32 %v3209, 0.0
        %v3242 = vmax.f32 %v3210, 0.0
        %v3243 = vmax.f32 %v3211, 0.0
        %v3244 = vmax.f32 %v3212, 0.0
        %v3245 = vmax.f32 %v3213, 0.0
        %v3246 = vmax.f32 %v3214, 0.0
        %v3247 = vmax.f32 %v3215, 0.0
        %v3248 = vmax.f32 %v3216, 0.0
        %v3249 = vmax.f32 %v3217, 0.0
        %v3250 = vmax.f32 %v3218, 0.0
        %v3251 = vmax.f32 %v3219, 0.0
        %v3252 = vmax.f32 %v3220, 0.0
        %v3253 = vmax.f32 %v3221, 0.0
        %v3254 = vmax.f32 %v3222, 0.0
        %v3255 = vmax.f32 %v3223, 0.0
        %v3256 = vmax.f32 %v3224, 0.0
        %v3257 = vmax.f32 %v3225, 0.0
        %v3258 = vmax.f32 %v3226, 0.0
        %v3259 = vmax.f32 %v3227, 0.0
        %v3260 = vmax.f32 %v3228, 0.0
        %v3261 = vld [vmem:[#allocation6] sm:$0xff]
        %v3262 = vld [vmem:[#allocation6 + $0x8] sm:$0xff]
        %v3263 = vld [vmem:[#allocation6 + $0x10] sm:$0xff]
        %v3264 = vld [vmem:[#allocation6 + $0x18] sm:$0xff]
        %v3265 = vld [vmem:[%s6] sm:$0x1]
        %v3267 = vperm.slane %v3265, 0
        %v3270 = vsel %vm638, %v3229, 0
        %v3273 = vsel %vm638, %v3230, 0
        %v3276 = vsel %vm638, %v3231, 0
        %v3279 = vsel %vm638, %v3232, 0
        %v3282 = vsel %vm638, %v3233, 0
        %v3285 = vsel %vm638, %v3234, 0
        %v3288 = vsel %vm638, %v3235, 0
        %v3291 = vsel %vm638, %v3236, 0
        %v3294 = vsel %vm638, %v3237, 0
        %v3297 = vsel %vm638, %v3238, 0
        %v3300 = vsel %vm638, %v3239, 0
        %v3303 = vsel %vm638, %v3240, 0
        %v3306 = vsel %vm638, %v3241, 0
        %v3309 = vsel %vm638, %v3242, 0
        %v3312 = vsel %vm638, %v3243, 0
        %v3315 = vsel %vm638, %v3244, 0
        %v3318 = vsel %vm638, %v3245, 0
        %v3321 = vsel %vm638, %v3246, 0
        %v3324 = vsel %vm638, %v3247, 0
        %v3327 = vsel %vm638, %v3248, 0
        %v3330 = vsel %vm638, %v3249, 0
        %v3333 = vsel %vm638, %v3250, 0
        %v3336 = vsel %vm638, %v3251, 0
        %v3339 = vsel %vm638, %v3252, 0
        %v3342 = vsel %vm638, %v3253, 0
        %v3345 = vsel %vm638, %v3254, 0
        %v3348 = vsel %vm638, %v3255, 0
        %v3351 = vsel %vm638, %v3256, 0
        %v3354 = vsel %vm638, %v3257, 0
        %v3357 = vsel %vm638, %v3258, 0
        %v3360 = vsel %vm638, %v3259, 0
        %v3363 = vsel %vm638, %v3260, 0
        %3365 = vmatpush.msra.mxu0 0.0
        %3366 = vmatpush.msra.mxu0 0.0
        %3367 = vmatpush.msra.mxu0 0.0
        %3368 = vmatpush.msra.mxu0 0.0
        %3369 = vmatpush.msra.mxu0 0.0
        %3370 = vmatpush.msra.mxu0 0.0
        %3371 = vmatpush.msra.mxu0 0.0
        %3372 = vmatpush.msra.mxu0 0.0
        %3373 = vmatpush.msra.mxu0 0.0
        %3374 = vmatpush.msra.mxu0 0.0
        %3375 = vmatpush.msra.mxu0 0.0
        %3376 = vmatpush.msra.mxu0 0.0
        %3377 = vmatpush.msra.mxu0 %v3264
        %3378 = vmatpush.msra.mxu0 %v3263
        %3379 = vmatpush.msra.mxu0 %v3262
        %3380 = vmatpush.msra.mxu0 %v3261
        %3381 = vmatmul.f32.gmra.mxu0 %v3270
        %v3382 = vpop.f32.mrf.mxu0
        %v3383 = vadd.f32 %v3267, %v3382
        %3384 = vmatmul.f32.gmra.mxu0 %v3273
        %v3385 = vpop.f32.mrf.mxu0
        %v3386 = vadd.f32 %v3267, %v3385
        %3387 = vmatmul.f32.gmra.mxu0 %v3276
        %v3388 = vpop.f32.mrf.mxu0
        %v3389 = vadd.f32 %v3267, %v3388
        %3390 = vmatmul.f32.gmra.mxu0 %v3279
        %v3391 = vpop.f32.mrf.mxu0
        %v3392 = vadd.f32 %v3267, %v3391
        %3393 = vmatmul.f32.gmra.mxu0 %v3282
        %v3394 = vpop.f32.mrf.mxu0
        %v3395 = vadd.f32 %v3267, %v3394
        %3396 = vmatmul.f32.gmra.mxu0 %v3285
        %v3397 = vpop.f32.mrf.mxu0
        %v3398 = vadd.f32 %v3267, %v3397
        %3399 = vmatmul.f32.gmra.mxu0 %v3288
        %v3400 = vpop.f32.mrf.mxu0
        %v3401 = vadd.f32 %v3267, %v3400
        %3402 = vmatmul.f32.gmra.mxu0 %v3291
        %v3403 = vpop.f32.mrf.mxu0
        %v3404 = vadd.f32 %v3267, %v3403
        %3405 = vmatmul.f32.gmra.mxu0 %v3294
        %v3406 = vpop.f32.mrf.mxu0
        %v3407 = vadd.f32 %v3267, %v3406
        %3408 = vmatmul.f32.gmra.mxu0 %v3297
        %v3409 = vpop.f32.mrf.mxu0
        %v3410 = vadd.f32 %v3267, %v3409
        %3411 = vmatmul.f32.gmra.mxu0 %v3300
        %v3412 = vpop.f32.mrf.mxu0
        %v3413 = vadd.f32 %v3267, %v3412
        %3414 = vmatmul.f32.gmra.mxu0 %v3303
        %v3415 = vpop.f32.mrf.mxu0
        %v3416 = vadd.f32 %v3267, %v3415
        %3417 = vmatmul.f32.gmra.mxu0 %v3306
        %v3418 = vpop.f32.mrf.mxu0
        %v3419 = vadd.f32 %v3267, %v3418
        %3420 = vmatmul.f32.gmra.mxu0 %v3309
        %v3421 = vpop.f32.mrf.mxu0
        %v3422 = vadd.f32 %v3267, %v3421
        %3423 = vmatmul.f32.gmra.mxu0 %v3312
        %v3424 = vpop.f32.mrf.mxu0
        %v3425 = vadd.f32 %v3267, %v3424
        %3426 = vmatmul.f32.gmra.mxu0 %v3315
        %v3427 = vpop.f32.mrf.mxu0
        %v3428 = vadd.f32 %v3267, %v3427
        %3429 = vmatmul.f32.gmra.mxu0 %v3318
        %v3430 = vpop.f32.mrf.mxu0
        %v3431 = vadd.f32 %v3267, %v3430
        %3432 = vmatmul.f32.gmra.mxu0 %v3321
        %v3433 = vpop.f32.mrf.mxu0
        %v3434 = vadd.f32 %v3267, %v3433
        %3435 = vmatmul.f32.gmra.mxu0 %v3324
        %v3436 = vpop.f32.mrf.mxu0
        %v3437 = vadd.f32 %v3267, %v3436
        %3438 = vmatmul.f32.gmra.mxu0 %v3327
        %v3439 = vpop.f32.mrf.mxu0
        %v3440 = vadd.f32 %v3267, %v3439
        %3441 = vmatmul.f32.gmra.mxu0 %v3330
        %v3442 = vpop.f32.mrf.mxu0
        %v3443 = vadd.f32 %v3267, %v3442
        %3444 = vmatmul.f32.gmra.mxu0 %v3333
        %v3445 = vpop.f32.mrf.mxu0
        %v3446 = vadd.f32 %v3267, %v3445
        %3447 = vmatmul.f32.gmra.mxu0 %v3336
        %v3448 = vpop.f32.mrf.mxu0
        %v3449 = vadd.f32 %v3267, %v3448
        %3450 = vmatmul.f32.gmra.mxu0 %v3339
        %v3451 = vpop.f32.mrf.mxu0
        %v3452 = vadd.f32 %v3267, %v3451
        %3453 = vmatmul.f32.gmra.mxu0 %v3342
        %v3454 = vpop.f32.mrf.mxu0
        %v3455 = vadd.f32 %v3267, %v3454
        %3456 = vmatmul.f32.gmra.mxu0 %v3345
        %v3457 = vpop.f32.mrf.mxu0
        %v3458 = vadd.f32 %v3267, %v3457
        %3459 = vmatmul.f32.gmra.mxu0 %v3348
        %v3460 = vpop.f32.mrf.mxu0
        %v3461 = vadd.f32 %v3267, %v3460
        %3462 = vmatmul.f32.gmra.mxu0 %v3351
        %v3463 = vpop.f32.mrf.mxu0
        %v3464 = vadd.f32 %v3267, %v3463
        %3465 = vmatmul.f32.gmra.mxu0 %v3354
        %v3466 = vpop.f32.mrf.mxu0
        %v3467 = vadd.f32 %v3267, %v3466
        %3468 = vmatmul.f32.gmra.mxu0 %v3357
        %v3469 = vpop.f32.mrf.mxu0
        %v3470 = vadd.f32 %v3267, %v3469
        %3471 = vmatmul.f32.gmra.mxu0 %v3360
        %v3472 = vpop.f32.mrf.mxu0
        %v3473 = vadd.f32 %v3267, %v3472
        %3474 = vmatmul.f32.gmra.mxu0 %v3363
        %v3475 = vpop.f32.mrf.mxu0
        %v3476 = vadd.f32 %v3267, %v3475
        %3477 = vdwg.mxu0
        %v3478 = vadd.f32 %v3383, %v3386
        %v3479 = vadd.f32 %v3478, %v3389
        %v3480 = vadd.f32 %v3479, %v3392
        %v3481 = vadd.f32 %v3480, %v3395
        %v3482 = vadd.f32 %v3481, %v3398
        %v3483 = vadd.f32 %v3482, %v3401
        %v3484 = vadd.f32 %v3483, %v3404
        %v3485 = vrot.slane %v3484, 4
        %v3486 = vadd.f32 %v3484, %v3485
        %v3487 = vrot.slane %v3486, 2
        %v3488 = vadd.f32 %v3486, %v3487
        %v3489 = vrot.slane %v3488, 1
        %v3490 = vadd.f32 %v3488, %v3489
        %v3491 = vadd.f32 %v3407, %v3410
        %v3492 = vadd.f32 %v3491, %v3413
        %v3493 = vadd.f32 %v3492, %v3416
        %v3494 = vadd.f32 %v3493, %v3419
        %v3495 = vadd.f32 %v3494, %v3422
        %v3496 = vadd.f32 %v3495, %v3425
        %v3497 = vadd.f32 %v3496, %v3428
        %v3498 = vrot.slane %v3497, 4
        %v3499 = vadd.f32 %v3497, %v3498
        %v3500 = vrot.slane %v3499, 2
        %v3501 = vadd.f32 %v3499, %v3500
        %v3502 = vrot.slane %v3501, 1
        %v3503 = vadd.f32 %v3501, %v3502
        %v3504 = vadd.f32 %v3431, %v3434
        %v3505 = vadd.f32 %v3504, %v3437
        %v3506 = vadd.f32 %v3505, %v3440
        %v3507 = vadd.f32 %v3506, %v3443
        %v3508 = vadd.f32 %v3507, %v3446
        %v3509 = vadd.f32 %v3508, %v3449
        %v3510 = vadd.f32 %v3509, %v3452
        %v3511 = vrot.slane %v3510, 4
        %v3512 = vadd.f32 %v3510, %v3511
        %v3513 = vrot.slane %v3512, 2
        %v3514 = vadd.f32 %v3512, %v3513
        %v3515 = vrot.slane %v3514, 1
        %v3516 = vadd.f32 %v3514, %v3515
        %v3517 = vadd.f32 %v3455, %v3458
        %v3518 = vadd.f32 %v3517, %v3461
        %v3519 = vadd.f32 %v3518, %v3464
        %v3520 = vadd.f32 %v3519, %v3467
        %v3521 = vadd.f32 %v3520, %v3470
        %v3522 = vadd.f32 %v3521, %v3473
        %v3523 = vadd.f32 %v3522, %v3476
        %v3524 = vrot.slane %v3523, 4
        %v3525 = vadd.f32 %v3523, %v3524
        %v3526 = vrot.slane %v3525, 2
        %v3527 = vadd.f32 %v3525, %v3526
        %v3528 = vrot.slane %v3527, 1
        %v3529 = vadd.f32 %v3527, %v3528
        %v3530 = vmul.f32 %v3490, 0.015625
        %v3531 = vmul.f32 %v3503, 0.015625
        %v3532 = vmul.f32 %v3516, 0.015625
        %v3533 = vmul.f32 %v3529, 0.015625
        %v3534 = vld [vmem:[%s7] sm:$0xff]
        %v3535 = vld [vmem:[%s7 + $0x8] sm:$0xff]
        %v3536 = vld [vmem:[%s7 + $0x10] sm:$0xff]
        %v3537 = vld [vmem:[%s7 + $0x18] sm:$0xff]
        %v3538 = vld [vmem:[%s7 + $0x20] sm:$0xff]
        %v3539 = vld [vmem:[%s7 + $0x28] sm:$0xff]
        %v3540 = vld [vmem:[%s7 + $0x30] sm:$0xff]
        %v3541 = vld [vmem:[%s7 + $0x38] sm:$0xff]
        %v3542 = vld [vmem:[%s7 + $0x40] sm:$0xff]
        %v3543 = vld [vmem:[%s7 + $0x48] sm:$0xff]
        %v3544 = vld [vmem:[%s7 + $0x50] sm:$0xff]
        %v3545 = vld [vmem:[%s7 + $0x58] sm:$0xff]
        %v3546 = vld [vmem:[%s7 + $0x60] sm:$0xff]
        %v3547 = vld [vmem:[%s7 + $0x68] sm:$0xff]
        %v3548 = vld [vmem:[%s7 + $0x70] sm:$0xff]
        %v3549 = vld [vmem:[%s7 + $0x78] sm:$0xff]
        %v3550 = vld [vmem:[%s8] sm:$0x1]
        %v3552 = vperm.slane %v3550, 0
        %vm3558 = vcmask 1041409
        %v3559 = vsel %vm3558, %v3531, %v3530
        %vm3560 = vcmask 1042434
        %v3561 = vsel %vm3560, %v3532, %v3559
        %vm3562 = vcmask 1043459
        %v3563 = vsel %vm3562, %v3533, %v3561
        %3565 = vmatpush.msra.mxu0 %v3549
        %3566 = vmatpush.msra.mxu0 %v3548
        %3567 = vmatpush.msra.mxu0 %v3547
        %3568 = vmatpush.msra.mxu0 %v3546
        %3569 = vmatpush.msra.mxu0 %v3545
        %3570 = vmatpush.msra.mxu0 %v3544
        %3571 = vmatpush.msra.mxu0 %v3543
        %3572 = vmatpush.msra.mxu0 %v3542
        %3573 = vmatpush.msra.mxu0 %v3541
        %3574 = vmatpush.msra.mxu0 %v3540
        %3575 = vmatpush.msra.mxu0 %v3539
        %3576 = vmatpush.msra.mxu0 %v3538
        %3577 = vmatpush.msra.mxu0 %v3537
        %3578 = vmatpush.msra.mxu0 %v3536
        %3579 = vmatpush.msra.mxu0 %v3535
        %3580 = vmatpush.msra.mxu0 %v3534
        %3581 = vmatmul.f32.gmra.mxu0 %v3563
        %v3582 = vpop.f32.mrf.mxu0
        %v3583 = vadd.f32 %v3552, %v3582
        %3584 = vdwg.mxu0
        %v3585 = vmax.f32 %v3583, 0.0
        %v3586 = vld [vmem:[#allocation8] sm:$0xff]
        %v3587 = vld [vmem:[%s10] sm:$0x1]
        %v3589 = vperm.slane %v3587, 0
        %vm3591 = vcmask 64512
        %v3593 = vsel %vm3591, %v3585, 0
        %3595 = vmatpush.msra.mxu0 0.0
        %3596 = vmatpush.msra.mxu0 0.0
        %3597 = vmatpush.msra.mxu0 0.0
        %3598 = vmatpush.msra.mxu0 0.0
        %3599 = vmatpush.msra.mxu0 0.0
        %3600 = vmatpush.msra.mxu0 0.0
        %3601 = vmatpush.msra.mxu0 0.0
        %3602 = vmatpush.msra.mxu0 0.0
        %3603 = vmatpush.msra.mxu0 0.0
        %3604 = vmatpush.msra.mxu0 0.0
        %3605 = vmatpush.msra.mxu0 0.0
        %3606 = vmatpush.msra.mxu0 0.0
        %3607 = vmatpush.msra.mxu0 0.0
        %3608 = vmatpush.msra.mxu0 0.0
        %3609 = vmatpush.msra.mxu0 0.0
        %3610 = vmatpush.msra.mxu0 %v3586
        %3611 = vmatmul.f32.gmra.mxu0 %v3593
        %v3612 = vpop.f32.mrf.mxu0
        %v3613 = vadd.f32 %v3589, %v3612
        %3614 = vdwg.mxu0
        %v3615 = vxor.u32 %v3613, 2147483648
        %v3616 = vmul.f32 %v3615, 1.442695
        %v3617 = vpow.pop %v3616
        %v3618 = vadd.f32 %v3617, 1.0
        %v3619 = vrcp.pop %v3618
        %v3620 = vmul.f32 %v3618, %v3619
        %v3621 = vsub.f32 1.0, %v3620
        %v3622 = vmul.f32 %v3619, %v3621
        %v3623 = vadd.f32 %v3619, %v3622
        %vm3624 = vweird.f32 %v3618
        %vm3625 = vweird.f32 %v3619
        %vm3626 = vmor %vm3624, %vm3625
        %v3627 = vsel %vm3626, %v3619, %v3623
        %v3628 = vand.u32 2147483647, %v3618
        %vm3629 = vcmp.eq.f32.partialorder %v3628, 8.507059e+37
        %v3630 = vand.u32 %v3618, 2147483648
        %v3631 = vor.u32 1.1754944e-38, %v3630
        %v3632 = vsel %vm3629, %v3631, %v3627
        %v3633 = vmul.f32 1.0, %v3632
        %v3635 = vrot.slane %v3633, 1
        %v3636 = vrot.slane %v3633, 2
        %v3637 = vrot.slane %v3633, 3
        %v3638 = vperm.slane %v3633, 0
        %v3639 = vperm.slane %v3635, 0
        %v3640 = vperm.slane %v3636, 0
        %v3641 = vperm.slane %v3637, 0
        %v3646 = vmul.f32 %v3383, %v3638
        %v3647 = vmul.f32 %v3386, %v3638
        %v3648 = vmul.f32 %v3389, %v3638
        %v3649 = vmul.f32 %v3392, %v3638
        %v3650 = vmul.f32 %v3395, %v3638
        %v3651 = vmul.f32 %v3398, %v3638
        %v3652 = vmul.f32 %v3401, %v3638
        %v3653 = vmul.f32 %v3404, %v3638
        %v3654 = vmul.f32 %v3407, %v3639
        %v3655 = vmul.f32 %v3410, %v3639
        %v3656 = vmul.f32 %v3413, %v3639
        %v3657 = vmul.f32 %v3416, %v3639
        %v3658 = vmul.f32 %v3419, %v3639
        %v3659 = vmul.f32 %v3422, %v3639
        %v3660 = vmul.f32 %v3425, %v3639
        %v3661 = vmul.f32 %v3428, %v3639
        %v3662 = vmul.f32 %v3431, %v3640
        %v3663 = vmul.f32 %v3434, %v3640
        %v3664 = vmul.f32 %v3437, %v3640
        %v3665 = vmul.f32 %v3440, %v3640
        %v3666 = vmul.f32 %v3443, %v3640
        %v3667 = vmul.f32 %v3446, %v3640
        %v3668 = vmul.f32 %v3449, %v3640
        %v3669 = vmul.f32 %v3452, %v3640
        %v3670 = vmul.f32 %v3455, %v3641
        %v3671 = vmul.f32 %v3458, %v3641
        %v3672 = vmul.f32 %v3461, %v3641
        %v3673 = vmul.f32 %v3464, %v3641
        %v3674 = vmul.f32 %v3467, %v3641
        %v3675 = vmul.f32 %v3470, %v3641
        %v3676 = vmul.f32 %v3473, %v3641
        %v3677 = vmul.f32 %v3476, %v3641
        %v3678 = vadd.f32 %v3646, %v441
        %v3679 = vadd.f32 %v3647, %v442
        %v3680 = vadd.f32 %v3648, %v443
        %v3681 = vadd.f32 %v3649, %v444
        %v3682 = vadd.f32 %v3650, %v445
        %v3683 = vadd.f32 %v3651, %v446
        %v3684 = vadd.f32 %v3652, %v447
        %v3685 = vadd.f32 %v3653, %v448
        %v3686 = vadd.f32 %v3654, %v449
        %v3687 = vadd.f32 %v3655, %v450
        %v3688 = vadd.f32 %v3656, %v451
        %v3689 = vadd.f32 %v3657, %v452
        %v3690 = vadd.f32 %v3658, %v453
        %v3691 = vadd.f32 %v3659, %v454
        %v3692 = vadd.f32 %v3660, %v455
        %v3693 = vadd.f32 %v3661, %v456
        %v3694 = vadd.f32 %v3662, %v457
        %v3695 = vadd.f32 %v3663, %v458
        %v3696 = vadd.f32 %v3664, %v459
        %v3697 = vadd.f32 %v3665, %v460
        %v3698 = vadd.f32 %v3666, %v461
        %v3699 = vadd.f32 %v3667, %v462
        %v3700 = vadd.f32 %v3668, %v463
        %v3701 = vadd.f32 %v3669, %v464
        %v3702 = vadd.f32 %v3670, %v465
        %v3703 = vadd.f32 %v3671, %v466
        %v3704 = vadd.f32 %v3672, %v467
        %v3705 = vadd.f32 %v3673, %v468
        %v3706 = vadd.f32 %v3674, %v469
        %v3707 = vadd.f32 %v3675, %v470
        %v3708 = vadd.f32 %v3676, %v471
        %v3709 = vadd.f32 %v3677, %v472
        %v3710 = vmax.f32 %v3678, 0.0
        %v3711 = vmax.f32 %v3679, 0.0
        %v3712 = vmax.f32 %v3680, 0.0
        %v3713 = vmax.f32 %v3681, 0.0
        %v3714 = vmax.f32 %v3682, 0.0
        %v3715 = vmax.f32 %v3683, 0.0
        %v3716 = vmax.f32 %v3684, 0.0
        %v3717 = vmax.f32 %v3685, 0.0
        %v3718 = vmax.f32 %v3686, 0.0
        %v3719 = vmax.f32 %v3687, 0.0
        %v3720 = vmax.f32 %v3688, 0.0
        %v3721 = vmax.f32 %v3689, 0.0
        %v3722 = vmax.f32 %v3690, 0.0
        %v3723 = vmax.f32 %v3691, 0.0
        %v3724 = vmax.f32 %v3692, 0.0
        %v3725 = vmax.f32 %v3693, 0.0
        %v3726 = vmax.f32 %v3694, 0.0
        %v3727 = vmax.f32 %v3695, 0.0
        %v3728 = vmax.f32 %v3696, 0.0
        %v3729 = vmax.f32 %v3697, 0.0
        %v3730 = vmax.f32 %v3698, 0.0
        %v3731 = vmax.f32 %v3699, 0.0
        %v3732 = vmax.f32 %v3700, 0.0
        %v3733 = vmax.f32 %v3701, 0.0
        %v3734 = vmax.f32 %v3702, 0.0
        %v3735 = vmax.f32 %v3703, 0.0
        %v3736 = vmax.f32 %v3704, 0.0
        %v3737 = vmax.f32 %v3705, 0.0
        %v3738 = vmax.f32 %v3706, 0.0
        %v3739 = vmax.f32 %v3707, 0.0
        %v3740 = vmax.f32 %v3708, 0.0
        %v3741 = vmax.f32 %v3709, 0.0
        %3742 = vst [vmem:[%s438] sm:$0xff] %v3710
        %3743 = vst [vmem:[%s438 + $0x8] sm:$0xff] %v3711
        %3744 = vst [vmem:[%s438 + $0x10] sm:$0xff] %v3712
        %3745 = vst [vmem:[%s438 + $0x18] sm:$0xff] %v3713
        %3746 = vst [vmem:[%s438 + $0x20] sm:$0xff] %v3714
        %3747 = vst [vmem:[%s438 + $0x28] sm:$0xff] %v3715
        %3748 = vst [vmem:[%s438 + $0x30] sm:$0xff] %v3716
        %3749 = vst [vmem:[%s438 + $0x38] sm:$0xff] %v3717
        %3750 = vst [vmem:[%s438 + $0x40] sm:$0xff] %v3718
        %3751 = vst [vmem:[%s438 + $0x48] sm:$0xff] %v3719
        %3752 = vst [vmem:[%s438 + $0x50] sm:$0xff] %v3720
        %3753 = vst [vmem:[%s438 + $0x58] sm:$0xff] %v3721
        %3754 = vst [vmem:[%s438 + $0x60] sm:$0xff] %v3722
        %3755 = vst [vmem:[%s438 + $0x68] sm:$0xff] %v3723
        %3756 = vst [vmem:[%s438 + $0x70] sm:$0xff] %v3724
        %3757 = vst [vmem:[%s438 + $0x78] sm:$0xff] %v3725
        %3758 = vst [vmem:[%s438 + $0x80] sm:$0xff] %v3726
        %3759 = vst [vmem:[%s438 + $0x88] sm:$0xff] %v3727
        %3760 = vst [vmem:[%s438 + $0x90] sm:$0xff] %v3728
        %3761 = vst [vmem:[%s438 + $0x98] sm:$0xff] %v3729
        %3762 = vst [vmem:[%s438 + $0xa0] sm:$0xff] %v3730
        %3763 = vst [vmem:[%s438 + $0xa8] sm:$0xff] %v3731
        %3764 = vst [vmem:[%s438 + $0xb0] sm:$0xff] %v3732
        %3765 = vst [vmem:[%s438 + $0xb8] sm:$0xff] %v3733
        %3766 = vst [vmem:[%s438 + $0xc0] sm:$0xff] %v3734
        %3767 = vst [vmem:[%s438 + $0xc8] sm:$0xff] %v3735
        %3768 = vst [vmem:[%s438 + $0xd0] sm:$0xff] %v3736
        %3769 = vst [vmem:[%s438 + $0xd8] sm:$0xff] %v3737
        %3770 = vst [vmem:[%s438 + $0xe0] sm:$0xff] %v3738
        %3771 = vst [vmem:[%s438 + $0xe8] sm:$0xff] %v3739
        %3772 = vst [vmem:[%s438 + $0xf0] sm:$0xff] %v3740
        %3773 = vst [vmem:[%s438 + $0xf8] sm:$0xff] %v3741
        %s3774 = sand.u32 %s273, 1
        %s3775 = scalar_lea.sflag [#allocation5], %s3774
        %s3776 = sand.u32 %s273, 1
        %s3777 = smul.addr %s3776, 256
        %s3778 = scalar_lea.vmem [#allocation9], %s3777
        // Predicated region
        $region77: #{tpu_custom_call.1} parent=63 // pred_check
          %p3779 = pneg %p283
        $region78: #{tpu_custom_call.1} parent=63 // pred_check_branch
          %3781 = sbr.rel (%p3779) target = $region80
        $region79: #{tpu_custom_call.1} parent=63 // pred_region
          %s3782 = smul.u32 4, %s29
          %3784 = vsyncadd %s3775, 0
          %s3785 = smul.addr %s3782, 8
          %s3786 = smul.addr %s3785, 8
          %s3787 = scalar_lea.hbm %s11, %s3786
          %s3788 = sshll.u32 %s3778, 4
          %s3789 = int_to_ptr.vmem [resolvable:$true] %s3788
          %s3790 = sshll.u32 %s3787, 4
          %s3791 = int_to_ptr.hbm [resolvable:$true] %s3790
          %3796 = dma.vmem_to_hbm [thread:$0]  %s3789, 4096, %s3791, %s3775, 128, 128, 8
        $region80: #{tpu_custom_call.1} parent=63 // pred_fallthru
          _
      $region64: #{tpu_custom_call.1} parent=5 // pred_fallthru
        _
      %p3797 = scmp.le.s32.totalorder 2, %s24
      // Predicated region
      $region81: #{tpu_custom_call.1} parent=5 // pred_check
        %p3798 = pneg %p3797
      $region82: #{tpu_custom_call.1} parent=5 // pred_check_branch
        %3800 = sbr.rel (%p3798) target = $region84
      $region83: #{tpu_custom_call.1} parent=5 // pred_region
        %s3801 = ssub.s32 %s24, 2
        // Predicated region
        $region85: #{tpu_custom_call.1} parent=83 // pred_check
          %p3802 = pneg %p289
        $region86: #{tpu_custom_call.1} parent=83 // pred_check_branch
          %3804 = sbr.rel (%p3802) target = $region88
        $region87: #{tpu_custom_call.1} parent=83 // pred_region
          %s3805 = sand.u32 %s274, 1
          %s3806 = scalar_lea.sflag [#allocation5], %s3805
          %s3807 = sand.u32 %s274, 1
          %s3808 = smul.addr %s3807, 256
          %s3809 = scalar_lea.vmem [#allocation9], %s3808
          %3811 = dma.done %s3806, 4096
        $region88: #{tpu_custom_call.1} parent=83 // pred_fallthru
          _
      $region84: #{tpu_custom_call.1} parent=5 // pred_fallthru
        _
    $region6: #{tpu_custom_call.1} parent=1 // loop_footer
      %s28 = sadd.s32 1, %s24
    $region7: #{tpu_custom_call.1} parent=1 // loop_footer_branch
      %23 = sbr.rel target = $region3
    $region8: #{tpu_custom_call.1} parent=1 // loop_exit
      _
    %3812 = vsyncpa [#allocation4], 1
    %s3813 = scalar_lea.sflag [#allocation4], 1
    %3814 = vsyncpa %s3813, 1
    %3815 = vsyncpa [#allocation7], 1
    %3816 = vsyncpa [#allocation5], 1
    %s3817 = scalar_lea.sflag [#allocation5], 1
    %3818 = vsyncpa %s3817, 1

</llo_original>
